<compile_context>
chip_gen: v7x
topology: tpu7x:2x2x1
jax: 0.10.0
libtpu: 0.0.40
codegen_flags: <defaults>
</compile_context>

<pallas_src>
import functools

import jax
import jax.numpy as jnp
from jax.experimental import pallas as pl
from jax.experimental.pallas import tpu as pltpu

LANE = 128  # TPU lane width.


def _round_up(x, m):
    return ((x + m - 1) // m) * m


def resnet_block_kernel(x_ref, xres_ref, w1_ref, b1_ref, w2_ref, b2_ref,
                        out_ref, xpad_ref, hpad_ref, patch_ref,
                        *, H, W, ks, Cin, Cout, slope):
    """Fused conv1 + LeakyReLU(0.2) + conv2 + residual for one batch block."""
    pad = ks // 2
    M = H * W
    Kp = patch_ref.shape[1]
    K_used = ks * ks * Cin          # == ks*ks*Cout (in_dim == out_dim required)

    # Channel-compact scratches are tiny (a few KB), so zero them every step.
    # (Gating on program_id(0)==0 would break if the "parallel" batch axis is
    # split across TensorCores, since the second core never runs step 0.)
    xpad_ref[...] = jnp.zeros_like(xpad_ref)
    hpad_ref[...] = jnp.zeros_like(hpad_ref)
    if Kp > K_used:
        # Only the tail columns of the patch are never rewritten below.
        patch_ref[:, K_used:] = jnp.zeros((M, Kp - K_used), patch_ref.dtype)

    def build_patch(src_ref, c):
        # Compact im2col: every (kh, kw) tap contributes c channels packed into
        # ONE 128-lane K group (columns [0, ks*ks*c)) instead of a 128-lane
        # padded group per tap.
        for kw in range(ks):
            # Hoist the sublane-unaligned kw window out of the kh loop (ks
            # shifted copies per conv instead of ks*ks) and pre-merge (row, W)
            # so the per-kh slab below is an aligned sublane slice.
            rows = src_ref[:, kw:kw + W, :].reshape((H + 2 * pad) * W, c)
            for kh in range(ks):
                t = kh * ks + kw
                patch_ref[:, t * c:(t + 1) * c] = rows[kh * W:kh * W + M]

    B = x_ref.shape[0]
    for i in range(B):              # static unroll over the images of this step
        x_img = x_ref[i]                                     # (H, W, Cin) f32
        xpad_ref[pad:pad + H, pad:pad + W, :] = x_img.astype(xpad_ref.dtype)

        # ---- conv1 + bias + LeakyReLU: one native (M,Kp)x(Kp,LANE) MXU matmul.
        build_patch(xpad_ref, Cin)
        h = jnp.dot(patch_ref[...], w1_ref[...],
                    preferred_element_type=jnp.float32) + b1_ref[...]
        h = jnp.where(h > 0, h, slope * h)                   # (M, LANE) f32

        # ---- h never leaves VMEM: compact channels back into padded scratch.
        hpad_ref[pad:pad + H, pad:pad + W, :] = (
            h[:, :Cout].reshape(H, W, Cout).astype(hpad_ref.dtype))

        # ---- conv2 + bias: second native MXU matmul.
        build_patch(hpad_ref, Cout)
        y = jnp.dot(patch_ref[...], w2_ref[...],
                    preferred_element_type=jnp.float32) + b2_ref[...]

        # ---- epilogue: native 128-lane transpose -> channel-compact NCHW-flat
        # store (Cout sublanes x H*W lanes, lane-dense), plus the exact-f32
        # residual taken from the CHW-flat copy of x.
        yt = jnp.transpose(y)                                # (LANE, M)
        out_ref[i] = yt[:Cout, :] + xres_ref[i]


def init_resnet_block_params(key, in_dim, out_dim, ks):
    """Synthetic Conv2d params.  Returns PyTorch-layout (OIHW) f32 weights for
    the reference plus kernel-layout weights: K rows ordered (kh, kw, ci),
    zero-padded to (Kp, LANE) bf16; biases padded to (1, LANE) f32."""
    assert in_dim == out_dim, "ResnetBlock residual add requires in_dim == out_dim"
    assert ks % 2 == 1, "only odd ks keeps the spatial size (pad = ks // 2)"
    k1, k2, k3, k4 = jax.random.split(key, 4)
    w1 = jax.random.normal(k1, (out_dim, in_dim, ks, ks), jnp.float32) * 0.1
    b1 = jax.random.normal(k2, (out_dim,), jnp.float32) * 0.1
    w2 = jax.random.normal(k3, (out_dim, out_dim, ks, ks), jnp.float32) * 0.1
    b2 = jax.random.normal(k4, (out_dim,), jnp.float32) * 0.1

    Kp = _round_up(ks * ks * in_dim, LANE)

    def pack_weight(w_oihw, cin, cout):
        # OIHW -> rows ordered (kh, kw, ci) to match the in-kernel tap packing,
        # zero-padded to (Kp, LANE) so the MXU matmul is fully tile-native.
        w = jnp.transpose(w_oihw, (2, 3, 1, 0)).reshape(ks * ks * cin, cout)
        wp = jnp.zeros((Kp, LANE), jnp.float32).at[:ks * ks * cin, :cout].set(w)
        return wp.astype(jnp.bfloat16)

    def pack_bias(b, cout):
        return jnp.zeros((1, LANE), jnp.float32).at[0, :cout].set(b)

    return dict(
        w1_packed=pack_weight(w1, in_dim, out_dim), b1_packed=pack_bias(b1, out_dim),
        w2_packed=pack_weight(w2, out_dim, out_dim), b2_packed=pack_bias(b2, out_dim),
        w1_oihw=w1, b1_vec=b1, w2_oihw=w2, b2_vec=b2,   # f32 reference copies
    )


@functools.partial(jax.jit, static_argnames=("ks",))
def resnet_block_forward(x_nchw, params, ks):
    """Pallas ResnetBlock forward.  x_nchw: (N, C, H, W) float32 (PyTorch layout)."""
    N, Cin, H, W = x_nchw.shape
    Kp, lane = params["w1_packed"].shape
    Cout = params["b1_vec"].shape[0]
    assert ks % 2 == 1, "only odd ks keeps the spatial size (pad = ks // 2)"
    assert Cin == Cout, "residual add requires in_dim == out_dim"
    assert lane == LANE and Kp == _round_up(ks * ks * Cin, LANE)
    pad = ks // 2

    x_nhwc = jnp.transpose(x_nchw, (0, 2, 3, 1))     # channels-last for the conv taps
    x_chw = x_nchw.reshape(N, Cin, H * W)            # free reshape; exact-f32 residual

    # Images per grid step: amortize per-step overhead, but keep >= 2 grid steps
    # so a megacore part can split the batch axis across its TensorCores.
    B = 1
    for cand in (4, 2):
        if N % cand == 0 and N // cand >= 2:
            B = cand
            break

    kernel = functools.partial(resnet_block_kernel, H=H, W=W, ks=ks,
                               Cin=Cin, Cout=Cout, slope=0.2)
    y_flat = pl.pallas_call(
        kernel,
        out_shape=jax.ShapeDtypeStruct((N, Cout, H * W), jnp.float32),
        grid=(N // B,),
        in_specs=[
            pl.BlockSpec((B, H, W, Cin), lambda n: (n, 0, 0, 0)),    # x (HWC) for taps
            pl.BlockSpec((B, Cin, H * W), lambda n: (n, 0, 0)),      # x (CHW-flat) residual
            pl.BlockSpec((Kp, LANE), lambda n: (0, 0)),              # resident w1
            pl.BlockSpec((1, LANE), lambda n: (0, 0)),               # resident b1
            pl.BlockSpec((Kp, LANE), lambda n: (0, 0)),              # resident w2
            pl.BlockSpec((1, LANE), lambda n: (0, 0)),               # resident b2
        ],
        out_specs=pl.BlockSpec((B, Cout, H * W), lambda n: (n, 0, 0)),
        scratch_shapes=[
            pltpu.VMEM((H + 2 * pad, W + 2 * pad, Cin), jnp.bfloat16),   # padded x
            pltpu.VMEM((H + 2 * pad, W + 2 * pad, Cout), jnp.bfloat16),  # padded h
            pltpu.VMEM((H * W, Kp), jnp.bfloat16),                       # compact patch
        ],
        compiler_params=pltpu.CompilerParams(
            dimension_semantics=("parallel",)),       # both TensorCores on v7x
    )(x_nhwc, x_chw, params["w1_packed"], params["b1_packed"],
      params["w2_packed"], params["b2_packed"])

    # Output is already NCHW-flat (N, Cout, H*W): pure metadata reshape.
    return y_flat.reshape(N, Cout, H, W)


def _reference_forward(x_nchw, params, ks):
    """Pure-JAX f32 reference mirroring the PyTorch module (NCHW convs)."""
    pad = ks // 2
    dn = jax.lax.conv_dimension_numbers(x_nchw.shape, params["w1_oihw"].shape,
                                        ("NCHW", "OIHW", "NCHW"))
    h = jax.lax.conv_general_dilated(x_nchw, params["w1_oihw"], (1, 1),
                                     [(pad, pad), (pad, pad)], dimension_numbers=dn)
    h = h + params["b1_vec"][None, :, None, None]
    h = jnp.where(h > 0, h, 0.2 * h)
    y = jax.lax.conv_general_dilated(h, params["w2_oihw"], (1, 1),
                                     [(pad, pad), (pad, pad)], dimension_numbers=dn)
    y = y + params["b2_vec"][None, :, None, None]
    return y + x_nchw


if __name__ == "__main__":
    N, C, H, W = 2, 4, 16, 16   # in_dim == out_dim (required by the residual add)
    ks = 3

    key = jax.random.PRNGKey(0)
    kx, kp = jax.random.split(key)
    x = jax.random.normal(kx, (N, C, H, W), jnp.float32)
    params = init_resnet_block_params(kp, C, C, ks)

    out = jax.block_until_ready(resnet_block_forward(x, params, ks=ks))
    ref = jax.block_until_ready(_reference_forward(x, params, ks))

    assert out.shape == ref.shape == (N, C, H, W)
    # Tolerance vs the f32 reference is loosened because matmul operands are
    # bf16 (deliberate: f32 accumulation, f32 bias/LeakyReLU, exact f32 residual).
    assert jnp.allclose(out, ref, atol=2e-2, rtol=2e-2), (
        "mismatch vs reference conv: max abs err = "
        f"{jnp.max(jnp.abs(out - ref))}")
    print("KERNEL_OK")
</pallas_src>

<mosaic_0001>
module attributes {stable_mosaic.version = 11 : i64} {
  func.func @resnet_block_kernel(%arg0: i32, %arg1: memref<1x16x16x4xf32, #tpu.memory_space<vmem>>, %arg2: memref<1x4x256xf32, #tpu.memory_space<vmem>>, %arg3: memref<128x128xbf16, #tpu.memory_space<vmem>>, %arg4: memref<1x128xf32, #tpu.memory_space<vmem>>, %arg5: memref<128x128xbf16, #tpu.memory_space<vmem>>, %arg6: memref<1x128xf32, #tpu.memory_space<vmem>>, %arg7: memref<1x4x256xf32, #tpu.memory_space<vmem>>, %arg8: memref<18x18x4xbf16, #tpu.memory_space<vmem>>, %arg9: memref<18x18x4xbf16, #tpu.memory_space<vmem>>, %arg10: memref<256x128xbf16, #tpu.memory_space<vmem>>) attributes {dimension_semantics = [#tpu.dimension_semantics<parallel>], iteration_bounds = array<i64: 2>, scalar_prefetch = 0 : i64, scratch_operands = 3 : i64, tpu.core_type = #tpu.core_type<tc>, window_params = [{transform_indices = @transform_0, window_bounds = array<i64: 1, 16, 16, 4>}, {transform_indices = @transform_1, window_bounds = array<i64: 1, 4, 256>}, {pipeline_mode = #tpu.pipeline_mode<synchronous>, transform_indices = @transform_2, window_bounds = array<i64: 128, 128>}, {pipeline_mode = #tpu.pipeline_mode<synchronous>, transform_indices = @transform_3, window_bounds = array<i64: 1, 128>}, {pipeline_mode = #tpu.pipeline_mode<synchronous>, transform_indices = @transform_4, window_bounds = array<i64: 128, 128>}, {pipeline_mode = #tpu.pipeline_mode<synchronous>, transform_indices = @transform_5, window_bounds = array<i64: 1, 128>}, {transform_indices = @transform_6, window_bounds = array<i64: 1, 4, 256>}]} {
    %cst = arith.constant 0.000000e+00 : bf16
    %0 = vector.broadcast %cst : bf16 to vector<18x18x4xbf16>
    %c0 = arith.constant 0 : index
    %c0_0 = arith.constant 0 : index
    %c0_1 = arith.constant 0 : index
    %1 = vector.load %arg8[%c0, %c0_0, %c0_1] : memref<18x18x4xbf16, #tpu.memory_space<vmem>>, vector<18x18x4xbf16>
    tpu.vector_store %arg8[%c0, %c0_0, %c0_1], %0 {strides = array<i32>} : memref<18x18x4xbf16, #tpu.memory_space<vmem>>, vector<18x18x4xbf16>,
    %cst_2 = arith.constant 0.000000e+00 : bf16
    %2 = vector.broadcast %cst_2 : bf16 to vector<18x18x4xbf16>
    %c0_3 = arith.constant 0 : index
    %c0_4 = arith.constant 0 : index
    %c0_5 = arith.constant 0 : index
    %3 = vector.load %arg9[%c0_3, %c0_4, %c0_5] : memref<18x18x4xbf16, #tpu.memory_space<vmem>>, vector<18x18x4xbf16>
    tpu.vector_store %arg9[%c0_3, %c0_4, %c0_5], %2 {strides = array<i32>} : memref<18x18x4xbf16, #tpu.memory_space<vmem>>, vector<18x18x4xbf16>,
    %cst_6 = arith.constant 0.000000e+00 : bf16
    %4 = vector.broadcast %cst_6 : bf16 to vector<256x92xbf16>
    %c0_7 = arith.constant 0 : index
    %c36 = arith.constant 36 : index
    %5 = vector.load %arg10[%c0_7, %c36] : memref<256x128xbf16, #tpu.memory_space<vmem>>, vector<256x92xbf16>
    tpu.vector_store %arg10[%c0_7, %c36], %4 {strides = array<i32>} : memref<256x128xbf16, #tpu.memory_space<vmem>>, vector<256x92xbf16>,
    %c0_8 = arith.constant 0 : index
    %c0_9 = arith.constant 0 : index
    %c0_10 = arith.constant 0 : index
    %c0_11 = arith.constant 0 : index
    %6 = vector.load %arg1[%c0_8, %c0_9, %c0_10, %c0_11] : memref<1x16x16x4xf32, #tpu.memory_space<vmem>>, vector<1x16x16x4xf32>
    %7 = vector.shape_cast %6 : vector<1x16x16x4xf32> to vector<16x16x4xf32>
    %8 = arith.truncf %7 : vector<16x16x4xf32> to vector<16x16x4xbf16>
    %c1 = arith.constant 1 : index
    %c1_12 = arith.constant 1 : index
    %c0_13 = arith.constant 0 : index
    %9 = vector.load %arg8[%c1, %c1_12, %c0_13] : memref<18x18x4xbf16, #tpu.memory_space<vmem>>, vector<16x16x4xbf16>
    tpu.vector_store %arg8[%c1, %c1_12, %c0_13], %8 {strides = array<i32>} : memref<18x18x4xbf16, #tpu.memory_space<vmem>>, vector<16x16x4xbf16>,
    %c0_14 = arith.constant 0 : index
    %c0_15 = arith.constant 0 : index
    %c0_16 = arith.constant 0 : index
    %10 = vector.load %arg8[%c0_14, %c0_15, %c0_16] : memref<18x18x4xbf16, #tpu.memory_space<vmem>>, vector<18x16x4xbf16>
    %11 = vector.shape_cast %10 : vector<18x16x4xbf16> to vector<288x4xbf16>
    %12 = vector.extract_strided_slice %11 {offsets = [0, 0], sizes = [256, 4], strides = [1, 1]} : vector<288x4xbf16> to vector<256x4xbf16>
    %c0_17 = arith.constant 0 : index
    %c0_18 = arith.constant 0 : index
    %13 = vector.load %arg10[%c0_17, %c0_18] : memref<256x128xbf16, #tpu.memory_space<vmem>>, vector<256x4xbf16>
    tpu.vector_store %arg10[%c0_17, %c0_18], %12 {strides = array<i32>} : memref<256x128xbf16, #tpu.memory_space<vmem>>, vector<256x4xbf16>,
    %14 = vector.extract_strided_slice %11 {offsets = [16, 0], sizes = [256, 4], strides = [1, 1]} : vector<288x4xbf16> to vector<256x4xbf16>
    %c0_19 = arith.constant 0 : index
    %c12 = arith.constant 12 : index
    %15 = vector.load %arg10[%c0_19, %c12] : memref<256x128xbf16, #tpu.memory_space<vmem>>, vector<256x4xbf16>
    tpu.vector_store %arg10[%c0_19, %c12], %14 {strides = array<i32>} : memref<256x128xbf16, #tpu.memory_space<vmem>>, vector<256x4xbf16>,
    %16 = vector.extract_strided_slice %11 {offsets = [32, 0], sizes = [256, 4], strides = [1, 1]} : vector<288x4xbf16> to vector<256x4xbf16>
    %c0_20 = arith.constant 0 : index
    %c24 = arith.constant 24 : index
    %17 = vector.load %arg10[%c0_20, %c24] : memref<256x128xbf16, #tpu.memory_space<vmem>>, vector<256x4xbf16>
    tpu.vector_store %arg10[%c0_20, %c24], %16 {strides = array<i32>} : memref<256x128xbf16, #tpu.memory_space<vmem>>, vector<256x4xbf16>,
    %c0_21 = arith.constant 0 : index
    %c1_22 = arith.constant 1 : index
    %c0_23 = arith.constant 0 : index
    %18 = vector.load %arg8[%c0_21, %c1_22, %c0_23] : memref<18x18x4xbf16, #tpu.memory_space<vmem>>, vector<18x16x4xbf16>
    %19 = vector.shape_cast %18 : vector<18x16x4xbf16> to vector<288x4xbf16>
    %20 = vector.extract_strided_slice %19 {offsets = [0, 0], sizes = [256, 4], strides = [1, 1]} : vector<288x4xbf16> to vector<256x4xbf16>
    %c0_24 = arith.constant 0 : index
    %c4 = arith.constant 4 : index
    %21 = vector.load %arg10[%c0_24, %c4] : memref<256x128xbf16, #tpu.memory_space<vmem>>, vector<256x4xbf16>
    tpu.vector_store %arg10[%c0_24, %c4], %20 {strides = array<i32>} : memref<256x128xbf16, #tpu.memory_space<vmem>>, vector<256x4xbf16>,
    %22 = vector.extract_strided_slice %19 {offsets = [16, 0], sizes = [256, 4], strides = [1, 1]} : vector<288x4xbf16> to vector<256x4xbf16>
    %c0_25 = arith.constant 0 : index
    %c16 = arith.constant 16 : index
    %23 = vector.load %arg10[%c0_25, %c16] : memref<256x128xbf16, #tpu.memory_space<vmem>>, vector<256x4xbf16>
    tpu.vector_store %arg10[%c0_25, %c16], %22 {strides = array<i32>} : memref<256x128xbf16, #tpu.memory_space<vmem>>, vector<256x4xbf16>,
    %24 = vector.extract_strided_slice %19 {offsets = [32, 0], sizes = [256, 4], strides = [1, 1]} : vector<288x4xbf16> to vector<256x4xbf16>
    %c0_26 = arith.constant 0 : index
    %c28 = arith.constant 28 : index
    %25 = vector.load %arg10[%c0_26, %c28] : memref<256x128xbf16, #tpu.memory_space<vmem>>, vector<256x4xbf16>
    tpu.vector_store %arg10[%c0_26, %c28], %24 {strides = array<i32>} : memref<256x128xbf16, #tpu.memory_space<vmem>>, vector<256x4xbf16>,
    %c0_27 = arith.constant 0 : index
    %c2 = arith.constant 2 : index
    %c0_28 = arith.constant 0 : index
    %26 = vector.load %arg8[%c0_27, %c2, %c0_28] : memref<18x18x4xbf16, #tpu.memory_space<vmem>>, vector<18x16x4xbf16>
    %27 = vector.shape_cast %26 : vector<18x16x4xbf16> to vector<288x4xbf16>
    %28 = vector.extract_strided_slice %27 {offsets = [0, 0], sizes = [256, 4], strides = [1, 1]} : vector<288x4xbf16> to vector<256x4xbf16>
    %c0_29 = arith.constant 0 : index
    %c8 = arith.constant 8 : index
    %29 = vector.load %arg10[%c0_29, %c8] : memref<256x128xbf16, #tpu.memory_space<vmem>>, vector<256x4xbf16>
    tpu.vector_store %arg10[%c0_29, %c8], %28 {strides = array<i32>} : memref<256x128xbf16, #tpu.memory_space<vmem>>, vector<256x4xbf16>,
    %30 = vector.extract_strided_slice %27 {offsets = [16, 0], sizes = [256, 4], strides = [1, 1]} : vector<288x4xbf16> to vector<256x4xbf16>
    %c0_30 = arith.constant 0 : index
    %c20 = arith.constant 20 : index
    %31 = vector.load %arg10[%c0_30, %c20] : memref<256x128xbf16, #tpu.memory_space<vmem>>, vector<256x4xbf16>
    tpu.vector_store %arg10[%c0_30, %c20], %30 {strides = array<i32>} : memref<256x128xbf16, #tpu.memory_space<vmem>>, vector<256x4xbf16>,
    %32 = vector.extract_strided_slice %27 {offsets = [32, 0], sizes = [256, 4], strides = [1, 1]} : vector<288x4xbf16> to vector<256x4xbf16>
    %c0_31 = arith.constant 0 : index
    %c32 = arith.constant 32 : index
    %33 = vector.load %arg10[%c0_31, %c32] : memref<256x128xbf16, #tpu.memory_space<vmem>>, vector<256x4xbf16>
    tpu.vector_store %arg10[%c0_31, %c32], %32 {strides = array<i32>} : memref<256x128xbf16, #tpu.memory_space<vmem>>, vector<256x4xbf16>,
    %c0_32 = arith.constant 0 : index
    %c0_33 = arith.constant 0 : index
    %34 = vector.load %arg10[%c0_32, %c0_33] : memref<256x128xbf16, #tpu.memory_space<vmem>>, vector<256x128xbf16>
    %c0_34 = arith.constant 0 : index
    %c0_35 = arith.constant 0 : index
    %35 = vector.load %arg3[%c0_34, %c0_35] : memref<128x128xbf16, #tpu.memory_space<vmem>>, vector<128x128xbf16>
    %cst_36 = arith.constant dense<0.000000e+00> : vector<256x128xf32>
    %36 = tpu.matmul %34, %35, %cst_36 {dimension_numbers = #tpu.dot_dimension_numbers<[1], [0], [0], [1], [0, 0, 1, 1], [], []>} : vector<256x128xbf16>, vector<128x128xbf16>, vector<256x128xf32> -> vector<256x128xf32>
    %c0_37 = arith.constant 0 : index
    %c0_38 = arith.constant 0 : index
    %37 = vector.load %arg4[%c0_37, %c0_38] : memref<1x128xf32, #tpu.memory_space<vmem>>, vector<1x128xf32>
    %38 = vector.broadcast %37 : vector<1x128xf32> to vector<256x128xf32>
    %39 = arith.addf %36, %38 : vector<256x128xf32>
    %cst_39 = arith.constant 0.000000e+00 : f32
    %40 = vector.broadcast %cst_39 : f32 to vector<256x128xf32>
    %41 = arith.cmpf ogt, %39, %40 : vector<256x128xf32>
    %cst_40 = arith.constant 2.000000e-01 : f32
    %42 = vector.broadcast %cst_40 : f32 to vector<256x128xf32>
    %43 = arith.mulf %42, %39 : vector<256x128xf32>
    %44 = arith.select %41, %39, %43 : vector<256x128xi1>, vector<256x128xf32>
    %45 = vector.extract_strided_slice %44 {offsets = [0, 0], sizes = [256, 4], strides = [1, 1]} : vector<256x128xf32> to vector<256x4xf32>
    %46 = vector.shape_cast %45 : vector<256x4xf32> to vector<16x16x4xf32>
    %47 = arith.truncf %46 : vector<16x16x4xf32> to vector<16x16x4xbf16>
    %c1_41 = arith.constant 1 : index
    %c1_42 = arith.constant 1 : index
    %c0_43 = arith.constant 0 : index
    %48 = vector.load %arg9[%c1_41, %c1_42, %c0_43] : memref<18x18x4xbf16, #tpu.memory_space<vmem>>, vector<16x16x4xbf16>
    tpu.vector_store %arg9[%c1_41, %c1_42, %c0_43], %47 {strides = array<i32>} : memref<18x18x4xbf16, #tpu.memory_space<vmem>>, vector<16x16x4xbf16>,
    %c0_44 = arith.constant 0 : index
    %c0_45 = arith.constant 0 : index
    %c0_46 = arith.constant 0 : index
    %49 = vector.load %arg9[%c0_44, %c0_45, %c0_46] : memref<18x18x4xbf16, #tpu.memory_space<vmem>>, vector<18x16x4xbf16>
    %50 = vector.shape_cast %49 : vector<18x16x4xbf16> to vector<288x4xbf16>
    %51 = vector.extract_strided_slice %50 {offsets = [0, 0], sizes = [256, 4], strides = [1, 1]} : vector<288x4xbf16> to vector<256x4xbf16>
    %c0_47 = arith.constant 0 : index
    %c0_48 = arith.constant 0 : index
    %52 = vector.load %arg10[%c0_47, %c0_48] : memref<256x128xbf16, #tpu.memory_space<vmem>>, vector<256x4xbf16>
    tpu.vector_store %arg10[%c0_47, %c0_48], %51 {strides = array<i32>} : memref<256x128xbf16, #tpu.memory_space<vmem>>, vector<256x4xbf16>,
    %53 = vector.extract_strided_slice %50 {offsets = [16, 0], sizes = [256, 4], strides = [1, 1]} : vector<288x4xbf16> to vector<256x4xbf16>
    %c0_49 = arith.constant 0 : index
    %c12_50 = arith.constant 12 : index
    %54 = vector.load %arg10[%c0_49, %c12_50] : memref<256x128xbf16, #tpu.memory_space<vmem>>, vector<256x4xbf16>
    tpu.vector_store %arg10[%c0_49, %c12_50], %53 {strides = array<i32>} : memref<256x128xbf16, #tpu.memory_space<vmem>>, vector<256x4xbf16>,
    %55 = vector.extract_strided_slice %50 {offsets = [32, 0], sizes = [256, 4], strides = [1, 1]} : vector<288x4xbf16> to vector<256x4xbf16>
    %c0_51 = arith.constant 0 : index
    %c24_52 = arith.constant 24 : index
    %56 = vector.load %arg10[%c0_51, %c24_52] : memref<256x128xbf16, #tpu.memory_space<vmem>>, vector<256x4xbf16>
    tpu.vector_store %arg10[%c0_51, %c24_52], %55 {strides = array<i32>} : memref<256x128xbf16, #tpu.memory_space<vmem>>, vector<256x4xbf16>,
    %c0_53 = arith.constant 0 : index
    %c1_54 = arith.constant 1 : index
    %c0_55 = arith.constant 0 : index
    %57 = vector.load %arg9[%c0_53, %c1_54, %c0_55] : memref<18x18x4xbf16, #tpu.memory_space<vmem>>, vector<18x16x4xbf16>
    %58 = vector.shape_cast %57 : vector<18x16x4xbf16> to vector<288x4xbf16>
    %59 = vector.extract_strided_slice %58 {offsets = [0, 0], sizes = [256, 4], strides = [1, 1]} : vector<288x4xbf16> to vector<256x4xbf16>
    %c0_56 = arith.constant 0 : index
    %c4_57 = arith.constant 4 : index
    %60 = vector.load %arg10[%c0_56, %c4_57] : memref<256x128xbf16, #tpu.memory_space<vmem>>, vector<256x4xbf16>
    tpu.vector_store %arg10[%c0_56, %c4_57], %59 {strides = array<i32>} : memref<256x128xbf16, #tpu.memory_space<vmem>>, vector<256x4xbf16>,
    %61 = vector.extract_strided_slice %58 {offsets = [16, 0], sizes = [256, 4], strides = [1, 1]} : vector<288x4xbf16> to vector<256x4xbf16>
    %c0_58 = arith.constant 0 : index
    %c16_59 = arith.constant 16 : index
    %62 = vector.load %arg10[%c0_58, %c16_59] : memref<256x128xbf16, #tpu.memory_space<vmem>>, vector<256x4xbf16>
    tpu.vector_store %arg10[%c0_58, %c16_59], %61 {strides = array<i32>} : memref<256x128xbf16, #tpu.memory_space<vmem>>, vector<256x4xbf16>,
    %63 = vector.extract_strided_slice %58 {offsets = [32, 0], sizes = [256, 4], strides = [1, 1]} : vector<288x4xbf16> to vector<256x4xbf16>
    %c0_60 = arith.constant 0 : index
    %c28_61 = arith.constant 28 : index
    %64 = vector.load %arg10[%c0_60, %c28_61] : memref<256x128xbf16, #tpu.memory_space<vmem>>, vector<256x4xbf16>
    tpu.vector_store %arg10[%c0_60, %c28_61], %63 {strides = array<i32>} : memref<256x128xbf16, #tpu.memory_space<vmem>>, vector<256x4xbf16>,
    %c0_62 = arith.constant 0 : index
    %c2_63 = arith.constant 2 : index
    %c0_64 = arith.constant 0 : index
    %65 = vector.load %arg9[%c0_62, %c2_63, %c0_64] : memref<18x18x4xbf16, #tpu.memory_space<vmem>>, vector<18x16x4xbf16>
    %66 = vector.shape_cast %65 : vector<18x16x4xbf16> to vector<288x4xbf16>
    %67 = vector.extract_strided_slice %66 {offsets = [0, 0], sizes = [256, 4], strides = [1, 1]} : vector<288x4xbf16> to vector<256x4xbf16>
    %c0_65 = arith.constant 0 : index
    %c8_66 = arith.constant 8 : index
    %68 = vector.load %arg10[%c0_65, %c8_66] : memref<256x128xbf16, #tpu.memory_space<vmem>>, vector<256x4xbf16>
    tpu.vector_store %arg10[%c0_65, %c8_66], %67 {strides = array<i32>} : memref<256x128xbf16, #tpu.memory_space<vmem>>, vector<256x4xbf16>,
    %69 = vector.extract_strided_slice %66 {offsets = [16, 0], sizes = [256, 4], strides = [1, 1]} : vector<288x4xbf16> to vector<256x4xbf16>
    %c0_67 = arith.constant 0 : index
    %c20_68 = arith.constant 20 : index
    %70 = vector.load %arg10[%c0_67, %c20_68] : memref<256x128xbf16, #tpu.memory_space<vmem>>, vector<256x4xbf16>
    tpu.vector_store %arg10[%c0_67, %c20_68], %69 {strides = array<i32>} : memref<256x128xbf16, #tpu.memory_space<vmem>>, vector<256x4xbf16>,
    %71 = vector.extract_strided_slice %66 {offsets = [32, 0], sizes = [256, 4], strides = [1, 1]} : vector<288x4xbf16> to vector<256x4xbf16>
    %c0_69 = arith.constant 0 : index
    %c32_70 = arith.constant 32 : index
    %72 = vector.load %arg10[%c0_69, %c32_70] : memref<256x128xbf16, #tpu.memory_space<vmem>>, vector<256x4xbf16>
    tpu.vector_store %arg10[%c0_69, %c32_70], %71 {strides = array<i32>} : memref<256x128xbf16, #tpu.memory_space<vmem>>, vector<256x4xbf16>,
    %c0_71 = arith.constant 0 : index
    %c0_72 = arith.constant 0 : index
    %73 = vector.load %arg10[%c0_71, %c0_72] : memref<256x128xbf16, #tpu.memory_space<vmem>>, vector<256x128xbf16>
    %c0_73 = arith.constant 0 : index
    %c0_74 = arith.constant 0 : index
    %74 = vector.load %arg5[%c0_73, %c0_74] : memref<128x128xbf16, #tpu.memory_space<vmem>>, vector<128x128xbf16>
    %cst_75 = arith.constant dense<0.000000e+00> : vector<256x128xf32>
    %75 = tpu.matmul %73, %74, %cst_75 {dimension_numbers = #tpu.dot_dimension_numbers<[1], [0], [0], [1], [0, 0, 1, 1], [], []>} : vector<256x128xbf16>, vector<128x128xbf16>, vector<256x128xf32> -> vector<256x128xf32>
    %c0_76 = arith.constant 0 : index
    %c0_77 = arith.constant 0 : index
    %76 = vector.load %arg6[%c0_76, %c0_77] : memref<1x128xf32, #tpu.memory_space<vmem>>, vector<1x128xf32>
    %77 = vector.broadcast %76 : vector<1x128xf32> to vector<256x128xf32>
    %78 = arith.addf %75, %77 : vector<256x128xf32>
    %79 = tpu.transpose %78, [1, 0] : vector<256x128xf32> -> vector<128x256xf32>
    %80 = vector.extract_strided_slice %79 {offsets = [0, 0], sizes = [4, 256], strides = [1, 1]} : vector<128x256xf32> to vector<4x256xf32>
    %c0_78 = arith.constant 0 : index
    %c0_79 = arith.constant 0 : index
    %c0_80 = arith.constant 0 : index
    %81 = vector.load %arg2[%c0_78, %c0_79, %c0_80] : memref<1x4x256xf32, #tpu.memory_space<vmem>>, vector<1x4x256xf32>
    %82 = vector.shape_cast %81 : vector<1x4x256xf32> to vector<4x256xf32>
    %83 = arith.addf %80, %82 : vector<4x256xf32>
    %c0_81 = arith.constant 0 : index
    %c0_82 = arith.constant 0 : index
    %c0_83 = arith.constant 0 : index
    %84 = vector.load %arg7[%c0_81, %c0_82, %c0_83] : memref<1x4x256xf32, #tpu.memory_space<vmem>>, vector<1x4x256xf32>
    %85 = vector.shape_cast %84 : vector<1x4x256xf32> to vector<4x256xf32>
    %86 = vector.shape_cast %83 : vector<4x256xf32> to vector<1x4x256xf32>
    tpu.vector_store %arg7[%c0_81, %c0_82, %c0_83], %86 {strides = array<i32>} : memref<1x4x256xf32, #tpu.memory_space<vmem>>, vector<1x4x256xf32>,
    return
  }
  func.func @transform_0(%arg0: i32) -> (i32, i32, i32, i32) {
    %c0_i32 = arith.constant 0 : i32
    %c0_i32_0 = arith.constant 0 : i32
    %c0_i32_1 = arith.constant 0 : i32
    %c0_i32_2 = arith.constant 0 : i32
    return %arg0, %c0_i32, %c0_i32_0, %c0_i32_1 : i32, i32, i32, i32
  }
  func.func @transform_1(%arg0: i32) -> (i32, i32, i32) {
    %c0_i32 = arith.constant 0 : i32
    %c0_i32_0 = arith.constant 0 : i32
    %c0_i32_1 = arith.constant 0 : i32
    return %arg0, %c0_i32, %c0_i32_0 : i32, i32, i32
  }
  func.func @transform_2(%arg0: i32) -> (i32, i32) {
    %c0_i32 = arith.constant 0 : i32
    %c0_i32_0 = arith.constant 0 : i32
    %c0_i32_1 = arith.constant 0 : i32
    return %c0_i32, %c0_i32_0 : i32, i32
  }
  func.func @transform_3(%arg0: i32) -> (i32, i32) {
    %c0_i32 = arith.constant 0 : i32
    %c0_i32_0 = arith.constant 0 : i32
    %c0_i32_1 = arith.constant 0 : i32
    return %c0_i32, %c0_i32_0 : i32, i32
  }
  func.func @transform_4(%arg0: i32) -> (i32, i32) {
    %c0_i32 = arith.constant 0 : i32
    %c0_i32_0 = arith.constant 0 : i32
    %c0_i32_1 = arith.constant 0 : i32
    return %c0_i32, %c0_i32_0 : i32, i32
  }
  func.func @transform_5(%arg0: i32) -> (i32, i32) {
    %c0_i32 = arith.constant 0 : i32
    %c0_i32_0 = arith.constant 0 : i32
    %c0_i32_1 = arith.constant 0 : i32
    return %c0_i32, %c0_i32_0 : i32, i32
  }
  func.func @transform_6(%arg0: i32) -> (i32, i32, i32) {
    %c0_i32 = arith.constant 0 : i32
    %c0_i32_0 = arith.constant 0 : i32
    %c0_i32_1 = arith.constant 0 : i32
    return %arg0, %c0_i32, %c0_i32_0 : i32, i32, i32
  }
}

</mosaic_0001>

<llo_original>
// kernel: resnet_block_forward.1
$region0: #{resnet_block_forward.1}
  #allocation0 [shape = 'u32[]', space=smem, size = 0x4, offset = 0x4, fixed_abs, tag = 'smem constant byte address 0x4 - core index']
  #allocation1 [shape = 'u32[144,128]{1,0:T(1,128)}', space=vmem, size = 0x12000, scoped, tag = 'internal scratch']
  #allocation2 [shape = 'bf16[18,18,4]{2,1,0:T(8,128)(2,1)}', space=vmem, size = 0x1b000, scoped, tag = 'scratch operand']
  #allocation3 [shape = 'bf16[18,18,4]{2,1,0:T(8,128)(2,1)}', space=vmem, size = 0x1b000, scoped, tag = 'scratch operand']
  #allocation4 [shape = 'bf16[256,128]{1,0:T(16,128)(2,1)}', space=vmem, size = 0x10000, scoped, tag = 'scratch operand']
  %s0 = inlined_call_operand.vmem [shape: f32[2,16,16,4], index: 0, kind: input, shape index: {}]
  %s1 = inlined_call_operand.vmem [shape: f32[2,4,256], index: 1, kind: input, shape index: {}]
  %s2 = inlined_call_operand.vmem [shape: bf16[128,128], index: 2, kind: input, shape index: {}]
  %s3 = inlined_call_operand.vmem [shape: f32[1,128], index: 3, kind: input, shape index: {}]
  %s4 = inlined_call_operand.vmem [shape: bf16[128,128], index: 4, kind: input, shape index: {}]
  %s5 = inlined_call_operand.vmem [shape: f32[1,128], index: 5, kind: input, shape index: {}]
  %s6 = inlined_call_operand.vmem [shape: f32[2,4,256], index: 6, kind: output, shape index: {}]
  %s7 = sld [smem:[#allocation0]]
  $region57: #{resnet_block_forward.1} parent=0
    _
  %s9 = ssub.s32 1, %s7
  %s10 = scalar_select 0, %s9, %s7
  loop: start=0, step=1, limit=4
  $region2: #{resnet_block_forward.1} parent=0 // loop_pre_header
    _
  $region3: #{resnet_block_forward.1} parent=0 // loop_header
    %s12 = sphi 0, %s16
    %p13 = scmp.ge.s32.totalorder %s12, 4
    %s22 = sphi 0, %s24
    %s25 = sphi 0, %s22
    %s26 = sphi 0, %s25
    %s42 = sphi 0, %s26
    %s48 = sphi 0, %s50
    %s51 = sphi 0, %s48
    %s52 = sphi 0, %s51
    %s68 = sphi 0, %s52
    %s72 = sphi 0, %s72
    %s74 = sphi 0, %s72
    %s75 = sphi 0, %s74
    %s89 = sphi 0, %s75
    %s93 = sphi 0, %s93
    %s95 = sphi 0, %s93
    %s96 = sphi 0, %s95
    %s110 = sphi 0, %s96
    %s114 = sphi 0, %s114
    %s116 = sphi 0, %s114
    %s117 = sphi 0, %s116
    %s131 = sphi 0, %s117
    %s135 = sphi 0, %s135
    %s137 = sphi 0, %s135
    %s138 = sphi 0, %s137
    %s152 = sphi 0, %s138
    %s158 = sphi 0, %s160
    %s161 = sphi 0, %s158
    %s162 = sphi 0, %s161
    %s178 = sphi 0, %s162
  $region4: #{resnet_block_forward.1} parent=0 // loop_header_branch
    %15 = sbr.rel (%p13) target = $region8
  $region5: #{resnet_block_forward.1} parent=0 // loop_body
    %s17 = ssub.s32 %s12, 1
    %s18 = ssub.s32 %s12, 2
    %s19 = sadd.s32 %s12, 1
    %s20 = ssub.s32 %s12, %s19
    %p21 = scmp.eq.s32.totalorder %s20, 0
    %s23 = sadd.s32 %s22, 1
    %s24 = scalar_select %p21, %s22, %s23
    %p27 = pneg %p21
    %p28 = scmp.eq.s32.totalorder %s12, 1
    %p29 = por %p27, %p28
    %p30 = scmp.ne.s32.totalorder %s22, %s25
    %p31 = scmp.eq.s32.totalorder %s12, 0
    %p32 = por %p30, %p31
    %p33 = scmp.ne.s32.totalorder %s22, %s25
    %p34 = scmp.eq.s32.totalorder %s17, 1
    %p35 = por %p33, %p34
    %p36 = scmp.ne.s32.totalorder %s25, %s26
    %p37 = scmp.eq.s32.totalorder %s17, 0
    %p38 = por %p36, %p37
    %p39 = scmp.ne.s32.totalorder %s25, %s26
    %p40 = scmp.eq.s32.totalorder %s18, 1
    %p41 = por %p39, %p40
    %p43 = scmp.ne.s32.totalorder %s26, %s42
    %p44 = scmp.eq.s32.totalorder %s18, 0
    %p45 = por %p43, %p44
    %s46 = ssub.s32 %s12, %s19
    %p47 = scmp.eq.s32.totalorder %s46, 0
    %s49 = sadd.s32 %s48, 1
    %s50 = scalar_select %p47, %s48, %s49
    %p53 = pneg %p47
    %p54 = scmp.eq.s32.totalorder %s12, 1
    %p55 = por %p53, %p54
    %p56 = scmp.ne.s32.totalorder %s48, %s51
    %p57 = scmp.eq.s32.totalorder %s12, 0
    %p58 = por %p56, %p57
    %p59 = scmp.ne.s32.totalorder %s48, %s51
    %p60 = scmp.eq.s32.totalorder %s17, 1
    %p61 = por %p59, %p60
    %p62 = scmp.ne.s32.totalorder %s51, %s52
    %p63 = scmp.eq.s32.totalorder %s17, 0
    %p64 = por %p62, %p63
    %p65 = scmp.ne.s32.totalorder %s51, %s52
    %p66 = scmp.eq.s32.totalorder %s18, 1
    %p67 = por %p65, %p66
    %p69 = scmp.ne.s32.totalorder %s52, %s68
    %p70 = scmp.eq.s32.totalorder %s18, 0
    %p71 = por %p69, %p70
    %s73 = sadd.s32 %s72, 1
    %p76 = scmp.eq.s32.totalorder %s12, 1
    %p77 = scmp.ne.s32.totalorder %s72, %s74
    %p78 = scmp.eq.s32.totalorder %s12, 0
    %p79 = por %p77, %p78
    %p80 = scmp.ne.s32.totalorder %s72, %s74
    %p81 = scmp.eq.s32.totalorder %s17, 1
    %p82 = por %p80, %p81
    %p83 = scmp.ne.s32.totalorder %s74, %s75
    %p84 = scmp.eq.s32.totalorder %s17, 0
    %p85 = por %p83, %p84
    %p86 = scmp.ne.s32.totalorder %s74, %s75
    %p87 = scmp.eq.s32.totalorder %s18, 1
    %p88 = por %p86, %p87
    %p90 = scmp.ne.s32.totalorder %s75, %s89
    %p91 = scmp.eq.s32.totalorder %s18, 0
    %p92 = por %p90, %p91
    %s94 = sadd.s32 %s93, 1
    %p97 = scmp.eq.s32.totalorder %s12, 1
    %p98 = scmp.ne.s32.totalorder %s93, %s95
    %p99 = scmp.eq.s32.totalorder %s12, 0
    %p100 = por %p98, %p99
    %p101 = scmp.ne.s32.totalorder %s93, %s95
    %p102 = scmp.eq.s32.totalorder %s17, 1
    %p103 = por %p101, %p102
    %p104 = scmp.ne.s32.totalorder %s95, %s96
    %p105 = scmp.eq.s32.totalorder %s17, 0
    %p106 = por %p104, %p105
    %p107 = scmp.ne.s32.totalorder %s95, %s96
    %p108 = scmp.eq.s32.totalorder %s18, 1
    %p109 = por %p107, %p108
    %p111 = scmp.ne.s32.totalorder %s96, %s110
    %p112 = scmp.eq.s32.totalorder %s18, 0
    %p113 = por %p111, %p112
    %s115 = sadd.s32 %s114, 1
    %p118 = scmp.eq.s32.totalorder %s12, 1
    %p119 = scmp.ne.s32.totalorder %s114, %s116
    %p120 = scmp.eq.s32.totalorder %s12, 0
    %p121 = por %p119, %p120
    %p122 = scmp.ne.s32.totalorder %s114, %s116
    %p123 = scmp.eq.s32.totalorder %s17, 1
    %p124 = por %p122, %p123
    %p125 = scmp.ne.s32.totalorder %s116, %s117
    %p126 = scmp.eq.s32.totalorder %s17, 0
    %p127 = por %p125, %p126
    %p128 = scmp.ne.s32.totalorder %s116, %s117
    %p129 = scmp.eq.s32.totalorder %s18, 1
    %p130 = por %p128, %p129
    %p132 = scmp.ne.s32.totalorder %s117, %s131
    %p133 = scmp.eq.s32.totalorder %s18, 0
    %p134 = por %p132, %p133
    %s136 = sadd.s32 %s135, 1
    %p139 = scmp.eq.s32.totalorder %s12, 1
    %p140 = scmp.ne.s32.totalorder %s135, %s137
    %p141 = scmp.eq.s32.totalorder %s12, 0
    %p142 = por %p140, %p141
    %p143 = scmp.ne.s32.totalorder %s135, %s137
    %p144 = scmp.eq.s32.totalorder %s17, 1
    %p145 = por %p143, %p144
    %p146 = scmp.ne.s32.totalorder %s137, %s138
    %p147 = scmp.eq.s32.totalorder %s17, 0
    %p148 = por %p146, %p147
    %p149 = scmp.ne.s32.totalorder %s137, %s138
    %p150 = scmp.eq.s32.totalorder %s18, 1
    %p151 = por %p149, %p150
    %p153 = scmp.ne.s32.totalorder %s138, %s152
    %p154 = scmp.eq.s32.totalorder %s18, 0
    %p155 = por %p153, %p154
    %s156 = ssub.s32 %s12, %s19
    %p157 = scmp.eq.s32.totalorder %s156, 0
    %s159 = sadd.s32 %s158, 1
    %s160 = scalar_select %p157, %s158, %s159
    %p163 = pneg %p157
    %p164 = scmp.eq.s32.totalorder %s12, 1
    %p165 = por %p163, %p164
    %p166 = scmp.ne.s32.totalorder %s158, %s161
    %p167 = scmp.eq.s32.totalorder %s12, 0
    %p168 = por %p166, %p167
    %p169 = scmp.ne.s32.totalorder %s158, %s161
    %p170 = scmp.eq.s32.totalorder %s17, 1
    %p171 = por %p169, %p170
    %p172 = scmp.ne.s32.totalorder %s161, %s162
    %p173 = scmp.eq.s32.totalorder %s17, 0
    %p174 = por %p172, %p173
    %p175 = scmp.ne.s32.totalorder %s161, %s162
    %p176 = scmp.eq.s32.totalorder %s18, 1
    %p177 = por %p175, %p176
    %p179 = scmp.ne.s32.totalorder %s162, %s178
    %p180 = scmp.eq.s32.totalorder %s18, 0
    %p181 = por %p179, %p180
    %p182 = scmp.le.s32.totalorder 1, %s12
    %p183 = scmp.lt.s32.totalorder %s12, 3
    %p184 = pnand %p182, %p183
    %p185 = pneg %p184
    // Predicated region
    $region9: #{resnet_block_forward.1} parent=5 // pred_check
      _
    $region10: #{resnet_block_forward.1} parent=5 // pred_check_branch
      %187 = sbr.rel (%p184) target = $region12
    $region11: #{resnet_block_forward.1} parent=5 // pred_region
      %s188 = ssub.s32 %s12, 1
      // Predicated region
      $region13: #{resnet_block_forward.1} parent=11 // pred_check
        %p189 = pneg %p85
      $region14: #{resnet_block_forward.1} parent=11 // pred_check_branch
        %191 = sbr.rel (%p189) target = $region16
      $region15: #{resnet_block_forward.1} parent=11 // pred_region
        _
      $region16: #{resnet_block_forward.1} parent=11 // pred_fallthru
        _
      // Predicated region
      $region17: #{resnet_block_forward.1} parent=11 // pred_check
        %p192 = pneg %p106
      $region18: #{resnet_block_forward.1} parent=11 // pred_check_branch
        %194 = sbr.rel (%p192) target = $region20
      $region19: #{resnet_block_forward.1} parent=11 // pred_region
        _
      $region20: #{resnet_block_forward.1} parent=11 // pred_fallthru
        _
      // Predicated region
      $region21: #{resnet_block_forward.1} parent=11 // pred_check
        %p195 = pneg %p127
      $region22: #{resnet_block_forward.1} parent=11 // pred_check_branch
        %197 = sbr.rel (%p195) target = $region24
      $region23: #{resnet_block_forward.1} parent=11 // pred_region
        _
      $region24: #{resnet_block_forward.1} parent=11 // pred_fallthru
        _
      // Predicated region
      $region25: #{resnet_block_forward.1} parent=11 // pred_check
        %p198 = pneg %p148
      $region26: #{resnet_block_forward.1} parent=11 // pred_check_branch
        %200 = sbr.rel (%p198) target = $region28
      $region27: #{resnet_block_forward.1} parent=11 // pred_region
        _
      $region28: #{resnet_block_forward.1} parent=11 // pred_fallthru
        _
    $region12: #{resnet_block_forward.1} parent=5 // pred_fallthru
      _
    %p201 = scmp.lt.s32.totalorder %s12, 2
    // Predicated region
    $region29: #{resnet_block_forward.1} parent=5 // pred_check
      %p202 = pneg %p201
    $region30: #{resnet_block_forward.1} parent=5 // pred_check_branch
      %204 = sbr.rel (%p202) target = $region32
    $region31: #{resnet_block_forward.1} parent=5 // pred_region
      // Predicated region
      $region33: #{resnet_block_forward.1} parent=31 // pred_check
        %p205 = pneg %p32
      $region34: #{resnet_block_forward.1} parent=31 // pred_check_branch
        %207 = sbr.rel (%p205) target = $region36
      $region35: #{resnet_block_forward.1} parent=31 // pred_region
        %p208 = scmp.lt.s32.totalorder %s12, 1
        %s209 = scalar_select %p208, %s12, 1
        %s210 = smul.addr %s209, 32
        %s211 = smul.addr %s210, 8
        %s212 = scalar_lea.vmem %s0, %s211
      $region36: #{resnet_block_forward.1} parent=31 // pred_fallthru
        _
      // Predicated region
      $region37: #{resnet_block_forward.1} parent=31 // pred_check
        %p213 = pneg %p58
      $region38: #{resnet_block_forward.1} parent=31 // pred_check_branch
        %215 = sbr.rel (%p213) target = $region40
      $region39: #{resnet_block_forward.1} parent=31 // pred_region
        %p216 = scmp.lt.s32.totalorder %s12, 1
        %s217 = scalar_select %p216, %s12, 1
        %s218 = smul.addr %s217, 2
        %s219 = smul.addr %s218, 4
        %s220 = scalar_lea.vmem %s1, %s219
      $region40: #{resnet_block_forward.1} parent=31 // pred_fallthru
        _
    $region32: #{resnet_block_forward.1} parent=5 // pred_fallthru
      _
    %p221 = scmp.le.s32.totalorder 1, %s12
    %p222 = scmp.lt.s32.totalorder %s12, 3
    %p223 = pnand %p221, %p222
    %p224 = pneg %p223
    // Predicated region
    $region41: #{resnet_block_forward.1} parent=5 // pred_check
      _
    $region42: #{resnet_block_forward.1} parent=5 // pred_check_branch
      %226 = sbr.rel (%p223) target = $region44
    $region43: #{resnet_block_forward.1} parent=5 // pred_region
      %s227 = ssub.s32 %s12, 1
      %p228 = scmp.lt.s32.totalorder %s17, 1
      %s229 = scalar_select %p228, %s17, 1
      %s230 = smul.addr %s229, 32
      %s231 = smul.addr %s230, 8
      %s232 = scalar_lea.vmem %s0, %s231
      %p233 = pneg %p38
      %p234 = pneg %p35
      %p235 = scmp.lt.s32.totalorder %s17, 1
      %s236 = scalar_select %p235, %s17, 1
      %s237 = smul.addr %s236, 2
      %s238 = smul.addr %s237, 4
      %s239 = scalar_lea.vmem %s1, %s238
      %p240 = pneg %p64
      %p241 = pneg %p61
      %p242 = pneg %p85
      %p243 = pneg %p82
      %p244 = pneg %p106
      %p245 = pneg %p103
      %p246 = pneg %p127
      %p247 = pneg %p124
      %p248 = pneg %p148
      %p249 = pneg %p145
      %p250 = pneg %p174
      %p251 = pneg %p171
      %p252 = scmp.lt.s32.totalorder %s17, 1
      %s253 = scalar_select %p252, %s17, 1
      %s254 = smul.addr %s253, 2
      %s255 = smul.addr %s254, 4
      %s256 = scalar_lea.vmem %s6, %s255
      %p257 = scmp.lt.s32.totalorder %s17, 1
      %s258 = scalar_select %p257, %s17, 1
      %s259 = smul.addr %s258, 32
      %s260 = smul.addr %s259, 8
      %s261 = scalar_lea.vmem %s0, %s260
      %p262 = scmp.lt.s32.totalorder %s17, 1
      %s263 = scalar_select %p262, %s17, 1
      %s264 = smul.addr %s263, 2
      %s265 = smul.addr %s264, 4
      %s266 = scalar_lea.vmem %s1, %s265
      %p267 = scmp.lt.s32.totalorder %s17, 1
      %s268 = scalar_select %p267, %s17, 1
      %s269 = smul.addr %s268, 2
      %s270 = smul.addr %s269, 4
      %s271 = scalar_lea.vmem %s6, %s270
      %vm273 = vcmask 27648
      %274 = vst.msk [vmem:[#allocation2] sm:$0xf] %vm273, 0
      %275 = vst.msk [vmem:[#allocation2 + $0x4] sm:$0xf] %vm273, 0
      %vm276 = vcmask 24576
      %277 = vst.msk [vmem:[#allocation2 + $0x8] sm:$0x1] %vm276, 0
      %278 = vst.msk [vmem:[#allocation2 + $0xc] sm:$0xf] %vm273, 0
      %279 = vst.msk [vmem:[#allocation2 + $0x10] sm:$0xf] %vm273, 0
      %280 = vst.msk [vmem:[#allocation2 + $0x14] sm:$0x1] %vm276, 0
      %281 = vst.msk [vmem:[#allocation2 + $0x18] sm:$0xf] %vm273, 0
      %282 = vst.msk [vmem:[#allocation2 + $0x1c] sm:$0xf] %vm273, 0
      %283 = vst.msk [vmem:[#allocation2 + $0x20] sm:$0x1] %vm276, 0
      %284 = vst.msk [vmem:[#allocation2 + $0x24] sm:$0xf] %vm273, 0
      %285 = vst.msk [vmem:[#allocation2 + $0x28] sm:$0xf] %vm273, 0
      %286 = vst.msk [vmem:[#allocation2 + $0x2c] sm:$0x1] %vm276, 0
      %287 = vst.msk [vmem:[#allocation2 + $0x30] sm:$0xf] %vm273, 0
      %288 = vst.msk [vmem:[#allocation2 + $0x34] sm:$0xf] %vm273, 0
      %289 = vst.msk [vmem:[#allocation2 + $0x38] sm:$0x1] %vm276, 0
      %290 = vst.msk [vmem:[#allocation2 + $0x3c] sm:$0xf] %vm273, 0
      %291 = vst.msk [vmem:[#allocation2 + $0x40] sm:$0xf] %vm273, 0
      %292 = vst.msk [vmem:[#allocation2 + $0x44] sm:$0x1] %vm276, 0
      %293 = vst.msk [vmem:[#allocation2 + $0x48] sm:$0xf] %vm273, 0
      %294 = vst.msk [vmem:[#allocation2 + $0x4c] sm:$0xf] %vm273, 0
      %295 = vst.msk [vmem:[#allocation2 + $0x50] sm:$0x1] %vm276, 0
      %296 = vst.msk [vmem:[#allocation2 + $0x54] sm:$0xf] %vm273, 0
      %297 = vst.msk [vmem:[#allocation2 + $0x58] sm:$0xf] %vm273, 0
      %298 = vst.msk [vmem:[#allocation2 + $0x5c] sm:$0x1] %vm276, 0
      %299 = vst.msk [vmem:[#allocation2 + $0x60] sm:$0xf] %vm273, 0
      %300 = vst.msk [vmem:[#allocation2 + $0x64] sm:$0xf] %vm273, 0
      %301 = vst.msk [vmem:[#allocation2 + $0x68] sm:$0x1] %vm276, 0
      %302 = vst.msk [vmem:[#allocation2 + $0x6c] sm:$0xf] %vm273, 0
      %303 = vst.msk [vmem:[#allocation2 + $0x70] sm:$0xf] %vm273, 0
      %304 = vst.msk [vmem:[#allocation2 + $0x74] sm:$0x1] %vm276, 0
      %305 = vst.msk [vmem:[#allocation2 + $0x78] sm:$0xf] %vm273, 0
      %306 = vst.msk [vmem:[#allocation2 + $0x7c] sm:$0xf] %vm273, 0
      %307 = vst.msk [vmem:[#allocation2 + $0x80] sm:$0x1] %vm276, 0
      %308 = vst.msk [vmem:[#allocation2 + $0x84] sm:$0xf] %vm273, 0
      %309 = vst.msk [vmem:[#allocation2 + $0x88] sm:$0xf] %vm273, 0
      %310 = vst.msk [vmem:[#allocation2 + $0x8c] sm:$0x1] %vm276, 0
      %311 = vst.msk [vmem:[#allocation2 + $0x90] sm:$0xf] %vm273, 0
      %312 = vst.msk [vmem:[#allocation2 + $0x94] sm:$0xf] %vm273, 0
      %313 = vst.msk [vmem:[#allocation2 + $0x98] sm:$0x1] %vm276, 0
      %314 = vst.msk [vmem:[#allocation2 + $0x9c] sm:$0xf] %vm273, 0
      %315 = vst.msk [vmem:[#allocation2 + $0xa0] sm:$0xf] %vm273, 0
      %316 = vst.msk [vmem:[#allocation2 + $0xa4] sm:$0x1] %vm276, 0
      %317 = vst.msk [vmem:[#allocation2 + $0xa8] sm:$0xf] %vm273, 0
      %318 = vst.msk [vmem:[#allocation2 + $0xac] sm:$0xf] %vm273, 0
      %319 = vst.msk [vmem:[#allocation2 + $0xb0] sm:$0x1] %vm276, 0
      %320 = vst.msk [vmem:[#allocation2 + $0xb4] sm:$0xf] %vm273, 0
      %321 = vst.msk [vmem:[#allocation2 + $0xb8] sm:$0xf] %vm273, 0
      %322 = vst.msk [vmem:[#allocation2 + $0xbc] sm:$0x1] %vm276, 0
      %323 = vst.msk [vmem:[#allocation2 + $0xc0] sm:$0xf] %vm273, 0
      %324 = vst.msk [vmem:[#allocation2 + $0xc4] sm:$0xf] %vm273, 0
      %325 = vst.msk [vmem:[#allocation2 + $0xc8] sm:$0x1] %vm276, 0
      %326 = vst.msk [vmem:[#allocation2 + $0xcc] sm:$0xf] %vm273, 0
      %327 = vst.msk [vmem:[#allocation2 + $0xd0] sm:$0xf] %vm273, 0
      %328 = vst.msk [vmem:[#allocation2 + $0xd4] sm:$0x1] %vm276, 0
      %329 = vst.msk [vmem:[#allocation3] sm:$0xf] %vm273, 0
      %330 = vst.msk [vmem:[#allocation3 + $0x4] sm:$0xf] %vm273, 0
      %331 = vst.msk [vmem:[#allocation3 + $0x8] sm:$0x1] %vm276, 0
      %332 = vst.msk [vmem:[#allocation3 + $0xc] sm:$0xf] %vm273, 0
      %333 = vst.msk [vmem:[#allocation3 + $0x10] sm:$0xf] %vm273, 0
      %334 = vst.msk [vmem:[#allocation3 + $0x14] sm:$0x1] %vm276, 0
      %335 = vst.msk [vmem:[#allocation3 + $0x18] sm:$0xf] %vm273, 0
      %336 = vst.msk [vmem:[#allocation3 + $0x1c] sm:$0xf] %vm273, 0
      %337 = vst.msk [vmem:[#allocation3 + $0x20] sm:$0x1] %vm276, 0
      %338 = vst.msk [vmem:[#allocation3 + $0x24] sm:$0xf] %vm273, 0
      %339 = vst.msk [vmem:[#allocation3 + $0x28] sm:$0xf] %vm273, 0
      %340 = vst.msk [vmem:[#allocation3 + $0x2c] sm:$0x1] %vm276, 0
      %341 = vst.msk [vmem:[#allocation3 + $0x30] sm:$0xf] %vm273, 0
      %342 = vst.msk [vmem:[#allocation3 + $0x34] sm:$0xf] %vm273, 0
      %343 = vst.msk [vmem:[#allocation3 + $0x38] sm:$0x1] %vm276, 0
      %344 = vst.msk [vmem:[#allocation3 + $0x3c] sm:$0xf] %vm273, 0
      %345 = vst.msk [vmem:[#allocation3 + $0x40] sm:$0xf] %vm273, 0
      %346 = vst.msk [vmem:[#allocation3 + $0x44] sm:$0x1] %vm276, 0
      %347 = vst.msk [vmem:[#allocation3 + $0x48] sm:$0xf] %vm273, 0
      %348 = vst.msk [vmem:[#allocation3 + $0x4c] sm:$0xf] %vm273, 0
      %349 = vst.msk [vmem:[#allocation3 + $0x50] sm:$0x1] %vm276, 0
      %350 = vst.msk [vmem:[#allocation3 + $0x54] sm:$0xf] %vm273, 0
      %351 = vst.msk [vmem:[#allocation3 + $0x58] sm:$0xf] %vm273, 0
      %352 = vst.msk [vmem:[#allocation3 + $0x5c] sm:$0x1] %vm276, 0
      %353 = vst.msk [vmem:[#allocation3 + $0x60] sm:$0xf] %vm273, 0
      %354 = vst.msk [vmem:[#allocation3 + $0x64] sm:$0xf] %vm273, 0
      %355 = vst.msk [vmem:[#allocation3 + $0x68] sm:$0x1] %vm276, 0
      %356 = vst.msk [vmem:[#allocation3 + $0x6c] sm:$0xf] %vm273, 0
      %357 = vst.msk [vmem:[#allocation3 + $0x70] sm:$0xf] %vm273, 0
      %358 = vst.msk [vmem:[#allocation3 + $0x74] sm:$0x1] %vm276, 0
      %359 = vst.msk [vmem:[#allocation3 + $0x78] sm:$0xf] %vm273, 0
      %360 = vst.msk [vmem:[#allocation3 + $0x7c] sm:$0xf] %vm273, 0
      %361 = vst.msk [vmem:[#allocation3 + $0x80] sm:$0x1] %vm276, 0
      %362 = vst.msk [vmem:[#allocation3 + $0x84] sm:$0xf] %vm273, 0
      %363 = vst.msk [vmem:[#allocation3 + $0x88] sm:$0xf] %vm273, 0
      %364 = vst.msk [vmem:[#allocation3 + $0x8c] sm:$0x1] %vm276, 0
      %365 = vst.msk [vmem:[#allocation3 + $0x90] sm:$0xf] %vm273, 0
      %366 = vst.msk [vmem:[#allocation3 + $0x94] sm:$0xf] %vm273, 0
      %367 = vst.msk [vmem:[#allocation3 + $0x98] sm:$0x1] %vm276, 0
      %368 = vst.msk [vmem:[#allocation3 + $0x9c] sm:$0xf] %vm273, 0
      %369 = vst.msk [vmem:[#allocation3 + $0xa0] sm:$0xf] %vm273, 0
      %370 = vst.msk [vmem:[#allocation3 + $0xa4] sm:$0x1] %vm276, 0
      %371 = vst.msk [vmem:[#allocation3 + $0xa8] sm:$0xf] %vm273, 0
      %372 = vst.msk [vmem:[#allocation3 + $0xac] sm:$0xf] %vm273, 0
      %373 = vst.msk [vmem:[#allocation3 + $0xb0] sm:$0x1] %vm276, 0
      %374 = vst.msk [vmem:[#allocation3 + $0xb4] sm:$0xf] %vm273, 0
      %375 = vst.msk [vmem:[#allocation3 + $0xb8] sm:$0xf] %vm273, 0
      %376 = vst.msk [vmem:[#allocation3 + $0xbc] sm:$0x1] %vm276, 0
      %377 = vst.msk [vmem:[#allocation3 + $0xc0] sm:$0xf] %vm273, 0
      %378 = vst.msk [vmem:[#allocation3 + $0xc4] sm:$0xf] %vm273, 0
      %379 = vst.msk [vmem:[#allocation3 + $0xc8] sm:$0x1] %vm276, 0
      %380 = vst.msk [vmem:[#allocation3 + $0xcc] sm:$0xf] %vm273, 0
      %381 = vst.msk [vmem:[#allocation3 + $0xd0] sm:$0xf] %vm273, 0
      %382 = vst.msk [vmem:[#allocation3 + $0xd4] sm:$0x1] %vm276, 0
      %vm383 = vcmask 1047840
      %384 = vst.msk [vmem:[#allocation4] sm:$0xff] %vm383, 0
      %385 = vst.msk [vmem:[#allocation4 + $0x8] sm:$0xff] %vm383, 0
      %386 = vst.msk [vmem:[#allocation4 + $0x10] sm:$0xff] %vm383, 0
      %387 = vst.msk [vmem:[#allocation4 + $0x18] sm:$0xff] %vm383, 0
      %388 = vst.msk [vmem:[#allocation4 + $0x20] sm:$0xff] %vm383, 0
      %389 = vst.msk [vmem:[#allocation4 + $0x28] sm:$0xff] %vm383, 0
      %390 = vst.msk [vmem:[#allocation4 + $0x30] sm:$0xff] %vm383, 0
      %391 = vst.msk [vmem:[#allocation4 + $0x38] sm:$0xff] %vm383, 0
      %392 = vst.msk [vmem:[#allocation4 + $0x40] sm:$0xff] %vm383, 0
      %393 = vst.msk [vmem:[#allocation4 + $0x48] sm:$0xff] %vm383, 0
      %394 = vst.msk [vmem:[#allocation4 + $0x50] sm:$0xff] %vm383, 0
      %395 = vst.msk [vmem:[#allocation4 + $0x58] sm:$0xff] %vm383, 0
      %396 = vst.msk [vmem:[#allocation4 + $0x60] sm:$0xff] %vm383, 0
      %397 = vst.msk [vmem:[#allocation4 + $0x68] sm:$0xff] %vm383, 0
      %398 = vst.msk [vmem:[#allocation4 + $0x70] sm:$0xff] %vm383, 0
      %399 = vst.msk [vmem:[#allocation4 + $0x78] sm:$0xff] %vm383, 0
      %v400 = vld [vmem:[%s261] sm:$0xff]
      %v401 = vld [vmem:[%s261 + $0x8] sm:$0xff]
      %v402 = vld [vmem:[%s261 + $0x10] sm:$0xff]
      %v403 = vld [vmem:[%s261 + $0x18] sm:$0xff]
      %v404 = vld [vmem:[%s261 + $0x20] sm:$0xff]
      %v405 = vld [vmem:[%s261 + $0x28] sm:$0xff]
      %v406 = vld [vmem:[%s261 + $0x30] sm:$0xff]
      %v407 = vld [vmem:[%s261 + $0x38] sm:$0xff]
      %v408 = vld [vmem:[%s261 + $0x40] sm:$0xff]
      %v409 = vld [vmem:[%s261 + $0x48] sm:$0xff]
      %v410 = vld [vmem:[%s261 + $0x50] sm:$0xff]
      %v411 = vld [vmem:[%s261 + $0x58] sm:$0xff]
      %v412 = vld [vmem:[%s261 + $0x60] sm:$0xff]
      %v413 = vld [vmem:[%s261 + $0x68] sm:$0xff]
      %v414 = vld [vmem:[%s261 + $0x70] sm:$0xff]
      %v415 = vld [vmem:[%s261 + $0x78] sm:$0xff]
      %v416 = vld [vmem:[%s261 + $0x80] sm:$0xff]
      %v417 = vld [vmem:[%s261 + $0x88] sm:$0xff]
      %v418 = vld [vmem:[%s261 + $0x90] sm:$0xff]
      %v419 = vld [vmem:[%s261 + $0x98] sm:$0xff]
      %v420 = vld [vmem:[%s261 + $0xa0] sm:$0xff]
      %v421 = vld [vmem:[%s261 + $0xa8] sm:$0xff]
      %v422 = vld [vmem:[%s261 + $0xb0] sm:$0xff]
      %v423 = vld [vmem:[%s261 + $0xb8] sm:$0xff]
      %v424 = vld [vmem:[%s261 + $0xc0] sm:$0xff]
      %v425 = vld [vmem:[%s261 + $0xc8] sm:$0xff]
      %v426 = vld [vmem:[%s261 + $0xd0] sm:$0xff]
      %v427 = vld [vmem:[%s261 + $0xd8] sm:$0xff]
      %v428 = vld [vmem:[%s261 + $0xe0] sm:$0xff]
      %v429 = vld [vmem:[%s261 + $0xe8] sm:$0xff]
      %v430 = vld [vmem:[%s261 + $0xf0] sm:$0xff]
      %v431 = vld [vmem:[%s261 + $0xf8] sm:$0xff]
      %v432 = vpack.c.bf16 %v401, %v400
      %v433 = vpack.c.bf16 %v403, %v402
      %v434 = vpack.c.bf16 %v405, %v404
      %v435 = vpack.c.bf16 %v407, %v406
      %v436 = vpack.c.bf16 %v409, %v408
      %v437 = vpack.c.bf16 %v411, %v410
      %v438 = vpack.c.bf16 %v413, %v412
      %v439 = vpack.c.bf16 %v415, %v414
      %v440 = vpack.c.bf16 %v417, %v416
      %v441 = vpack.c.bf16 %v419, %v418
      %v442 = vpack.c.bf16 %v421, %v420
      %v443 = vpack.c.bf16 %v423, %v422
      %v444 = vpack.c.bf16 %v425, %v424
      %v445 = vpack.c.bf16 %v427, %v426
      %v446 = vpack.c.bf16 %v429, %v428
      %v447 = vpack.c.bf16 %v431, %v430
      %v464 = vunpack.c.l.b16 %v432
      %v465 = vunpack.c.h.b16 %v432
      %v466 = vunpack.c.l.b16 %v433
      %v467 = vunpack.c.h.b16 %v433
      %v468 = vunpack.c.l.b16 %v434
      %v469 = vunpack.c.h.b16 %v434
      %v470 = vunpack.c.l.b16 %v435
      %v471 = vunpack.c.h.b16 %v435
      %v472 = vunpack.c.l.b16 %v436
      %v473 = vunpack.c.h.b16 %v436
      %v474 = vunpack.c.l.b16 %v437
      %v475 = vunpack.c.h.b16 %v437
      %v476 = vunpack.c.l.b16 %v438
      %v477 = vunpack.c.h.b16 %v438
      %v478 = vunpack.c.l.b16 %v439
      %v479 = vunpack.c.h.b16 %v439
      %v480 = vunpack.c.l.b16 %v440
      %v481 = vunpack.c.h.b16 %v440
      %v482 = vunpack.c.l.b16 %v441
      %v483 = vunpack.c.h.b16 %v441
      %v484 = vunpack.c.l.b16 %v442
      %v485 = vunpack.c.h.b16 %v442
      %v486 = vunpack.c.l.b16 %v443
      %v487 = vunpack.c.h.b16 %v443
      %v488 = vunpack.c.l.b16 %v444
      %v489 = vunpack.c.h.b16 %v444
      %v490 = vunpack.c.l.b16 %v445
      %v491 = vunpack.c.h.b16 %v445
      %v492 = vunpack.c.l.b16 %v446
      %v493 = vunpack.c.h.b16 %v446
      %v494 = vunpack.c.l.b16 %v447
      %v495 = vunpack.c.h.b16 %v447
      %v496 = vpack.c.b16 %v464, %v464
      %v497 = vpack.c.b16 %v465, %v465
      %v498 = vpack.c.b16 %v466, %v466
      %v499 = vpack.c.b16 %v467, %v467
      %v500 = vpack.c.b16 %v468, %v468
      %v501 = vpack.c.b16 %v469, %v469
      %v502 = vpack.c.b16 %v470, %v470
      %v503 = vpack.c.b16 %v471, %v471
      %v504 = vpack.c.b16 %v472, %v472
      %v505 = vpack.c.b16 %v473, %v473
      %v506 = vpack.c.b16 %v474, %v474
      %v507 = vpack.c.b16 %v475, %v475
      %v508 = vpack.c.b16 %v476, %v476
      %v509 = vpack.c.b16 %v477, %v477
      %v510 = vpack.c.b16 %v478, %v478
      %v511 = vpack.c.b16 %v479, %v479
      %v512 = vpack.c.b16 %v480, %v480
      %v513 = vpack.c.b16 %v481, %v481
      %v514 = vpack.c.b16 %v482, %v482
      %v515 = vpack.c.b16 %v483, %v483
      %v516 = vpack.c.b16 %v484, %v484
      %v517 = vpack.c.b16 %v485, %v485
      %v518 = vpack.c.b16 %v486, %v486
      %v519 = vpack.c.b16 %v487, %v487
      %v520 = vpack.c.b16 %v488, %v488
      %v521 = vpack.c.b16 %v489, %v489
      %v522 = vpack.c.b16 %v490, %v490
      %v523 = vpack.c.b16 %v491, %v491
      %v524 = vpack.c.b16 %v492, %v492
      %v525 = vpack.c.b16 %v493, %v493
      %v526 = vpack.c.b16 %v494, %v494
      %v527 = vpack.c.b16 %v495, %v495
      %vm528 = vsmask.f32 256
      %vm529 = vsmask.f32 4368
      %vm530 = vmor %vm528, %vm529
      %v532 = vshrl.u32 %v496, 16
      %v534 = vrot.slane %v532, 7
      %v535 = vshll.u32 %v496, 16
      %v537 = vor.u32 %v534, %v535
      %v538 = vrot.slane %v534, 4
      %v540 = vshrl.u32 %v497, 16
      %v542 = vrot.slane %v540, 7
      %v543 = vshll.u32 %v497, 16
      %v545 = vor.u32 %v542, %v543
      %v546 = vsel %vm530, %v538, %v545
      %v547 = vrot.slane %v542, 4
      %v549 = vshrl.u32 %v498, 16
      %v551 = vrot.slane %v549, 7
      %v552 = vshll.u32 %v498, 16
      %v554 = vor.u32 %v551, %v552
      %v555 = vrot.slane %v551, 4
      %v557 = vshrl.u32 %v499, 16
      %v559 = vrot.slane %v557, 7
      %v560 = vshll.u32 %v499, 16
      %v562 = vor.u32 %v559, %v560
      %v563 = vsel %vm530, %v555, %v562
      %v564 = vrot.slane %v559, 4
      %v566 = vshrl.u32 %v500, 16
      %v568 = vrot.slane %v566, 7
      %v569 = vshll.u32 %v500, 16
      %v571 = vor.u32 %v568, %v569
      %v572 = vrot.slane %v568, 4
      %v574 = vshrl.u32 %v501, 16
      %v576 = vrot.slane %v574, 7
      %v577 = vshll.u32 %v501, 16
      %v579 = vor.u32 %v576, %v577
      %v580 = vsel %vm530, %v572, %v579
      %v581 = vrot.slane %v576, 4
      %v583 = vshrl.u32 %v502, 16
      %v585 = vrot.slane %v583, 7
      %v586 = vshll.u32 %v502, 16
      %v588 = vor.u32 %v585, %v586
      %v589 = vrot.slane %v585, 4
      %v591 = vshrl.u32 %v503, 16
      %v593 = vrot.slane %v591, 7
      %v594 = vshll.u32 %v503, 16
      %v596 = vor.u32 %v593, %v594
      %v597 = vsel %vm530, %v589, %v596
      %v598 = vrot.slane %v593, 4
      %v600 = vshrl.u32 %v504, 16
      %v602 = vrot.slane %v600, 7
      %v603 = vshll.u32 %v504, 16
      %v605 = vor.u32 %v602, %v603
      %v606 = vrot.slane %v602, 4
      %v608 = vshrl.u32 %v505, 16
      %v610 = vrot.slane %v608, 7
      %v611 = vshll.u32 %v505, 16
      %v613 = vor.u32 %v610, %v611
      %v614 = vsel %vm530, %v606, %v613
      %v615 = vrot.slane %v610, 4
      %v617 = vshrl.u32 %v506, 16
      %v619 = vrot.slane %v617, 7
      %v620 = vshll.u32 %v506, 16
      %v622 = vor.u32 %v619, %v620
      %v623 = vrot.slane %v619, 4
      %v625 = vshrl.u32 %v507, 16
      %v627 = vrot.slane %v625, 7
      %v628 = vshll.u32 %v507, 16
      %v630 = vor.u32 %v627, %v628
      %v631 = vsel %vm530, %v623, %v630
      %v632 = vrot.slane %v627, 4
      %v634 = vshrl.u32 %v508, 16
      %v636 = vrot.slane %v634, 7
      %v637 = vshll.u32 %v508, 16
      %v639 = vor.u32 %v636, %v637
      %v640 = vrot.slane %v636, 4
      %v642 = vshrl.u32 %v509, 16
      %v644 = vrot.slane %v642, 7
      %v645 = vshll.u32 %v509, 16
      %v647 = vor.u32 %v644, %v645
      %v648 = vsel %vm530, %v640, %v647
      %v649 = vrot.slane %v644, 4
      %v651 = vshrl.u32 %v510, 16
      %v653 = vrot.slane %v651, 7
      %v654 = vshll.u32 %v510, 16
      %v656 = vor.u32 %v653, %v654
      %v657 = vrot.slane %v653, 4
      %v659 = vshrl.u32 %v511, 16
      %v661 = vrot.slane %v659, 7
      %v662 = vshll.u32 %v511, 16
      %v664 = vor.u32 %v661, %v662
      %v665 = vsel %vm530, %v657, %v664
      %v666 = vrot.slane %v661, 4
      %v668 = vshrl.u32 %v512, 16
      %v670 = vrot.slane %v668, 7
      %v671 = vshll.u32 %v512, 16
      %v673 = vor.u32 %v670, %v671
      %v674 = vrot.slane %v670, 4
      %v676 = vshrl.u32 %v513, 16
      %v678 = vrot.slane %v676, 7
      %v679 = vshll.u32 %v513, 16
      %v681 = vor.u32 %v678, %v679
      %v682 = vsel %vm530, %v674, %v681
      %v683 = vrot.slane %v678, 4
      %v685 = vshrl.u32 %v514, 16
      %v687 = vrot.slane %v685, 7
      %v688 = vshll.u32 %v514, 16
      %v690 = vor.u32 %v687, %v688
      %v691 = vrot.slane %v687, 4
      %v693 = vshrl.u32 %v515, 16
      %v695 = vrot.slane %v693, 7
      %v696 = vshll.u32 %v515, 16
      %v698 = vor.u32 %v695, %v696
      %v699 = vsel %vm530, %v691, %v698
      %v700 = vrot.slane %v695, 4
      %v702 = vshrl.u32 %v516, 16
      %v704 = vrot.slane %v702, 7
      %v705 = vshll.u32 %v516, 16
      %v707 = vor.u32 %v704, %v705
      %v708 = vrot.slane %v704, 4
      %v710 = vshrl.u32 %v517, 16
      %v712 = vrot.slane %v710, 7
      %v713 = vshll.u32 %v517, 16
      %v715 = vor.u32 %v712, %v713
      %v716 = vsel %vm530, %v708, %v715
      %v717 = vrot.slane %v712, 4
      %v719 = vshrl.u32 %v518, 16
      %v721 = vrot.slane %v719, 7
      %v722 = vshll.u32 %v518, 16
      %v724 = vor.u32 %v721, %v722
      %v725 = vrot.slane %v721, 4
      %v727 = vshrl.u32 %v519, 16
      %v729 = vrot.slane %v727, 7
      %v730 = vshll.u32 %v519, 16
      %v732 = vor.u32 %v729, %v730
      %v733 = vsel %vm530, %v725, %v732
      %v734 = vrot.slane %v729, 4
      %v736 = vshrl.u32 %v520, 16
      %v738 = vrot.slane %v736, 7
      %v739 = vshll.u32 %v520, 16
      %v741 = vor.u32 %v738, %v739
      %v742 = vrot.slane %v738, 4
      %v744 = vshrl.u32 %v521, 16
      %v746 = vrot.slane %v744, 7
      %v747 = vshll.u32 %v521, 16
      %v749 = vor.u32 %v746, %v747
      %v750 = vsel %vm530, %v742, %v749
      %v751 = vrot.slane %v746, 4
      %v753 = vshrl.u32 %v522, 16
      %v755 = vrot.slane %v753, 7
      %v756 = vshll.u32 %v522, 16
      %v758 = vor.u32 %v755, %v756
      %v759 = vrot.slane %v755, 4
      %v761 = vshrl.u32 %v523, 16
      %v763 = vrot.slane %v761, 7
      %v764 = vshll.u32 %v523, 16
      %v766 = vor.u32 %v763, %v764
      %v767 = vsel %vm530, %v759, %v766
      %v768 = vrot.slane %v763, 4
      %v770 = vshrl.u32 %v524, 16
      %v772 = vrot.slane %v770, 7
      %v773 = vshll.u32 %v524, 16
      %v775 = vor.u32 %v772, %v773
      %v776 = vrot.slane %v772, 4
      %v778 = vshrl.u32 %v525, 16
      %v780 = vrot.slane %v778, 7
      %v781 = vshll.u32 %v525, 16
      %v783 = vor.u32 %v780, %v781
      %v784 = vsel %vm530, %v776, %v783
      %v785 = vrot.slane %v780, 4
      %v787 = vshrl.u32 %v526, 16
      %v789 = vrot.slane %v787, 7
      %v790 = vshll.u32 %v526, 16
      %v792 = vor.u32 %v789, %v790
      %v793 = vrot.slane %v789, 4
      %v795 = vshrl.u32 %v527, 16
      %v797 = vrot.slane %v795, 7
      %v798 = vshll.u32 %v527, 16
      %v800 = vor.u32 %v797, %v798
      %v801 = vsel %vm530, %v793, %v800
      %v802 = vrot.slane %v797, 4
      %s851 = scalar_lea.vmem [#allocation2], 12
      %vm852 = vcmask 27648
      %vm853 = vsmask.f32 7938
      %vm854 = vmand %vm852, %vm853
      %v855 = vld [vmem:[%s851] sm:$0xf]
      %v856 = vsel %vm854, %v537, %v855
      %857 = vst [vmem:[%s851] sm:$0xf] %v856
      %858 = vst.msk [vmem:[%s851 + $0x4] sm:$0xf] %vm273, %v546
      %vm859 = vcmask 24576
      %vm860 = vmand %vm859, %vm528
      %v861 = vld [vmem:[%s851 + $0x8] sm:$0x1]
      %v862 = vsel %vm860, %v547, %v861
      %863 = vst [vmem:[%s851 + $0x8] sm:$0x1] %v862
      %v864 = vld [vmem:[%s851 + $0xc] sm:$0xf]
      %v865 = vsel %vm854, %v554, %v864
      %866 = vst [vmem:[%s851 + $0xc] sm:$0xf] %v865
      %867 = vst.msk [vmem:[%s851 + $0x10] sm:$0xf] %vm273, %v563
      %v868 = vld [vmem:[%s851 + $0x14] sm:$0x1]
      %v869 = vsel %vm860, %v564, %v868
      %870 = vst [vmem:[%s851 + $0x14] sm:$0x1] %v869
      %v871 = vld [vmem:[%s851 + $0x18] sm:$0xf]
      %v872 = vsel %vm854, %v571, %v871
      %873 = vst [vmem:[%s851 + $0x18] sm:$0xf] %v872
      %874 = vst.msk [vmem:[%s851 + $0x1c] sm:$0xf] %vm273, %v580
      %v875 = vld [vmem:[%s851 + $0x20] sm:$0x1]
      %v876 = vsel %vm860, %v581, %v875
      %877 = vst [vmem:[%s851 + $0x20] sm:$0x1] %v876
      %v878 = vld [vmem:[%s851 + $0x24] sm:$0xf]
      %v879 = vsel %vm854, %v588, %v878
      %880 = vst [vmem:[%s851 + $0x24] sm:$0xf] %v879
      %881 = vst.msk [vmem:[%s851 + $0x28] sm:$0xf] %vm273, %v597
      %v882 = vld [vmem:[%s851 + $0x2c] sm:$0x1]
      %v883 = vsel %vm860, %v598, %v882
      %884 = vst [vmem:[%s851 + $0x2c] sm:$0x1] %v883
      %v885 = vld [vmem:[%s851 + $0x30] sm:$0xf]
      %v886 = vsel %vm854, %v605, %v885
      %887 = vst [vmem:[%s851 + $0x30] sm:$0xf] %v886
      %888 = vst.msk [vmem:[%s851 + $0x34] sm:$0xf] %vm273, %v614
      %v889 = vld [vmem:[%s851 + $0x38] sm:$0x1]
      %v890 = vsel %vm860, %v615, %v889
      %891 = vst [vmem:[%s851 + $0x38] sm:$0x1] %v890
      %v892 = vld [vmem:[%s851 + $0x3c] sm:$0xf]
      %v893 = vsel %vm854, %v622, %v892
      %894 = vst [vmem:[%s851 + $0x3c] sm:$0xf] %v893
      %895 = vst.msk [vmem:[%s851 + $0x40] sm:$0xf] %vm273, %v631
      %v896 = vld [vmem:[%s851 + $0x44] sm:$0x1]
      %v897 = vsel %vm860, %v632, %v896
      %898 = vst [vmem:[%s851 + $0x44] sm:$0x1] %v897
      %v899 = vld [vmem:[%s851 + $0x48] sm:$0xf]
      %v900 = vsel %vm854, %v639, %v899
      %901 = vst [vmem:[%s851 + $0x48] sm:$0xf] %v900
      %902 = vst.msk [vmem:[%s851 + $0x4c] sm:$0xf] %vm273, %v648
      %v903 = vld [vmem:[%s851 + $0x50] sm:$0x1]
      %v904 = vsel %vm860, %v649, %v903
      %905 = vst [vmem:[%s851 + $0x50] sm:$0x1] %v904
      %v906 = vld [vmem:[%s851 + $0x54] sm:$0xf]
      %v907 = vsel %vm854, %v656, %v906
      %908 = vst [vmem:[%s851 + $0x54] sm:$0xf] %v907
      %909 = vst.msk [vmem:[%s851 + $0x58] sm:$0xf] %vm273, %v665
      %v910 = vld [vmem:[%s851 + $0x5c] sm:$0x1]
      %v911 = vsel %vm860, %v666, %v910
      %912 = vst [vmem:[%s851 + $0x5c] sm:$0x1] %v911
      %v913 = vld [vmem:[%s851 + $0x60] sm:$0xf]
      %v914 = vsel %vm854, %v673, %v913
      %915 = vst [vmem:[%s851 + $0x60] sm:$0xf] %v914
      %916 = vst.msk [vmem:[%s851 + $0x64] sm:$0xf] %vm273, %v682
      %v917 = vld [vmem:[%s851 + $0x68] sm:$0x1]
      %v918 = vsel %vm860, %v683, %v917
      %919 = vst [vmem:[%s851 + $0x68] sm:$0x1] %v918
      %v920 = vld [vmem:[%s851 + $0x6c] sm:$0xf]
      %v921 = vsel %vm854, %v690, %v920
      %922 = vst [vmem:[%s851 + $0x6c] sm:$0xf] %v921
      %923 = vst.msk [vmem:[%s851 + $0x70] sm:$0xf] %vm273, %v699
      %v924 = vld [vmem:[%s851 + $0x74] sm:$0x1]
      %v925 = vsel %vm860, %v700, %v924
      %926 = vst [vmem:[%s851 + $0x74] sm:$0x1] %v925
      %v927 = vld [vmem:[%s851 + $0x78] sm:$0xf]
      %v928 = vsel %vm854, %v707, %v927
      %929 = vst [vmem:[%s851 + $0x78] sm:$0xf] %v928
      %930 = vst.msk [vmem:[%s851 + $0x7c] sm:$0xf] %vm273, %v716
      %v931 = vld [vmem:[%s851 + $0x80] sm:$0x1]
      %v932 = vsel %vm860, %v717, %v931
      %933 = vst [vmem:[%s851 + $0x80] sm:$0x1] %v932
      %v934 = vld [vmem:[%s851 + $0x84] sm:$0xf]
      %v935 = vsel %vm854, %v724, %v934
      %936 = vst [vmem:[%s851 + $0x84] sm:$0xf] %v935
      %937 = vst.msk [vmem:[%s851 + $0x88] sm:$0xf] %vm273, %v733
      %v938 = vld [vmem:[%s851 + $0x8c] sm:$0x1]
      %v939 = vsel %vm860, %v734, %v938
      %940 = vst [vmem:[%s851 + $0x8c] sm:$0x1] %v939
      %v941 = vld [vmem:[%s851 + $0x90] sm:$0xf]
      %v942 = vsel %vm854, %v741, %v941
      %943 = vst [vmem:[%s851 + $0x90] sm:$0xf] %v942
      %944 = vst.msk [vmem:[%s851 + $0x94] sm:$0xf] %vm273, %v750
      %v945 = vld [vmem:[%s851 + $0x98] sm:$0x1]
      %v946 = vsel %vm860, %v751, %v945
      %947 = vst [vmem:[%s851 + $0x98] sm:$0x1] %v946
      %v948 = vld [vmem:[%s851 + $0x9c] sm:$0xf]
      %v949 = vsel %vm854, %v758, %v948
      %950 = vst [vmem:[%s851 + $0x9c] sm:$0xf] %v949
      %951 = vst.msk [vmem:[%s851 + $0xa0] sm:$0xf] %vm273, %v767
      %v952 = vld [vmem:[%s851 + $0xa4] sm:$0x1]
      %v953 = vsel %vm860, %v768, %v952
      %954 = vst [vmem:[%s851 + $0xa4] sm:$0x1] %v953
      %v955 = vld [vmem:[%s851 + $0xa8] sm:$0xf]
      %v956 = vsel %vm854, %v775, %v955
      %957 = vst [vmem:[%s851 + $0xa8] sm:$0xf] %v956
      %958 = vst.msk [vmem:[%s851 + $0xac] sm:$0xf] %vm273, %v784
      %v959 = vld [vmem:[%s851 + $0xb0] sm:$0x1]
      %v960 = vsel %vm860, %v785, %v959
      %961 = vst [vmem:[%s851 + $0xb0] sm:$0x1] %v960
      %v962 = vld [vmem:[%s851 + $0xb4] sm:$0xf]
      %v963 = vsel %vm854, %v792, %v962
      %964 = vst [vmem:[%s851 + $0xb4] sm:$0xf] %v963
      %965 = vst.msk [vmem:[%s851 + $0xb8] sm:$0xf] %vm273, %v801
      %v966 = vld [vmem:[%s851 + $0xbc] sm:$0x1]
      %v967 = vsel %vm860, %v802, %v966
      %968 = vst [vmem:[%s851 + $0xbc] sm:$0x1] %v967
      %v969 = vld [vmem:[#allocation2] sm:$0xf]
      %v970 = vld [vmem:[#allocation2 + $0x4] sm:$0xf]
      %v971 = vld [vmem:[#allocation2 + $0xc] sm:$0xf]
      %v972 = vld [vmem:[#allocation2 + $0x10] sm:$0xf]
      %v973 = vld [vmem:[#allocation2 + $0x18] sm:$0xf]
      %v974 = vld [vmem:[#allocation2 + $0x1c] sm:$0xf]
      %v975 = vld [vmem:[#allocation2 + $0x24] sm:$0xf]
      %v976 = vld [vmem:[#allocation2 + $0x28] sm:$0xf]
      %v977 = vld [vmem:[#allocation2 + $0x30] sm:$0xf]
      %v978 = vld [vmem:[#allocation2 + $0x34] sm:$0xf]
      %v979 = vld [vmem:[#allocation2 + $0x3c] sm:$0xf]
      %v980 = vld [vmem:[#allocation2 + $0x40] sm:$0xf]
      %v981 = vld [vmem:[#allocation2 + $0x48] sm:$0xf]
      %v982 = vld [vmem:[#allocation2 + $0x4c] sm:$0xf]
      %v983 = vld [vmem:[#allocation2 + $0x54] sm:$0xf]
      %v984 = vld [vmem:[#allocation2 + $0x58] sm:$0xf]
      %v985 = vld [vmem:[#allocation2 + $0x60] sm:$0xf]
      %v986 = vld [vmem:[#allocation2 + $0x64] sm:$0xf]
      %v987 = vld [vmem:[#allocation2 + $0x6c] sm:$0xf]
      %v988 = vld [vmem:[#allocation2 + $0x70] sm:$0xf]
      %v989 = vld [vmem:[#allocation2 + $0x78] sm:$0xf]
      %v990 = vld [vmem:[#allocation2 + $0x7c] sm:$0xf]
      %v991 = vld [vmem:[#allocation2 + $0x84] sm:$0xf]
      %v992 = vld [vmem:[#allocation2 + $0x88] sm:$0xf]
      %v993 = vld [vmem:[#allocation2 + $0x90] sm:$0xf]
      %v994 = vld [vmem:[#allocation2 + $0x94] sm:$0xf]
      %v995 = vld [vmem:[#allocation2 + $0x9c] sm:$0xf]
      %v996 = vld [vmem:[#allocation2 + $0xa0] sm:$0xf]
      %v997 = vld [vmem:[#allocation2 + $0xa8] sm:$0xf]
      %v998 = vld [vmem:[#allocation2 + $0xac] sm:$0xf]
      %v999 = vld [vmem:[#allocation2 + $0xb4] sm:$0xf]
      %v1000 = vld [vmem:[#allocation2 + $0xb8] sm:$0xf]
      %v1001 = vld [vmem:[#allocation2 + $0xc0] sm:$0xf]
      %v1002 = vld [vmem:[#allocation2 + $0xc4] sm:$0xf]
      %v1003 = vld [vmem:[#allocation2 + $0xcc] sm:$0xf]
      %v1004 = vld [vmem:[#allocation2 + $0xd0] sm:$0xf]
      %v1037 = vunpack.c.l.b16 %v969
      %v1038 = vunpack.c.l.b16 %v970
      %v1039 = vunpack.c.l.b16 %v971
      %v1040 = vunpack.c.l.b16 %v972
      %v1041 = vunpack.c.l.b16 %v973
      %v1042 = vunpack.c.l.b16 %v974
      %v1043 = vunpack.c.l.b16 %v975
      %v1044 = vunpack.c.l.b16 %v976
      %v1045 = vunpack.c.l.b16 %v977
      %v1046 = vunpack.c.l.b16 %v978
      %v1047 = vunpack.c.l.b16 %v979
      %v1048 = vunpack.c.l.b16 %v980
      %v1049 = vunpack.c.l.b16 %v981
      %v1050 = vunpack.c.l.b16 %v982
      %v1051 = vunpack.c.l.b16 %v983
      %v1052 = vunpack.c.l.b16 %v984
      %v1053 = vunpack.c.l.b16 %v985
      %v1054 = vunpack.c.l.b16 %v986
      %v1055 = vunpack.c.l.b16 %v987
      %v1056 = vunpack.c.l.b16 %v988
      %v1057 = vunpack.c.l.b16 %v989
      %v1058 = vunpack.c.l.b16 %v990
      %v1059 = vunpack.c.l.b16 %v991
      %v1060 = vunpack.c.l.b16 %v992
      %v1061 = vunpack.c.l.b16 %v993
      %v1062 = vunpack.c.l.b16 %v994
      %v1063 = vunpack.c.l.b16 %v995
      %v1064 = vunpack.c.l.b16 %v996
      %v1065 = vunpack.c.l.b16 %v997
      %v1066 = vunpack.c.l.b16 %v998
      %v1067 = vunpack.c.l.b16 %v999
      %v1068 = vunpack.c.l.b16 %v1000
      %v1069 = vpack.c.b16 %v1038, %v1037
      %v1070 = vpack.c.b16 %v1040, %v1039
      %v1071 = vpack.c.b16 %v1042, %v1041
      %v1072 = vpack.c.b16 %v1044, %v1043
      %v1073 = vpack.c.b16 %v1046, %v1045
      %v1074 = vpack.c.b16 %v1048, %v1047
      %v1075 = vpack.c.b16 %v1050, %v1049
      %v1076 = vpack.c.b16 %v1052, %v1051
      %v1077 = vpack.c.b16 %v1054, %v1053
      %v1078 = vpack.c.b16 %v1056, %v1055
      %v1079 = vpack.c.b16 %v1058, %v1057
      %v1080 = vpack.c.b16 %v1060, %v1059
      %v1081 = vpack.c.b16 %v1062, %v1061
      %v1082 = vpack.c.b16 %v1064, %v1063
      %v1083 = vpack.c.b16 %v1066, %v1065
      %v1084 = vpack.c.b16 %v1068, %v1067
      %vm1101 = vcmask 31744
      %1102 = vst.msk [vmem:[#allocation4] sm:$0xff] %vm1101, %v1069
      %1103 = vst.msk [vmem:[#allocation4 + $0x8] sm:$0xff] %vm1101, %v1070
      %1104 = vst.msk [vmem:[#allocation4 + $0x10] sm:$0xff] %vm1101, %v1071
      %1105 = vst.msk [vmem:[#allocation4 + $0x18] sm:$0xff] %vm1101, %v1072
      %1106 = vst.msk [vmem:[#allocation4 + $0x20] sm:$0xff] %vm1101, %v1073
      %1107 = vst.msk [vmem:[#allocation4 + $0x28] sm:$0xff] %vm1101, %v1074
      %1108 = vst.msk [vmem:[#allocation4 + $0x30] sm:$0xff] %vm1101, %v1075
      %1109 = vst.msk [vmem:[#allocation4 + $0x38] sm:$0xff] %vm1101, %v1076
      %1110 = vst.msk [vmem:[#allocation4 + $0x40] sm:$0xff] %vm1101, %v1077
      %1111 = vst.msk [vmem:[#allocation4 + $0x48] sm:$0xff] %vm1101, %v1078
      %1112 = vst.msk [vmem:[#allocation4 + $0x50] sm:$0xff] %vm1101, %v1079
      %1113 = vst.msk [vmem:[#allocation4 + $0x58] sm:$0xff] %vm1101, %v1080
      %1114 = vst.msk [vmem:[#allocation4 + $0x60] sm:$0xff] %vm1101, %v1081
      %1115 = vst.msk [vmem:[#allocation4 + $0x68] sm:$0xff] %vm1101, %v1082
      %1116 = vst.msk [vmem:[#allocation4 + $0x70] sm:$0xff] %vm1101, %v1083
      %1117 = vst.msk [vmem:[#allocation4 + $0x78] sm:$0xff] %vm1101, %v1084
      %v1120 = vunpack.c.l.b16 %v1001
      %v1121 = vunpack.c.l.b16 %v1002
      %v1122 = vpack.c.b16 %v1121, %v1120
      %1123 = vrot.lane.b32.xlu0 %v1070, 12
      %v1124 = vpop.permute.xlu0 %1123
      %1125 = vrot.lane.b32.xlu0 %v1071, 12
      %v1126 = vpop.permute.xlu0 %1125
      %1127 = vrot.lane.b32.xlu0 %v1072, 12
      %v1128 = vpop.permute.xlu0 %1127
      %1129 = vrot.lane.b32.xlu0 %v1073, 12
      %v1130 = vpop.permute.xlu0 %1129
      %1131 = vrot.lane.b32.xlu0 %v1074, 12
      %v1132 = vpop.permute.xlu0 %1131
      %1133 = vrot.lane.b32.xlu0 %v1075, 12
      %v1134 = vpop.permute.xlu0 %1133
      %1135 = vrot.lane.b32.xlu0 %v1076, 12
      %v1136 = vpop.permute.xlu0 %1135
      %1137 = vrot.lane.b32.xlu0 %v1077, 12
      %v1138 = vpop.permute.xlu0 %1137
      %1139 = vrot.lane.b32.xlu0 %v1078, 12
      %v1140 = vpop.permute.xlu0 %1139
      %1141 = vrot.lane.b32.xlu0 %v1079, 12
      %v1142 = vpop.permute.xlu0 %1141
      %1143 = vrot.lane.b32.xlu0 %v1080, 12
      %v1144 = vpop.permute.xlu0 %1143
      %1145 = vrot.lane.b32.xlu0 %v1081, 12
      %v1146 = vpop.permute.xlu0 %1145
      %1147 = vrot.lane.b32.xlu0 %v1082, 12
      %v1148 = vpop.permute.xlu0 %1147
      %1149 = vrot.lane.b32.xlu0 %v1083, 12
      %v1150 = vpop.permute.xlu0 %1149
      %1151 = vrot.lane.b32.xlu0 %v1084, 12
      %v1152 = vpop.permute.xlu0 %1151
      %1153 = vrot.lane.b32.xlu0 %v1122, 12
      %v1154 = vpop.permute.xlu0 %1153
      %vm1171 = vcmask 130144
      %1172 = vst.msk [vmem:[#allocation4] sm:$0xff] %vm1171, %v1124
      %1173 = vst.msk [vmem:[#allocation4 + $0x8] sm:$0xff] %vm1171, %v1126
      %1174 = vst.msk [vmem:[#allocation4 + $0x10] sm:$0xff] %vm1171, %v1128
      %1175 = vst.msk [vmem:[#allocation4 + $0x18] sm:$0xff] %vm1171, %v1130
      %1176 = vst.msk [vmem:[#allocation4 + $0x20] sm:$0xff] %vm1171, %v1132
      %1177 = vst.msk [vmem:[#allocation4 + $0x28] sm:$0xff] %vm1171, %v1134
      %1178 = vst.msk [vmem:[#allocation4 + $0x30] sm:$0xff] %vm1171, %v1136
      %1179 = vst.msk [vmem:[#allocation4 + $0x38] sm:$0xff] %vm1171, %v1138
      %1180 = vst.msk [vmem:[#allocation4 + $0x40] sm:$0xff] %vm1171, %v1140
      %1181 = vst.msk [vmem:[#allocation4 + $0x48] sm:$0xff] %vm1171, %v1142
      %1182 = vst.msk [vmem:[#allocation4 + $0x50] sm:$0xff] %vm1171, %v1144
      %1183 = vst.msk [vmem:[#allocation4 + $0x58] sm:$0xff] %vm1171, %v1146
      %1184 = vst.msk [vmem:[#allocation4 + $0x60] sm:$0xff] %vm1171, %v1148
      %1185 = vst.msk [vmem:[#allocation4 + $0x68] sm:$0xff] %vm1171, %v1150
      %1186 = vst.msk [vmem:[#allocation4 + $0x70] sm:$0xff] %vm1171, %v1152
      %1187 = vst.msk [vmem:[#allocation4 + $0x78] sm:$0xff] %vm1171, %v1154
      %v1190 = vunpack.c.l.b16 %v1003
      %v1191 = vunpack.c.l.b16 %v1004
      %v1192 = vpack.c.b16 %v1191, %v1190
      %1193 = vrot.lane.b32.xlu0 %v1071, 24
      %v1194 = vpop.permute.xlu0 %1193
      %1195 = vrot.lane.b32.xlu0 %v1072, 24
      %v1196 = vpop.permute.xlu0 %1195
      %1197 = vrot.lane.b32.xlu0 %v1073, 24
      %v1198 = vpop.permute.xlu0 %1197
      %1199 = vrot.lane.b32.xlu0 %v1074, 24
      %v1200 = vpop.permute.xlu0 %1199
      %1201 = vrot.lane.b32.xlu0 %v1075, 24
      %v1202 = vpop.permute.xlu0 %1201
      %1203 = vrot.lane.b32.xlu0 %v1076, 24
      %v1204 = vpop.permute.xlu0 %1203
      %1205 = vrot.lane.b32.xlu0 %v1077, 24
      %v1206 = vpop.permute.xlu0 %1205
      %1207 = vrot.lane.b32.xlu0 %v1078, 24
      %v1208 = vpop.permute.xlu0 %1207
      %1209 = vrot.lane.b32.xlu0 %v1079, 24
      %v1210 = vpop.permute.xlu0 %1209
      %1211 = vrot.lane.b32.xlu0 %v1080, 24
      %v1212 = vpop.permute.xlu0 %1211
      %1213 = vrot.lane.b32.xlu0 %v1081, 24
      %v1214 = vpop.permute.xlu0 %1213
      %1215 = vrot.lane.b32.xlu0 %v1082, 24
      %v1216 = vpop.permute.xlu0 %1215
      %1217 = vrot.lane.b32.xlu0 %v1083, 24
      %v1218 = vpop.permute.xlu0 %1217
      %1219 = vrot.lane.b32.xlu0 %v1084, 24
      %v1220 = vpop.permute.xlu0 %1219
      %1221 = vrot.lane.b32.xlu0 %v1122, 24
      %v1222 = vpop.permute.xlu0 %1221
      %1223 = vrot.lane.b32.xlu0 %v1192, 24
      %v1224 = vpop.permute.xlu0 %1223
      %vm1241 = vcmask 228544
      %1242 = vst.msk [vmem:[#allocation4] sm:$0xff] %vm1241, %v1194
      %1243 = vst.msk [vmem:[#allocation4 + $0x8] sm:$0xff] %vm1241, %v1196
      %1244 = vst.msk [vmem:[#allocation4 + $0x10] sm:$0xff] %vm1241, %v1198
      %1245 = vst.msk [vmem:[#allocation4 + $0x18] sm:$0xff] %vm1241, %v1200
      %1246 = vst.msk [vmem:[#allocation4 + $0x20] sm:$0xff] %vm1241, %v1202
      %1247 = vst.msk [vmem:[#allocation4 + $0x28] sm:$0xff] %vm1241, %v1204
      %1248 = vst.msk [vmem:[#allocation4 + $0x30] sm:$0xff] %vm1241, %v1206
      %1249 = vst.msk [vmem:[#allocation4 + $0x38] sm:$0xff] %vm1241, %v1208
      %1250 = vst.msk [vmem:[#allocation4 + $0x40] sm:$0xff] %vm1241, %v1210
      %1251 = vst.msk [vmem:[#allocation4 + $0x48] sm:$0xff] %vm1241, %v1212
      %1252 = vst.msk [vmem:[#allocation4 + $0x50] sm:$0xff] %vm1241, %v1214
      %1253 = vst.msk [vmem:[#allocation4 + $0x58] sm:$0xff] %vm1241, %v1216
      %1254 = vst.msk [vmem:[#allocation4 + $0x60] sm:$0xff] %vm1241, %v1218
      %1255 = vst.msk [vmem:[#allocation4 + $0x68] sm:$0xff] %vm1241, %v1220
      %1256 = vst.msk [vmem:[#allocation4 + $0x70] sm:$0xff] %vm1241, %v1222
      %1257 = vst.msk [vmem:[#allocation4 + $0x78] sm:$0xff] %vm1241, %v1224
      %v1258 = vld [vmem:[#allocation2] sm:$0xf]
      %v1259 = vld [vmem:[#allocation2 + $0x4] sm:$0xf]
      %v1260 = vld [vmem:[#allocation2 + $0x8] sm:$0x1]
      %v1261 = vld [vmem:[#allocation2 + $0xc] sm:$0xf]
      %v1262 = vld [vmem:[#allocation2 + $0x10] sm:$0xf]
      %v1263 = vld [vmem:[#allocation2 + $0x14] sm:$0x1]
      %v1264 = vld [vmem:[#allocation2 + $0x18] sm:$0xf]
      %v1265 = vld [vmem:[#allocation2 + $0x1c] sm:$0xf]
      %v1266 = vld [vmem:[#allocation2 + $0x20] sm:$0x1]
      %v1267 = vld [vmem:[#allocation2 + $0x24] sm:$0xf]
      %v1268 = vld [vmem:[#allocation2 + $0x28] sm:$0xf]
      %v1269 = vld [vmem:[#allocation2 + $0x2c] sm:$0x1]
      %v1270 = vld [vmem:[#allocation2 + $0x30] sm:$0xf]
      %v1271 = vld [vmem:[#allocation2 + $0x34] sm:$0xf]
      %v1272 = vld [vmem:[#allocation2 + $0x38] sm:$0x1]
      %v1273 = vld [vmem:[#allocation2 + $0x3c] sm:$0xf]
      %v1274 = vld [vmem:[#allocation2 + $0x40] sm:$0xf]
      %v1275 = vld [vmem:[#allocation2 + $0x44] sm:$0x1]
      %v1276 = vld [vmem:[#allocation2 + $0x48] sm:$0xf]
      %v1277 = vld [vmem:[#allocation2 + $0x4c] sm:$0xf]
      %v1278 = vld [vmem:[#allocation2 + $0x50] sm:$0x1]
      %v1279 = vld [vmem:[#allocation2 + $0x54] sm:$0xf]
      %v1280 = vld [vmem:[#allocation2 + $0x58] sm:$0xf]
      %v1281 = vld [vmem:[#allocation2 + $0x5c] sm:$0x1]
      %v1282 = vld [vmem:[#allocation2 + $0x60] sm:$0xf]
      %v1283 = vld [vmem:[#allocation2 + $0x64] sm:$0xf]
      %v1284 = vld [vmem:[#allocation2 + $0x68] sm:$0x1]
      %v1285 = vld [vmem:[#allocation2 + $0x6c] sm:$0xf]
      %v1286 = vld [vmem:[#allocation2 + $0x70] sm:$0xf]
      %v1287 = vld [vmem:[#allocation2 + $0x74] sm:$0x1]
      %v1288 = vld [vmem:[#allocation2 + $0x78] sm:$0xf]
      %v1289 = vld [vmem:[#allocation2 + $0x7c] sm:$0xf]
      %v1290 = vld [vmem:[#allocation2 + $0x80] sm:$0x1]
      %v1291 = vld [vmem:[#allocation2 + $0x84] sm:$0xf]
      %v1292 = vld [vmem:[#allocation2 + $0x88] sm:$0xf]
      %v1293 = vld [vmem:[#allocation2 + $0x8c] sm:$0x1]
      %v1294 = vld [vmem:[#allocation2 + $0x90] sm:$0xf]
      %v1295 = vld [vmem:[#allocation2 + $0x94] sm:$0xf]
      %v1296 = vld [vmem:[#allocation2 + $0x98] sm:$0x1]
      %v1297 = vld [vmem:[#allocation2 + $0x9c] sm:$0xf]
      %v1298 = vld [vmem:[#allocation2 + $0xa0] sm:$0xf]
      %v1299 = vld [vmem:[#allocation2 + $0xa4] sm:$0x1]
      %v1300 = vld [vmem:[#allocation2 + $0xa8] sm:$0xf]
      %v1301 = vld [vmem:[#allocation2 + $0xac] sm:$0xf]
      %v1302 = vld [vmem:[#allocation2 + $0xb0] sm:$0x1]
      %v1303 = vld [vmem:[#allocation2 + $0xb4] sm:$0xf]
      %v1304 = vld [vmem:[#allocation2 + $0xb8] sm:$0xf]
      %v1305 = vld [vmem:[#allocation2 + $0xbc] sm:$0x1]
      %v1306 = vld [vmem:[#allocation2 + $0xc0] sm:$0xf]
      %v1307 = vld [vmem:[#allocation2 + $0xc4] sm:$0xf]
      %v1308 = vld [vmem:[#allocation2 + $0xc8] sm:$0x1]
      %v1309 = vld [vmem:[#allocation2 + $0xcc] sm:$0xf]
      %v1310 = vld [vmem:[#allocation2 + $0xd0] sm:$0xf]
      %v1311 = vld [vmem:[#allocation2 + $0xd4] sm:$0x1]
      %vm1312 = vsmask.f32 3328
      %vm1313 = vsmask.f32 7440
      %vm1314 = vmor %vm1312, %vm1313
      %v1316 = vshrl.u32 %v1258, 16
      %v1318 = vrot.slane %v1316, 4
      %v1319 = vshll.u32 %v1258, 16
      %v1321 = vrot.slane %v1319, 5
      %v1322 = vor.u32 %v1318, %v1321
      %v1323 = vrot.slane %v1322, 4
      %v1325 = vshll.u32 %v1259, 16
      %v1327 = vrot.slane %v1325, 5
      %v1328 = vsel %vm1314, %v1323, %v1327
      %v1329 = vshrl.u32 %v1259, 16
      %v1331 = vrot.slane %v1329, 4
      %v1332 = vor.u32 %v1331, %v1327
      %v1333 = vrot.slane %v1332, 4
      %v1335 = vshll.u32 %v1260, 16
      %v1337 = vrot.slane %v1335, 5
      %v1338 = vsel %vm1314, %v1333, %v1337
      %v1340 = vshrl.u32 %v1261, 16
      %v1342 = vrot.slane %v1340, 4
      %v1343 = vshll.u32 %v1261, 16
      %v1345 = vrot.slane %v1343, 5
      %v1346 = vor.u32 %v1342, %v1345
      %v1347 = vrot.slane %v1346, 4
      %v1349 = vshll.u32 %v1262, 16
      %v1351 = vrot.slane %v1349, 5
      %v1352 = vsel %vm1314, %v1347, %v1351
      %v1353 = vshrl.u32 %v1262, 16
      %v1355 = vrot.slane %v1353, 4
      %v1356 = vor.u32 %v1355, %v1351
      %v1357 = vrot.slane %v1356, 4
      %v1359 = vshll.u32 %v1263, 16
      %v1361 = vrot.slane %v1359, 5
      %v1362 = vsel %vm1314, %v1357, %v1361
      %v1364 = vshrl.u32 %v1264, 16
      %v1366 = vrot.slane %v1364, 4
      %v1367 = vshll.u32 %v1264, 16
      %v1369 = vrot.slane %v1367, 5
      %v1370 = vor.u32 %v1366, %v1369
      %v1371 = vrot.slane %v1370, 4
      %v1373 = vshll.u32 %v1265, 16
      %v1375 = vrot.slane %v1373, 5
      %v1376 = vsel %vm1314, %v1371, %v1375
      %v1377 = vshrl.u32 %v1265, 16
      %v1379 = vrot.slane %v1377, 4
      %v1380 = vor.u32 %v1379, %v1375
      %v1381 = vrot.slane %v1380, 4
      %v1383 = vshll.u32 %v1266, 16
      %v1385 = vrot.slane %v1383, 5
      %v1386 = vsel %vm1314, %v1381, %v1385
      %v1388 = vshrl.u32 %v1267, 16
      %v1390 = vrot.slane %v1388, 4
      %v1391 = vshll.u32 %v1267, 16
      %v1393 = vrot.slane %v1391, 5
      %v1394 = vor.u32 %v1390, %v1393
      %v1395 = vrot.slane %v1394, 4
      %v1397 = vshll.u32 %v1268, 16
      %v1399 = vrot.slane %v1397, 5
      %v1400 = vsel %vm1314, %v1395, %v1399
      %v1401 = vshrl.u32 %v1268, 16
      %v1403 = vrot.slane %v1401, 4
      %v1404 = vor.u32 %v1403, %v1399
      %v1405 = vrot.slane %v1404, 4
      %v1407 = vshll.u32 %v1269, 16
      %v1409 = vrot.slane %v1407, 5
      %v1410 = vsel %vm1314, %v1405, %v1409
      %v1412 = vshrl.u32 %v1270, 16
      %v1414 = vrot.slane %v1412, 4
      %v1415 = vshll.u32 %v1270, 16
      %v1417 = vrot.slane %v1415, 5
      %v1418 = vor.u32 %v1414, %v1417
      %v1419 = vrot.slane %v1418, 4
      %v1421 = vshll.u32 %v1271, 16
      %v1423 = vrot.slane %v1421, 5
      %v1424 = vsel %vm1314, %v1419, %v1423
      %v1425 = vshrl.u32 %v1271, 16
      %v1427 = vrot.slane %v1425, 4
      %v1428 = vor.u32 %v1427, %v1423
      %v1429 = vrot.slane %v1428, 4
      %v1431 = vshll.u32 %v1272, 16
      %v1433 = vrot.slane %v1431, 5
      %v1434 = vsel %vm1314, %v1429, %v1433
      %v1436 = vshrl.u32 %v1273, 16
      %v1438 = vrot.slane %v1436, 4
      %v1439 = vshll.u32 %v1273, 16
      %v1441 = vrot.slane %v1439, 5
      %v1442 = vor.u32 %v1438, %v1441
      %v1443 = vrot.slane %v1442, 4
      %v1445 = vshll.u32 %v1274, 16
      %v1447 = vrot.slane %v1445, 5
      %v1448 = vsel %vm1314, %v1443, %v1447
      %v1449 = vshrl.u32 %v1274, 16
      %v1451 = vrot.slane %v1449, 4
      %v1452 = vor.u32 %v1451, %v1447
      %v1453 = vrot.slane %v1452, 4
      %v1455 = vshll.u32 %v1275, 16
      %v1457 = vrot.slane %v1455, 5
      %v1458 = vsel %vm1314, %v1453, %v1457
      %v1460 = vshrl.u32 %v1276, 16
      %v1462 = vrot.slane %v1460, 4
      %v1463 = vshll.u32 %v1276, 16
      %v1465 = vrot.slane %v1463, 5
      %v1466 = vor.u32 %v1462, %v1465
      %v1467 = vrot.slane %v1466, 4
      %v1469 = vshll.u32 %v1277, 16
      %v1471 = vrot.slane %v1469, 5
      %v1472 = vsel %vm1314, %v1467, %v1471
      %v1473 = vshrl.u32 %v1277, 16
      %v1475 = vrot.slane %v1473, 4
      %v1476 = vor.u32 %v1475, %v1471
      %v1477 = vrot.slane %v1476, 4
      %v1479 = vshll.u32 %v1278, 16
      %v1481 = vrot.slane %v1479, 5
      %v1482 = vsel %vm1314, %v1477, %v1481
      %v1484 = vshrl.u32 %v1279, 16
      %v1486 = vrot.slane %v1484, 4
      %v1487 = vshll.u32 %v1279, 16
      %v1489 = vrot.slane %v1487, 5
      %v1490 = vor.u32 %v1486, %v1489
      %v1491 = vrot.slane %v1490, 4
      %v1493 = vshll.u32 %v1280, 16
      %v1495 = vrot.slane %v1493, 5
      %v1496 = vsel %vm1314, %v1491, %v1495
      %v1497 = vshrl.u32 %v1280, 16
      %v1499 = vrot.slane %v1497, 4
      %v1500 = vor.u32 %v1499, %v1495
      %v1501 = vrot.slane %v1500, 4
      %v1503 = vshll.u32 %v1281, 16
      %v1505 = vrot.slane %v1503, 5
      %v1506 = vsel %vm1314, %v1501, %v1505
      %v1508 = vshrl.u32 %v1282, 16
      %v1510 = vrot.slane %v1508, 4
      %v1511 = vshll.u32 %v1282, 16
      %v1513 = vrot.slane %v1511, 5
      %v1514 = vor.u32 %v1510, %v1513
      %v1515 = vrot.slane %v1514, 4
      %v1517 = vshll.u32 %v1283, 16
      %v1519 = vrot.slane %v1517, 5
      %v1520 = vsel %vm1314, %v1515, %v1519
      %v1521 = vshrl.u32 %v1283, 16
      %v1523 = vrot.slane %v1521, 4
      %v1524 = vor.u32 %v1523, %v1519
      %v1525 = vrot.slane %v1524, 4
      %v1527 = vshll.u32 %v1284, 16
      %v1529 = vrot.slane %v1527, 5
      %v1530 = vsel %vm1314, %v1525, %v1529
      %v1532 = vshrl.u32 %v1285, 16
      %v1534 = vrot.slane %v1532, 4
      %v1535 = vshll.u32 %v1285, 16
      %v1537 = vrot.slane %v1535, 5
      %v1538 = vor.u32 %v1534, %v1537
      %v1539 = vrot.slane %v1538, 4
      %v1541 = vshll.u32 %v1286, 16
      %v1543 = vrot.slane %v1541, 5
      %v1544 = vsel %vm1314, %v1539, %v1543
      %v1545 = vshrl.u32 %v1286, 16
      %v1547 = vrot.slane %v1545, 4
      %v1548 = vor.u32 %v1547, %v1543
      %v1549 = vrot.slane %v1548, 4
      %v1551 = vshll.u32 %v1287, 16
      %v1553 = vrot.slane %v1551, 5
      %v1554 = vsel %vm1314, %v1549, %v1553
      %v1556 = vshrl.u32 %v1288, 16
      %v1558 = vrot.slane %v1556, 4
      %v1559 = vshll.u32 %v1288, 16
      %v1561 = vrot.slane %v1559, 5
      %v1562 = vor.u32 %v1558, %v1561
      %v1563 = vrot.slane %v1562, 4
      %v1565 = vshll.u32 %v1289, 16
      %v1567 = vrot.slane %v1565, 5
      %v1568 = vsel %vm1314, %v1563, %v1567
      %v1569 = vshrl.u32 %v1289, 16
      %v1571 = vrot.slane %v1569, 4
      %v1572 = vor.u32 %v1571, %v1567
      %v1573 = vrot.slane %v1572, 4
      %v1575 = vshll.u32 %v1290, 16
      %v1577 = vrot.slane %v1575, 5
      %v1578 = vsel %vm1314, %v1573, %v1577
      %v1580 = vshrl.u32 %v1291, 16
      %v1582 = vrot.slane %v1580, 4
      %v1583 = vshll.u32 %v1291, 16
      %v1585 = vrot.slane %v1583, 5
      %v1586 = vor.u32 %v1582, %v1585
      %v1587 = vrot.slane %v1586, 4
      %v1589 = vshll.u32 %v1292, 16
      %v1591 = vrot.slane %v1589, 5
      %v1592 = vsel %vm1314, %v1587, %v1591
      %v1593 = vshrl.u32 %v1292, 16
      %v1595 = vrot.slane %v1593, 4
      %v1596 = vor.u32 %v1595, %v1591
      %v1597 = vrot.slane %v1596, 4
      %v1599 = vshll.u32 %v1293, 16
      %v1601 = vrot.slane %v1599, 5
      %v1602 = vsel %vm1314, %v1597, %v1601
      %v1604 = vshrl.u32 %v1294, 16
      %v1606 = vrot.slane %v1604, 4
      %v1607 = vshll.u32 %v1294, 16
      %v1609 = vrot.slane %v1607, 5
      %v1610 = vor.u32 %v1606, %v1609
      %v1611 = vrot.slane %v1610, 4
      %v1613 = vshll.u32 %v1295, 16
      %v1615 = vrot.slane %v1613, 5
      %v1616 = vsel %vm1314, %v1611, %v1615
      %v1617 = vshrl.u32 %v1295, 16
      %v1619 = vrot.slane %v1617, 4
      %v1620 = vor.u32 %v1619, %v1615
      %v1621 = vrot.slane %v1620, 4
      %v1623 = vshll.u32 %v1296, 16
      %v1625 = vrot.slane %v1623, 5
      %v1626 = vsel %vm1314, %v1621, %v1625
      %v1628 = vshrl.u32 %v1297, 16
      %v1630 = vrot.slane %v1628, 4
      %v1631 = vshll.u32 %v1297, 16
      %v1633 = vrot.slane %v1631, 5
      %v1634 = vor.u32 %v1630, %v1633
      %v1635 = vrot.slane %v1634, 4
      %v1637 = vshll.u32 %v1298, 16
      %v1639 = vrot.slane %v1637, 5
      %v1640 = vsel %vm1314, %v1635, %v1639
      %v1641 = vshrl.u32 %v1298, 16
      %v1643 = vrot.slane %v1641, 4
      %v1644 = vor.u32 %v1643, %v1639
      %v1645 = vrot.slane %v1644, 4
      %v1647 = vshll.u32 %v1299, 16
      %v1649 = vrot.slane %v1647, 5
      %v1650 = vsel %vm1314, %v1645, %v1649
      %v1652 = vshrl.u32 %v1300, 16
      %v1654 = vrot.slane %v1652, 4
      %v1655 = vshll.u32 %v1300, 16
      %v1657 = vrot.slane %v1655, 5
      %v1658 = vor.u32 %v1654, %v1657
      %v1659 = vrot.slane %v1658, 4
      %v1661 = vshll.u32 %v1301, 16
      %v1663 = vrot.slane %v1661, 5
      %v1664 = vsel %vm1314, %v1659, %v1663
      %v1665 = vshrl.u32 %v1301, 16
      %v1667 = vrot.slane %v1665, 4
      %v1668 = vor.u32 %v1667, %v1663
      %v1669 = vrot.slane %v1668, 4
      %v1671 = vshll.u32 %v1302, 16
      %v1673 = vrot.slane %v1671, 5
      %v1674 = vsel %vm1314, %v1669, %v1673
      %v1676 = vshrl.u32 %v1303, 16
      %v1678 = vrot.slane %v1676, 4
      %v1679 = vshll.u32 %v1303, 16
      %v1681 = vrot.slane %v1679, 5
      %v1682 = vor.u32 %v1678, %v1681
      %v1683 = vrot.slane %v1682, 4
      %v1685 = vshll.u32 %v1304, 16
      %v1687 = vrot.slane %v1685, 5
      %v1688 = vsel %vm1314, %v1683, %v1687
      %v1689 = vshrl.u32 %v1304, 16
      %v1691 = vrot.slane %v1689, 4
      %v1692 = vor.u32 %v1691, %v1687
      %v1693 = vrot.slane %v1692, 4
      %v1695 = vshll.u32 %v1305, 16
      %v1697 = vrot.slane %v1695, 5
      %v1698 = vsel %vm1314, %v1693, %v1697
      %v1700 = vshrl.u32 %v1306, 16
      %v1702 = vrot.slane %v1700, 4
      %v1703 = vshll.u32 %v1306, 16
      %v1705 = vrot.slane %v1703, 5
      %v1706 = vor.u32 %v1702, %v1705
      %v1707 = vrot.slane %v1706, 4
      %v1709 = vshll.u32 %v1307, 16
      %v1711 = vrot.slane %v1709, 5
      %v1712 = vsel %vm1314, %v1707, %v1711
      %v1713 = vshrl.u32 %v1307, 16
      %v1715 = vrot.slane %v1713, 4
      %v1716 = vor.u32 %v1715, %v1711
      %v1717 = vrot.slane %v1716, 4
      %v1719 = vshll.u32 %v1308, 16
      %v1721 = vrot.slane %v1719, 5
      %v1722 = vsel %vm1314, %v1717, %v1721
      %v1724 = vshrl.u32 %v1309, 16
      %v1726 = vrot.slane %v1724, 4
      %v1727 = vshll.u32 %v1309, 16
      %v1729 = vrot.slane %v1727, 5
      %v1730 = vor.u32 %v1726, %v1729
      %v1731 = vrot.slane %v1730, 4
      %v1733 = vshll.u32 %v1310, 16
      %v1735 = vrot.slane %v1733, 5
      %v1736 = vsel %vm1314, %v1731, %v1735
      %v1737 = vshrl.u32 %v1310, 16
      %v1739 = vrot.slane %v1737, 4
      %v1740 = vor.u32 %v1739, %v1735
      %v1741 = vrot.slane %v1740, 4
      %v1743 = vshll.u32 %v1311, 16
      %v1745 = vrot.slane %v1743, 5
      %v1746 = vsel %vm1314, %v1741, %v1745
      %v1747 = vunpack.c.l.b16 %v1328
      %v1748 = vunpack.c.l.b16 %v1338
      %v1749 = vunpack.c.l.b16 %v1352
      %v1750 = vunpack.c.l.b16 %v1362
      %v1751 = vunpack.c.l.b16 %v1376
      %v1752 = vunpack.c.l.b16 %v1386
      %v1753 = vunpack.c.l.b16 %v1400
      %v1754 = vunpack.c.l.b16 %v1410
      %v1755 = vunpack.c.l.b16 %v1424
      %v1756 = vunpack.c.l.b16 %v1434
      %v1757 = vunpack.c.l.b16 %v1448
      %v1758 = vunpack.c.l.b16 %v1458
      %v1759 = vunpack.c.l.b16 %v1472
      %v1760 = vunpack.c.l.b16 %v1482
      %v1761 = vunpack.c.l.b16 %v1496
      %v1762 = vunpack.c.l.b16 %v1506
      %v1763 = vunpack.c.l.b16 %v1520
      %v1764 = vunpack.c.l.b16 %v1530
      %v1765 = vunpack.c.l.b16 %v1544
      %v1766 = vunpack.c.l.b16 %v1554
      %v1767 = vunpack.c.l.b16 %v1568
      %v1768 = vunpack.c.l.b16 %v1578
      %v1769 = vunpack.c.l.b16 %v1592
      %v1770 = vunpack.c.l.b16 %v1602
      %v1771 = vunpack.c.l.b16 %v1616
      %v1772 = vunpack.c.l.b16 %v1626
      %v1773 = vunpack.c.l.b16 %v1640
      %v1774 = vunpack.c.l.b16 %v1650
      %v1775 = vunpack.c.l.b16 %v1664
      %v1776 = vunpack.c.l.b16 %v1674
      %v1777 = vunpack.c.l.b16 %v1688
      %v1778 = vunpack.c.l.b16 %v1698
      %v1779 = vpack.c.b16 %v1748, %v1747
      %v1780 = vpack.c.b16 %v1750, %v1749
      %v1781 = vpack.c.b16 %v1752, %v1751
      %v1782 = vpack.c.b16 %v1754, %v1753
      %v1783 = vpack.c.b16 %v1756, %v1755
      %v1784 = vpack.c.b16 %v1758, %v1757
      %v1785 = vpack.c.b16 %v1760, %v1759
      %v1786 = vpack.c.b16 %v1762, %v1761
      %v1787 = vpack.c.b16 %v1764, %v1763
      %v1788 = vpack.c.b16 %v1766, %v1765
      %v1789 = vpack.c.b16 %v1768, %v1767
      %v1790 = vpack.c.b16 %v1770, %v1769
      %v1791 = vpack.c.b16 %v1772, %v1771
      %v1792 = vpack.c.b16 %v1774, %v1773
      %v1793 = vpack.c.b16 %v1776, %v1775
      %v1794 = vpack.c.b16 %v1778, %v1777
      %1795 = vrot.lane.b32.xlu0 %v1779, 4
      %v1796 = vpop.permute.xlu0 %1795
      %1797 = vrot.lane.b32.xlu0 %v1780, 4
      %v1798 = vpop.permute.xlu0 %1797
      %1799 = vrot.lane.b32.xlu0 %v1781, 4
      %v1800 = vpop.permute.xlu0 %1799
      %1801 = vrot.lane.b32.xlu0 %v1782, 4
      %v1802 = vpop.permute.xlu0 %1801
      %1803 = vrot.lane.b32.xlu0 %v1783, 4
      %v1804 = vpop.permute.xlu0 %1803
      %1805 = vrot.lane.b32.xlu0 %v1784, 4
      %v1806 = vpop.permute.xlu0 %1805
      %1807 = vrot.lane.b32.xlu0 %v1785, 4
      %v1808 = vpop.permute.xlu0 %1807
      %1809 = vrot.lane.b32.xlu0 %v1786, 4
      %v1810 = vpop.permute.xlu0 %1809
      %1811 = vrot.lane.b32.xlu0 %v1787, 4
      %v1812 = vpop.permute.xlu0 %1811
      %1813 = vrot.lane.b32.xlu0 %v1788, 4
      %v1814 = vpop.permute.xlu0 %1813
      %1815 = vrot.lane.b32.xlu0 %v1789, 4
      %v1816 = vpop.permute.xlu0 %1815
      %1817 = vrot.lane.b32.xlu0 %v1790, 4
      %v1818 = vpop.permute.xlu0 %1817
      %1819 = vrot.lane.b32.xlu0 %v1791, 4
      %v1820 = vpop.permute.xlu0 %1819
      %1821 = vrot.lane.b32.xlu0 %v1792, 4
      %v1822 = vpop.permute.xlu0 %1821
      %1823 = vrot.lane.b32.xlu0 %v1793, 4
      %v1824 = vpop.permute.xlu0 %1823
      %1825 = vrot.lane.b32.xlu0 %v1794, 4
      %v1826 = vpop.permute.xlu0 %1825
      %vm1843 = vcmask 64544
      %1844 = vst.msk [vmem:[#allocation4] sm:$0xff] %vm1843, %v1796
      %1845 = vst.msk [vmem:[#allocation4 + $0x8] sm:$0xff] %vm1843, %v1798
      %1846 = vst.msk [vmem:[#allocation4 + $0x10] sm:$0xff] %vm1843, %v1800
      %1847 = vst.msk [vmem:[#allocation4 + $0x18] sm:$0xff] %vm1843, %v1802
      %1848 = vst.msk [vmem:[#allocation4 + $0x20] sm:$0xff] %vm1843, %v1804
      %1849 = vst.msk [vmem:[#allocation4 + $0x28] sm:$0xff] %vm1843, %v1806
      %1850 = vst.msk [vmem:[#allocation4 + $0x30] sm:$0xff] %vm1843, %v1808
      %1851 = vst.msk [vmem:[#allocation4 + $0x38] sm:$0xff] %vm1843, %v1810
      %1852 = vst.msk [vmem:[#allocation4 + $0x40] sm:$0xff] %vm1843, %v1812
      %1853 = vst.msk [vmem:[#allocation4 + $0x48] sm:$0xff] %vm1843, %v1814
      %1854 = vst.msk [vmem:[#allocation4 + $0x50] sm:$0xff] %vm1843, %v1816
      %1855 = vst.msk [vmem:[#allocation4 + $0x58] sm:$0xff] %vm1843, %v1818
      %1856 = vst.msk [vmem:[#allocation4 + $0x60] sm:$0xff] %vm1843, %v1820
      %1857 = vst.msk [vmem:[#allocation4 + $0x68] sm:$0xff] %vm1843, %v1822
      %1858 = vst.msk [vmem:[#allocation4 + $0x70] sm:$0xff] %vm1843, %v1824
      %1859 = vst.msk [vmem:[#allocation4 + $0x78] sm:$0xff] %vm1843, %v1826
      %v1860 = vunpack.c.l.b16 %v1712
      %v1861 = vunpack.c.l.b16 %v1722
      %v1862 = vpack.c.b16 %v1861, %v1860
      %1863 = vrot.lane.b32.xlu0 %v1780, 16
      %v1864 = vpop.permute.xlu0 %1863
      %1865 = vrot.lane.b32.xlu0 %v1781, 16
      %v1866 = vpop.permute.xlu0 %1865
      %1867 = vrot.lane.b32.xlu0 %v1782, 16
      %v1868 = vpop.permute.xlu0 %1867
      %1869 = vrot.lane.b32.xlu0 %v1783, 16
      %v1870 = vpop.permute.xlu0 %1869
      %1871 = vrot.lane.b32.xlu0 %v1784, 16
      %v1872 = vpop.permute.xlu0 %1871
      %1873 = vrot.lane.b32.xlu0 %v1785, 16
      %v1874 = vpop.permute.xlu0 %1873
      %1875 = vrot.lane.b32.xlu0 %v1786, 16
      %v1876 = vpop.permute.xlu0 %1875
      %1877 = vrot.lane.b32.xlu0 %v1787, 16
      %v1878 = vpop.permute.xlu0 %1877
      %1879 = vrot.lane.b32.xlu0 %v1788, 16
      %v1880 = vpop.permute.xlu0 %1879
      %1881 = vrot.lane.b32.xlu0 %v1789, 16
      %v1882 = vpop.permute.xlu0 %1881
      %1883 = vrot.lane.b32.xlu0 %v1790, 16
      %v1884 = vpop.permute.xlu0 %1883
      %1885 = vrot.lane.b32.xlu0 %v1791, 16
      %v1886 = vpop.permute.xlu0 %1885
      %1887 = vrot.lane.b32.xlu0 %v1792, 16
      %v1888 = vpop.permute.xlu0 %1887
      %1889 = vrot.lane.b32.xlu0 %v1793, 16
      %v1890 = vpop.permute.xlu0 %1889
      %1891 = vrot.lane.b32.xlu0 %v1794, 16
      %v1892 = vpop.permute.xlu0 %1891
      %1893 = vrot.lane.b32.xlu0 %v1862, 16
      %v1894 = vpop.permute.xlu0 %1893
      %vm1911 = vcmask 162944
      %1912 = vst.msk [vmem:[#allocation4] sm:$0xff] %vm1911, %v1864
      %1913 = vst.msk [vmem:[#allocation4 + $0x8] sm:$0xff] %vm1911, %v1866
      %1914 = vst.msk [vmem:[#allocation4 + $0x10] sm:$0xff] %vm1911, %v1868
      %1915 = vst.msk [vmem:[#allocation4 + $0x18] sm:$0xff] %vm1911, %v1870
      %1916 = vst.msk [vmem:[#allocation4 + $0x20] sm:$0xff] %vm1911, %v1872
      %1917 = vst.msk [vmem:[#allocation4 + $0x28] sm:$0xff] %vm1911, %v1874
      %1918 = vst.msk [vmem:[#allocation4 + $0x30] sm:$0xff] %vm1911, %v1876
      %1919 = vst.msk [vmem:[#allocation4 + $0x38] sm:$0xff] %vm1911, %v1878
      %1920 = vst.msk [vmem:[#allocation4 + $0x40] sm:$0xff] %vm1911, %v1880
      %1921 = vst.msk [vmem:[#allocation4 + $0x48] sm:$0xff] %vm1911, %v1882
      %1922 = vst.msk [vmem:[#allocation4 + $0x50] sm:$0xff] %vm1911, %v1884
      %1923 = vst.msk [vmem:[#allocation4 + $0x58] sm:$0xff] %vm1911, %v1886
      %1924 = vst.msk [vmem:[#allocation4 + $0x60] sm:$0xff] %vm1911, %v1888
      %1925 = vst.msk [vmem:[#allocation4 + $0x68] sm:$0xff] %vm1911, %v1890
      %1926 = vst.msk [vmem:[#allocation4 + $0x70] sm:$0xff] %vm1911, %v1892
      %1927 = vst.msk [vmem:[#allocation4 + $0x78] sm:$0xff] %vm1911, %v1894
      %v1928 = vunpack.c.l.b16 %v1736
      %v1929 = vunpack.c.l.b16 %v1746
      %v1930 = vpack.c.b16 %v1929, %v1928
      %1931 = vrot.lane.b32.xlu0 %v1781, 28
      %v1932 = vpop.permute.xlu0 %1931
      %1933 = vrot.lane.b32.xlu0 %v1782, 28
      %v1934 = vpop.permute.xlu0 %1933
      %1935 = vrot.lane.b32.xlu0 %v1783, 28
      %v1936 = vpop.permute.xlu0 %1935
      %1937 = vrot.lane.b32.xlu0 %v1784, 28
      %v1938 = vpop.permute.xlu0 %1937
      %1939 = vrot.lane.b32.xlu0 %v1785, 28
      %v1940 = vpop.permute.xlu0 %1939
      %1941 = vrot.lane.b32.xlu0 %v1786, 28
      %v1942 = vpop.permute.xlu0 %1941
      %1943 = vrot.lane.b32.xlu0 %v1787, 28
      %v1944 = vpop.permute.xlu0 %1943
      %1945 = vrot.lane.b32.xlu0 %v1788, 28
      %v1946 = vpop.permute.xlu0 %1945
      %1947 = vrot.lane.b32.xlu0 %v1789, 28
      %v1948 = vpop.permute.xlu0 %1947
      %1949 = vrot.lane.b32.xlu0 %v1790, 28
      %v1950 = vpop.permute.xlu0 %1949
      %1951 = vrot.lane.b32.xlu0 %v1791, 28
      %v1952 = vpop.permute.xlu0 %1951
      %1953 = vrot.lane.b32.xlu0 %v1792, 28
      %v1954 = vpop.permute.xlu0 %1953
      %1955 = vrot.lane.b32.xlu0 %v1793, 28
      %v1956 = vpop.permute.xlu0 %1955
      %1957 = vrot.lane.b32.xlu0 %v1794, 28
      %v1958 = vpop.permute.xlu0 %1957
      %1959 = vrot.lane.b32.xlu0 %v1862, 28
      %v1960 = vpop.permute.xlu0 %1959
      %1961 = vrot.lane.b32.xlu0 %v1930, 28
      %v1962 = vpop.permute.xlu0 %1961
      %vm1979 = vcmask 261344
      %1980 = vst.msk [vmem:[#allocation4] sm:$0xff] %vm1979, %v1932
      %1981 = vst.msk [vmem:[#allocation4 + $0x8] sm:$0xff] %vm1979, %v1934
      %1982 = vst.msk [vmem:[#allocation4 + $0x10] sm:$0xff] %vm1979, %v1936
      %1983 = vst.msk [vmem:[#allocation4 + $0x18] sm:$0xff] %vm1979, %v1938
      %1984 = vst.msk [vmem:[#allocation4 + $0x20] sm:$0xff] %vm1979, %v1940
      %1985 = vst.msk [vmem:[#allocation4 + $0x28] sm:$0xff] %vm1979, %v1942
      %1986 = vst.msk [vmem:[#allocation4 + $0x30] sm:$0xff] %vm1979, %v1944
      %1987 = vst.msk [vmem:[#allocation4 + $0x38] sm:$0xff] %vm1979, %v1946
      %1988 = vst.msk [vmem:[#allocation4 + $0x40] sm:$0xff] %vm1979, %v1948
      %1989 = vst.msk [vmem:[#allocation4 + $0x48] sm:$0xff] %vm1979, %v1950
      %1990 = vst.msk [vmem:[#allocation4 + $0x50] sm:$0xff] %vm1979, %v1952
      %1991 = vst.msk [vmem:[#allocation4 + $0x58] sm:$0xff] %vm1979, %v1954
      %1992 = vst.msk [vmem:[#allocation4 + $0x60] sm:$0xff] %vm1979, %v1956
      %1993 = vst.msk [vmem:[#allocation4 + $0x68] sm:$0xff] %vm1979, %v1958
      %1994 = vst.msk [vmem:[#allocation4 + $0x70] sm:$0xff] %vm1979, %v1960
      %1995 = vst.msk [vmem:[#allocation4 + $0x78] sm:$0xff] %vm1979, %v1962
      %v1996 = vld [vmem:[#allocation2] sm:$0xe]
      %v1997 = vld [vmem:[#allocation2 + $0x4] sm:$0xf]
      %v1998 = vld [vmem:[#allocation2 + $0x8] sm:$0x1]
      %v1999 = vld [vmem:[#allocation2 + $0xc] sm:$0xe]
      %v2000 = vld [vmem:[#allocation2 + $0x10] sm:$0xf]
      %v2001 = vld [vmem:[#allocation2 + $0x14] sm:$0x1]
      %v2002 = vld [vmem:[#allocation2 + $0x18] sm:$0xe]
      %v2003 = vld [vmem:[#allocation2 + $0x1c] sm:$0xf]
      %v2004 = vld [vmem:[#allocation2 + $0x20] sm:$0x1]
      %v2005 = vld [vmem:[#allocation2 + $0x24] sm:$0xe]
      %v2006 = vld [vmem:[#allocation2 + $0x28] sm:$0xf]
      %v2007 = vld [vmem:[#allocation2 + $0x2c] sm:$0x1]
      %v2008 = vld [vmem:[#allocation2 + $0x30] sm:$0xe]
      %v2009 = vld [vmem:[#allocation2 + $0x34] sm:$0xf]
      %v2010 = vld [vmem:[#allocation2 + $0x38] sm:$0x1]
      %v2011 = vld [vmem:[#allocation2 + $0x3c] sm:$0xe]
      %v2012 = vld [vmem:[#allocation2 + $0x40] sm:$0xf]
      %v2013 = vld [vmem:[#allocation2 + $0x44] sm:$0x1]
      %v2014 = vld [vmem:[#allocation2 + $0x48] sm:$0xe]
      %v2015 = vld [vmem:[#allocation2 + $0x4c] sm:$0xf]
      %v2016 = vld [vmem:[#allocation2 + $0x50] sm:$0x1]
      %v2017 = vld [vmem:[#allocation2 + $0x54] sm:$0xe]
      %v2018 = vld [vmem:[#allocation2 + $0x58] sm:$0xf]
      %v2019 = vld [vmem:[#allocation2 + $0x5c] sm:$0x1]
      %v2020 = vld [vmem:[#allocation2 + $0x60] sm:$0xe]
      %v2021 = vld [vmem:[#allocation2 + $0x64] sm:$0xf]
      %v2022 = vld [vmem:[#allocation2 + $0x68] sm:$0x1]
      %v2023 = vld [vmem:[#allocation2 + $0x6c] sm:$0xe]
      %v2024 = vld [vmem:[#allocation2 + $0x70] sm:$0xf]
      %v2025 = vld [vmem:[#allocation2 + $0x74] sm:$0x1]
      %v2026 = vld [vmem:[#allocation2 + $0x78] sm:$0xe]
      %v2027 = vld [vmem:[#allocation2 + $0x7c] sm:$0xf]
      %v2028 = vld [vmem:[#allocation2 + $0x80] sm:$0x1]
      %v2029 = vld [vmem:[#allocation2 + $0x84] sm:$0xe]
      %v2030 = vld [vmem:[#allocation2 + $0x88] sm:$0xf]
      %v2031 = vld [vmem:[#allocation2 + $0x8c] sm:$0x1]
      %v2032 = vld [vmem:[#allocation2 + $0x90] sm:$0xe]
      %v2033 = vld [vmem:[#allocation2 + $0x94] sm:$0xf]
      %v2034 = vld [vmem:[#allocation2 + $0x98] sm:$0x1]
      %v2035 = vld [vmem:[#allocation2 + $0x9c] sm:$0xe]
      %v2036 = vld [vmem:[#allocation2 + $0xa0] sm:$0xf]
      %v2037 = vld [vmem:[#allocation2 + $0xa4] sm:$0x1]
      %v2038 = vld [vmem:[#allocation2 + $0xa8] sm:$0xe]
      %v2039 = vld [vmem:[#allocation2 + $0xac] sm:$0xf]
      %v2040 = vld [vmem:[#allocation2 + $0xb0] sm:$0x1]
      %v2041 = vld [vmem:[#allocation2 + $0xb4] sm:$0xe]
      %v2042 = vld [vmem:[#allocation2 + $0xb8] sm:$0xf]
      %v2043 = vld [vmem:[#allocation2 + $0xbc] sm:$0x1]
      %v2044 = vld [vmem:[#allocation2 + $0xc0] sm:$0xe]
      %v2045 = vld [vmem:[#allocation2 + $0xc4] sm:$0xf]
      %v2046 = vld [vmem:[#allocation2 + $0xc8] sm:$0x1]
      %v2047 = vld [vmem:[#allocation2 + $0xcc] sm:$0xe]
      %v2048 = vld [vmem:[#allocation2 + $0xd0] sm:$0xf]
      %v2049 = vld [vmem:[#allocation2 + $0xd4] sm:$0x1]
      %vm2104 = vcmask 1042432
      %vm2105 = vcmask 1046532
      %vm2106 = vmor %vm2104, %vm2105
      %v2107 = vrot.slane %v1996, 5
      %v2108 = vrot.slane %v2107, 4
      %v2109 = vrot.slane %v1997, 5
      %v2110 = vsel %vm2106, %v2108, %v2109
      %v2111 = vrot.slane %v2109, 4
      %v2112 = vrot.slane %v1998, 5
      %v2113 = vsel %vm2106, %v2111, %v2112
      %v2114 = vrot.slane %v1999, 5
      %v2115 = vrot.slane %v2114, 4
      %v2116 = vrot.slane %v2000, 5
      %v2117 = vsel %vm2106, %v2115, %v2116
      %v2118 = vrot.slane %v2116, 4
      %v2119 = vrot.slane %v2001, 5
      %v2120 = vsel %vm2106, %v2118, %v2119
      %v2121 = vrot.slane %v2002, 5
      %v2122 = vrot.slane %v2121, 4
      %v2123 = vrot.slane %v2003, 5
      %v2124 = vsel %vm2106, %v2122, %v2123
      %v2125 = vrot.slane %v2123, 4
      %v2126 = vrot.slane %v2004, 5
      %v2127 = vsel %vm2106, %v2125, %v2126
      %v2128 = vrot.slane %v2005, 5
      %v2129 = vrot.slane %v2128, 4
      %v2130 = vrot.slane %v2006, 5
      %v2131 = vsel %vm2106, %v2129, %v2130
      %v2132 = vrot.slane %v2130, 4
      %v2133 = vrot.slane %v2007, 5
      %v2134 = vsel %vm2106, %v2132, %v2133
      %v2135 = vrot.slane %v2008, 5
      %v2136 = vrot.slane %v2135, 4
      %v2137 = vrot.slane %v2009, 5
      %v2138 = vsel %vm2106, %v2136, %v2137
      %v2139 = vrot.slane %v2137, 4
      %v2140 = vrot.slane %v2010, 5
      %v2141 = vsel %vm2106, %v2139, %v2140
      %v2142 = vrot.slane %v2011, 5
      %v2143 = vrot.slane %v2142, 4
      %v2144 = vrot.slane %v2012, 5
      %v2145 = vsel %vm2106, %v2143, %v2144
      %v2146 = vrot.slane %v2144, 4
      %v2147 = vrot.slane %v2013, 5
      %v2148 = vsel %vm2106, %v2146, %v2147
      %v2149 = vrot.slane %v2014, 5
      %v2150 = vrot.slane %v2149, 4
      %v2151 = vrot.slane %v2015, 5
      %v2152 = vsel %vm2106, %v2150, %v2151
      %v2153 = vrot.slane %v2151, 4
      %v2154 = vrot.slane %v2016, 5
      %v2155 = vsel %vm2106, %v2153, %v2154
      %v2156 = vrot.slane %v2017, 5
      %v2157 = vrot.slane %v2156, 4
      %v2158 = vrot.slane %v2018, 5
      %v2159 = vsel %vm2106, %v2157, %v2158
      %v2160 = vrot.slane %v2158, 4
      %v2161 = vrot.slane %v2019, 5
      %v2162 = vsel %vm2106, %v2160, %v2161
      %v2163 = vrot.slane %v2020, 5
      %v2164 = vrot.slane %v2163, 4
      %v2165 = vrot.slane %v2021, 5
      %v2166 = vsel %vm2106, %v2164, %v2165
      %v2167 = vrot.slane %v2165, 4
      %v2168 = vrot.slane %v2022, 5
      %v2169 = vsel %vm2106, %v2167, %v2168
      %v2170 = vrot.slane %v2023, 5
      %v2171 = vrot.slane %v2170, 4
      %v2172 = vrot.slane %v2024, 5
      %v2173 = vsel %vm2106, %v2171, %v2172
      %v2174 = vrot.slane %v2172, 4
      %v2175 = vrot.slane %v2025, 5
      %v2176 = vsel %vm2106, %v2174, %v2175
      %v2177 = vrot.slane %v2026, 5
      %v2178 = vrot.slane %v2177, 4
      %v2179 = vrot.slane %v2027, 5
      %v2180 = vsel %vm2106, %v2178, %v2179
      %v2181 = vrot.slane %v2179, 4
      %v2182 = vrot.slane %v2028, 5
      %v2183 = vsel %vm2106, %v2181, %v2182
      %v2184 = vrot.slane %v2029, 5
      %v2185 = vrot.slane %v2184, 4
      %v2186 = vrot.slane %v2030, 5
      %v2187 = vsel %vm2106, %v2185, %v2186
      %v2188 = vrot.slane %v2186, 4
      %v2189 = vrot.slane %v2031, 5
      %v2190 = vsel %vm2106, %v2188, %v2189
      %v2191 = vrot.slane %v2032, 5
      %v2192 = vrot.slane %v2191, 4
      %v2193 = vrot.slane %v2033, 5
      %v2194 = vsel %vm2106, %v2192, %v2193
      %v2195 = vrot.slane %v2193, 4
      %v2196 = vrot.slane %v2034, 5
      %v2197 = vsel %vm2106, %v2195, %v2196
      %v2198 = vrot.slane %v2035, 5
      %v2199 = vrot.slane %v2198, 4
      %v2200 = vrot.slane %v2036, 5
      %v2201 = vsel %vm2106, %v2199, %v2200
      %v2202 = vrot.slane %v2200, 4
      %v2203 = vrot.slane %v2037, 5
      %v2204 = vsel %vm2106, %v2202, %v2203
      %v2205 = vrot.slane %v2038, 5
      %v2206 = vrot.slane %v2205, 4
      %v2207 = vrot.slane %v2039, 5
      %v2208 = vsel %vm2106, %v2206, %v2207
      %v2209 = vrot.slane %v2207, 4
      %v2210 = vrot.slane %v2040, 5
      %v2211 = vsel %vm2106, %v2209, %v2210
      %v2212 = vrot.slane %v2041, 5
      %v2213 = vrot.slane %v2212, 4
      %v2214 = vrot.slane %v2042, 5
      %v2215 = vsel %vm2106, %v2213, %v2214
      %v2216 = vrot.slane %v2214, 4
      %v2217 = vrot.slane %v2043, 5
      %v2218 = vsel %vm2106, %v2216, %v2217
      %v2219 = vrot.slane %v2044, 5
      %v2220 = vrot.slane %v2219, 4
      %v2221 = vrot.slane %v2045, 5
      %v2222 = vsel %vm2106, %v2220, %v2221
      %v2223 = vrot.slane %v2221, 4
      %v2224 = vrot.slane %v2046, 5
      %v2225 = vsel %vm2106, %v2223, %v2224
      %v2226 = vrot.slane %v2047, 5
      %v2227 = vrot.slane %v2226, 4
      %v2228 = vrot.slane %v2048, 5
      %v2229 = vsel %vm2106, %v2227, %v2228
      %v2230 = vrot.slane %v2228, 4
      %v2231 = vrot.slane %v2049, 5
      %v2232 = vsel %vm2106, %v2230, %v2231
      %v2233 = vunpack.c.l.b16 %v2110
      %v2234 = vunpack.c.l.b16 %v2113
      %v2235 = vunpack.c.l.b16 %v2117
      %v2236 = vunpack.c.l.b16 %v2120
      %v2237 = vunpack.c.l.b16 %v2124
      %v2238 = vunpack.c.l.b16 %v2127
      %v2239 = vunpack.c.l.b16 %v2131
      %v2240 = vunpack.c.l.b16 %v2134
      %v2241 = vunpack.c.l.b16 %v2138
      %v2242 = vunpack.c.l.b16 %v2141
      %v2243 = vunpack.c.l.b16 %v2145
      %v2244 = vunpack.c.l.b16 %v2148
      %v2245 = vunpack.c.l.b16 %v2152
      %v2246 = vunpack.c.l.b16 %v2155
      %v2247 = vunpack.c.l.b16 %v2159
      %v2248 = vunpack.c.l.b16 %v2162
      %v2249 = vunpack.c.l.b16 %v2166
      %v2250 = vunpack.c.l.b16 %v2169
      %v2251 = vunpack.c.l.b16 %v2173
      %v2252 = vunpack.c.l.b16 %v2176
      %v2253 = vunpack.c.l.b16 %v2180
      %v2254 = vunpack.c.l.b16 %v2183
      %v2255 = vunpack.c.l.b16 %v2187
      %v2256 = vunpack.c.l.b16 %v2190
      %v2257 = vunpack.c.l.b16 %v2194
      %v2258 = vunpack.c.l.b16 %v2197
      %v2259 = vunpack.c.l.b16 %v2201
      %v2260 = vunpack.c.l.b16 %v2204
      %v2261 = vunpack.c.l.b16 %v2208
      %v2262 = vunpack.c.l.b16 %v2211
      %v2263 = vunpack.c.l.b16 %v2215
      %v2264 = vunpack.c.l.b16 %v2218
      %v2265 = vpack.c.b16 %v2234, %v2233
      %v2266 = vpack.c.b16 %v2236, %v2235
      %v2267 = vpack.c.b16 %v2238, %v2237
      %v2268 = vpack.c.b16 %v2240, %v2239
      %v2269 = vpack.c.b16 %v2242, %v2241
      %v2270 = vpack.c.b16 %v2244, %v2243
      %v2271 = vpack.c.b16 %v2246, %v2245
      %v2272 = vpack.c.b16 %v2248, %v2247
      %v2273 = vpack.c.b16 %v2250, %v2249
      %v2274 = vpack.c.b16 %v2252, %v2251
      %v2275 = vpack.c.b16 %v2254, %v2253
      %v2276 = vpack.c.b16 %v2256, %v2255
      %v2277 = vpack.c.b16 %v2258, %v2257
      %v2278 = vpack.c.b16 %v2260, %v2259
      %v2279 = vpack.c.b16 %v2262, %v2261
      %v2280 = vpack.c.b16 %v2264, %v2263
      %2281 = vrot.lane.b32.xlu0 %v2265, 8
      %v2282 = vpop.permute.xlu0 %2281
      %2283 = vrot.lane.b32.xlu0 %v2266, 8
      %v2284 = vpop.permute.xlu0 %2283
      %2285 = vrot.lane.b32.xlu0 %v2267, 8
      %v2286 = vpop.permute.xlu0 %2285
      %2287 = vrot.lane.b32.xlu0 %v2268, 8
      %v2288 = vpop.permute.xlu0 %2287
      %2289 = vrot.lane.b32.xlu0 %v2269, 8
      %v2290 = vpop.permute.xlu0 %2289
      %2291 = vrot.lane.b32.xlu0 %v2270, 8
      %v2292 = vpop.permute.xlu0 %2291
      %2293 = vrot.lane.b32.xlu0 %v2271, 8
      %v2294 = vpop.permute.xlu0 %2293
      %2295 = vrot.lane.b32.xlu0 %v2272, 8
      %v2296 = vpop.permute.xlu0 %2295
      %2297 = vrot.lane.b32.xlu0 %v2273, 8
      %v2298 = vpop.permute.xlu0 %2297
      %2299 = vrot.lane.b32.xlu0 %v2274, 8
      %v2300 = vpop.permute.xlu0 %2299
      %2301 = vrot.lane.b32.xlu0 %v2275, 8
      %v2302 = vpop.permute.xlu0 %2301
      %2303 = vrot.lane.b32.xlu0 %v2276, 8
      %v2304 = vpop.permute.xlu0 %2303
      %2305 = vrot.lane.b32.xlu0 %v2277, 8
      %v2306 = vpop.permute.xlu0 %2305
      %2307 = vrot.lane.b32.xlu0 %v2278, 8
      %v2308 = vpop.permute.xlu0 %2307
      %2309 = vrot.lane.b32.xlu0 %v2279, 8
      %v2310 = vpop.permute.xlu0 %2309
      %2311 = vrot.lane.b32.xlu0 %v2280, 8
      %v2312 = vpop.permute.xlu0 %2311
      %vm2329 = vcmask 97344
      %2330 = vst.msk [vmem:[#allocation4] sm:$0xff] %vm2329, %v2282
      %2331 = vst.msk [vmem:[#allocation4 + $0x8] sm:$0xff] %vm2329, %v2284
      %2332 = vst.msk [vmem:[#allocation4 + $0x10] sm:$0xff] %vm2329, %v2286
      %2333 = vst.msk [vmem:[#allocation4 + $0x18] sm:$0xff] %vm2329, %v2288
      %2334 = vst.msk [vmem:[#allocation4 + $0x20] sm:$0xff] %vm2329, %v2290
      %2335 = vst.msk [vmem:[#allocation4 + $0x28] sm:$0xff] %vm2329, %v2292
      %2336 = vst.msk [vmem:[#allocation4 + $0x30] sm:$0xff] %vm2329, %v2294
      %2337 = vst.msk [vmem:[#allocation4 + $0x38] sm:$0xff] %vm2329, %v2296
      %2338 = vst.msk [vmem:[#allocation4 + $0x40] sm:$0xff] %vm2329, %v2298
      %2339 = vst.msk [vmem:[#allocation4 + $0x48] sm:$0xff] %vm2329, %v2300
      %2340 = vst.msk [vmem:[#allocation4 + $0x50] sm:$0xff] %vm2329, %v2302
      %2341 = vst.msk [vmem:[#allocation4 + $0x58] sm:$0xff] %vm2329, %v2304
      %2342 = vst.msk [vmem:[#allocation4 + $0x60] sm:$0xff] %vm2329, %v2306
      %2343 = vst.msk [vmem:[#allocation4 + $0x68] sm:$0xff] %vm2329, %v2308
      %2344 = vst.msk [vmem:[#allocation4 + $0x70] sm:$0xff] %vm2329, %v2310
      %2345 = vst.msk [vmem:[#allocation4 + $0x78] sm:$0xff] %vm2329, %v2312
      %v2346 = vunpack.c.l.b16 %v2222
      %v2347 = vunpack.c.l.b16 %v2225
      %v2348 = vpack.c.b16 %v2347, %v2346
      %2349 = vrot.lane.b32.xlu0 %v2266, 20
      %v2350 = vpop.permute.xlu0 %2349
      %2351 = vrot.lane.b32.xlu0 %v2267, 20
      %v2352 = vpop.permute.xlu0 %2351
      %2353 = vrot.lane.b32.xlu0 %v2268, 20
      %v2354 = vpop.permute.xlu0 %2353
      %2355 = vrot.lane.b32.xlu0 %v2269, 20
      %v2356 = vpop.permute.xlu0 %2355
      %2357 = vrot.lane.b32.xlu0 %v2270, 20
      %v2358 = vpop.permute.xlu0 %2357
      %2359 = vrot.lane.b32.xlu0 %v2271, 20
      %v2360 = vpop.permute.xlu0 %2359
      %2361 = vrot.lane.b32.xlu0 %v2272, 20
      %v2362 = vpop.permute.xlu0 %2361
      %2363 = vrot.lane.b32.xlu0 %v2273, 20
      %v2364 = vpop.permute.xlu0 %2363
      %2365 = vrot.lane.b32.xlu0 %v2274, 20
      %v2366 = vpop.permute.xlu0 %2365
      %2367 = vrot.lane.b32.xlu0 %v2275, 20
      %v2368 = vpop.permute.xlu0 %2367
      %2369 = vrot.lane.b32.xlu0 %v2276, 20
      %v2370 = vpop.permute.xlu0 %2369
      %2371 = vrot.lane.b32.xlu0 %v2277, 20
      %v2372 = vpop.permute.xlu0 %2371
      %2373 = vrot.lane.b32.xlu0 %v2278, 20
      %v2374 = vpop.permute.xlu0 %2373
      %2375 = vrot.lane.b32.xlu0 %v2279, 20
      %v2376 = vpop.permute.xlu0 %2375
      %2377 = vrot.lane.b32.xlu0 %v2280, 20
      %v2378 = vpop.permute.xlu0 %2377
      %2379 = vrot.lane.b32.xlu0 %v2348, 20
      %v2380 = vpop.permute.xlu0 %2379
      %vm2397 = vcmask 195744
      %2398 = vst.msk [vmem:[#allocation4] sm:$0xff] %vm2397, %v2350
      %2399 = vst.msk [vmem:[#allocation4 + $0x8] sm:$0xff] %vm2397, %v2352
      %2400 = vst.msk [vmem:[#allocation4 + $0x10] sm:$0xff] %vm2397, %v2354
      %2401 = vst.msk [vmem:[#allocation4 + $0x18] sm:$0xff] %vm2397, %v2356
      %2402 = vst.msk [vmem:[#allocation4 + $0x20] sm:$0xff] %vm2397, %v2358
      %2403 = vst.msk [vmem:[#allocation4 + $0x28] sm:$0xff] %vm2397, %v2360
      %2404 = vst.msk [vmem:[#allocation4 + $0x30] sm:$0xff] %vm2397, %v2362
      %2405 = vst.msk [vmem:[#allocation4 + $0x38] sm:$0xff] %vm2397, %v2364
      %2406 = vst.msk [vmem:[#allocation4 + $0x40] sm:$0xff] %vm2397, %v2366
      %2407 = vst.msk [vmem:[#allocation4 + $0x48] sm:$0xff] %vm2397, %v2368
      %2408 = vst.msk [vmem:[#allocation4 + $0x50] sm:$0xff] %vm2397, %v2370
      %2409 = vst.msk [vmem:[#allocation4 + $0x58] sm:$0xff] %vm2397, %v2372
      %2410 = vst.msk [vmem:[#allocation4 + $0x60] sm:$0xff] %vm2397, %v2374
      %2411 = vst.msk [vmem:[#allocation4 + $0x68] sm:$0xff] %vm2397, %v2376
      %2412 = vst.msk [vmem:[#allocation4 + $0x70] sm:$0xff] %vm2397, %v2378
      %2413 = vst.msk [vmem:[#allocation4 + $0x78] sm:$0xff] %vm2397, %v2380
      %v2414 = vunpack.c.l.b16 %v2229
      %v2415 = vunpack.c.l.b16 %v2232
      %v2416 = vpack.c.b16 %v2415, %v2414
      %2417 = vrot.lane.b32.xlu0 %v2267, 32
      %v2418 = vpop.permute.xlu0 %2417
      %2419 = vrot.lane.b32.xlu0 %v2268, 32
      %v2420 = vpop.permute.xlu0 %2419
      %2421 = vrot.lane.b32.xlu0 %v2269, 32
      %v2422 = vpop.permute.xlu0 %2421
      %2423 = vrot.lane.b32.xlu0 %v2270, 32
      %v2424 = vpop.permute.xlu0 %2423
      %2425 = vrot.lane.b32.xlu0 %v2271, 32
      %v2426 = vpop.permute.xlu0 %2425
      %2427 = vrot.lane.b32.xlu0 %v2272, 32
      %v2428 = vpop.permute.xlu0 %2427
      %2429 = vrot.lane.b32.xlu0 %v2273, 32
      %v2430 = vpop.permute.xlu0 %2429
      %2431 = vrot.lane.b32.xlu0 %v2274, 32
      %v2432 = vpop.permute.xlu0 %2431
      %2433 = vrot.lane.b32.xlu0 %v2275, 32
      %v2434 = vpop.permute.xlu0 %2433
      %2435 = vrot.lane.b32.xlu0 %v2276, 32
      %v2436 = vpop.permute.xlu0 %2435
      %2437 = vrot.lane.b32.xlu0 %v2277, 32
      %v2438 = vpop.permute.xlu0 %2437
      %2439 = vrot.lane.b32.xlu0 %v2278, 32
      %v2440 = vpop.permute.xlu0 %2439
      %2441 = vrot.lane.b32.xlu0 %v2279, 32
      %v2442 = vpop.permute.xlu0 %2441
      %2443 = vrot.lane.b32.xlu0 %v2280, 32
      %v2444 = vpop.permute.xlu0 %2443
      %2445 = vrot.lane.b32.xlu0 %v2348, 32
      %v2446 = vpop.permute.xlu0 %2445
      %2447 = vrot.lane.b32.xlu0 %v2416, 32
      %v2448 = vpop.permute.xlu0 %2447
      %vm2465 = vcmask 294144
      %2466 = vst.msk [vmem:[#allocation4] sm:$0xff] %vm2465, %v2418
      %2467 = vst.msk [vmem:[#allocation4 + $0x8] sm:$0xff] %vm2465, %v2420
      %2468 = vst.msk [vmem:[#allocation4 + $0x10] sm:$0xff] %vm2465, %v2422
      %2469 = vst.msk [vmem:[#allocation4 + $0x18] sm:$0xff] %vm2465, %v2424
      %2470 = vst.msk [vmem:[#allocation4 + $0x20] sm:$0xff] %vm2465, %v2426
      %2471 = vst.msk [vmem:[#allocation4 + $0x28] sm:$0xff] %vm2465, %v2428
      %2472 = vst.msk [vmem:[#allocation4 + $0x30] sm:$0xff] %vm2465, %v2430
      %2473 = vst.msk [vmem:[#allocation4 + $0x38] sm:$0xff] %vm2465, %v2432
      %2474 = vst.msk [vmem:[#allocation4 + $0x40] sm:$0xff] %vm2465, %v2434
      %2475 = vst.msk [vmem:[#allocation4 + $0x48] sm:$0xff] %vm2465, %v2436
      %2476 = vst.msk [vmem:[#allocation4 + $0x50] sm:$0xff] %vm2465, %v2438
      %2477 = vst.msk [vmem:[#allocation4 + $0x58] sm:$0xff] %vm2465, %v2440
      %2478 = vst.msk [vmem:[#allocation4 + $0x60] sm:$0xff] %vm2465, %v2442
      %2479 = vst.msk [vmem:[#allocation4 + $0x68] sm:$0xff] %vm2465, %v2444
      %2480 = vst.msk [vmem:[#allocation4 + $0x70] sm:$0xff] %vm2465, %v2446
      %2481 = vst.msk [vmem:[#allocation4 + $0x78] sm:$0xff] %vm2465, %v2448
      %v2482 = vld [vmem:[#allocation4] sm:$0xff]
      %v2483 = vld [vmem:[#allocation4 + $0x8] sm:$0xff]
      %v2484 = vld [vmem:[#allocation4 + $0x10] sm:$0xff]
      %v2485 = vld [vmem:[#allocation4 + $0x18] sm:$0xff]
      %v2486 = vld [vmem:[#allocation4 + $0x20] sm:$0xff]
      %v2487 = vld [vmem:[#allocation4 + $0x28] sm:$0xff]
      %v2488 = vld [vmem:[#allocation4 + $0x30] sm:$0xff]
      %v2489 = vld [vmem:[#allocation4 + $0x38] sm:$0xff]
      %v2490 = vld [vmem:[#allocation4 + $0x40] sm:$0xff]
      %v2491 = vld [vmem:[#allocation4 + $0x48] sm:$0xff]
      %v2492 = vld [vmem:[#allocation4 + $0x50] sm:$0xff]
      %v2493 = vld [vmem:[#allocation4 + $0x58] sm:$0xff]
      %v2494 = vld [vmem:[#allocation4 + $0x60] sm:$0xff]
      %v2495 = vld [vmem:[#allocation4 + $0x68] sm:$0xff]
      %v2496 = vld [vmem:[#allocation4 + $0x70] sm:$0xff]
      %v2497 = vld [vmem:[#allocation4 + $0x78] sm:$0xff]
      %v2498 = vld [vmem:[%s2] sm:$0xf]
      %v2499 = vld [vmem:[%s2 + $0x4] sm:$0xf]
      %v2500 = vld [vmem:[%s2 + $0x8] sm:$0xf]
      %v2501 = vld [vmem:[%s2 + $0xc] sm:$0xf]
      %v2502 = vld [vmem:[%s2 + $0x10] sm:$0xf]
      %v2503 = vld [vmem:[%s2 + $0x14] sm:$0xf]
      %v2504 = vld [vmem:[%s2 + $0x18] sm:$0xf]
      %v2505 = vld [vmem:[%s2 + $0x1c] sm:$0xf]
      %v2506 = vld [vmem:[%s2 + $0x20] sm:$0xf]
      %v2507 = vld [vmem:[%s2 + $0x24] sm:$0xf]
      %v2508 = vld [vmem:[%s2 + $0x28] sm:$0xf]
      %v2509 = vld [vmem:[%s2 + $0x2c] sm:$0xf]
      %v2510 = vld [vmem:[%s2 + $0x30] sm:$0xf]
      %v2511 = vld [vmem:[%s2 + $0x34] sm:$0xf]
      %v2512 = vld [vmem:[%s2 + $0x38] sm:$0xf]
      %v2513 = vld [vmem:[%s2 + $0x3c] sm:$0xf]
      %v2514 = vld [vmem:[%s3] sm:$0x1]
      %v2516 = vlaneseq
      %v2517 = vshrl.u32 %v2516, 7
      %v2518 = vsub.s32 0, %v2517
      %v2519 = vrot.slane %v2514, %v2518
      %v2537 = vunpack.c.l.b16 %v2498
      %v2538 = vunpack.c.l.b16 %v2499
      %v2539 = vunpack.c.l.b16 %v2500
      %v2540 = vunpack.c.l.b16 %v2501
      %v2541 = vunpack.c.l.b16 %v2502
      %v2542 = vunpack.c.l.b16 %v2503
      %v2543 = vunpack.c.l.b16 %v2504
      %v2544 = vunpack.c.l.b16 %v2505
      %v2545 = vunpack.c.l.b16 %v2506
      %v2546 = vunpack.c.l.b16 %v2507
      %v2547 = vunpack.c.l.b16 %v2508
      %v2548 = vunpack.c.l.b16 %v2509
      %v2549 = vunpack.c.l.b16 %v2510
      %v2550 = vunpack.c.l.b16 %v2511
      %v2551 = vunpack.c.l.b16 %v2512
      %v2552 = vunpack.c.l.b16 %v2513
      %v2553 = vpack.c.b16 %v2538, %v2537
      %v2554 = vpack.c.b16 %v2540, %v2539
      %v2555 = vpack.c.b16 %v2542, %v2541
      %v2556 = vpack.c.b16 %v2544, %v2543
      %v2557 = vpack.c.b16 %v2546, %v2545
      %v2558 = vpack.c.b16 %v2548, %v2547
      %v2559 = vpack.c.b16 %v2550, %v2549
      %v2560 = vpack.c.b16 %v2552, %v2551
      %2569 = vmatprep.subr.bf16.mxu0 0
      %2570 = vmatpush1.bf16.msra.mxu0 %v2553
      %2571 = vmatprep.subr.bf16.mxu0 0
      %2572 = vmatpush1.bf16.msra.mxu0 %v2554
      %2573 = vmatprep.subr.bf16.mxu0 0
      %2574 = vmatpush1.bf16.msra.mxu0 %v2555
      %2575 = vmatprep.subr.bf16.mxu0 0
      %2576 = vmatpush1.bf16.msra.mxu0 %v2556
      %2577 = vmatprep.subr.bf16.mxu0 0
      %2578 = vmatpush1.bf16.msra.mxu0 %v2557
      %2579 = vmatprep.subr.bf16.mxu0 0
      %2580 = vmatpush1.bf16.msra.mxu0 %v2558
      %2581 = vmatprep.subr.bf16.mxu0 0
      %2582 = vmatpush1.bf16.msra.mxu0 %v2559
      %2583 = vmatprep.subr.bf16.mxu0 0
      %2584 = vmatpush1.bf16.msra.mxu0 %v2560
      %2585 = vmatprep.subr.bf16.mxu0 0
      %2586 = vmatpush1.bf16.msra.mxu0 0
      %2587 = vmatprep.subr.bf16.mxu0 0
      %2588 = vmatpush1.bf16.msra.mxu0 0
      %2589 = vmatprep.subr.bf16.mxu0 0
      %2590 = vmatpush1.bf16.msra.mxu0 0
      %2591 = vmatprep.subr.bf16.mxu0 0
      %2592 = vmatpush1.bf16.msra.mxu0 0
      %2593 = vmatprep.subr.bf16.mxu0 0
      %2594 = vmatpush1.bf16.msra.mxu0 0
      %2595 = vmatprep.subr.bf16.mxu0 0
      %2596 = vmatpush1.bf16.msra.mxu0 0
      %2597 = vmatprep.subr.bf16.mxu0 0
      %2598 = vmatpush1.bf16.msra.mxu0 0
      %2599 = vmatprep.subr.bf16.mxu0 0
      %2600 = vmatpush1.bf16.msra.mxu0 0
      %2601 = vmatprep.mubr.bf16.mxu0 0
      %2602 = vmatmul.mubr.bf16.gmra.mrb[0].mxu0 %v2482
      %v2603 = vpop.f32.mrb[0].mxu0
      %v2604 = vadd.f32 %v2519, %v2603
      %v2605 = vpop.f32.mrb[0].mxu0
      %v2606 = vpop.f32.mrb[0].mxu0
      %v2607 = vadd.f32 %v2519, %v2606
      %v2608 = vpop.f32.mrb[0].mxu0
      %2609 = vmatprep.mubr.bf16.mxu0 0
      %2610 = vmatmul.mubr.bf16.gmra.mrb[0].mxu0 %v2483
      %v2611 = vpop.f32.mrb[0].mxu0
      %v2612 = vadd.f32 %v2519, %v2611
      %v2613 = vpop.f32.mrb[0].mxu0
      %v2614 = vpop.f32.mrb[0].mxu0
      %v2615 = vadd.f32 %v2519, %v2614
      %v2616 = vpop.f32.mrb[0].mxu0
      %2617 = vmatprep.mubr.bf16.mxu0 0
      %2618 = vmatmul.mubr.bf16.gmra.mrb[0].mxu0 %v2484
      %v2619 = vpop.f32.mrb[0].mxu0
      %v2620 = vadd.f32 %v2519, %v2619
      %v2621 = vpop.f32.mrb[0].mxu0
      %v2622 = vpop.f32.mrb[0].mxu0
      %v2623 = vadd.f32 %v2519, %v2622
      %v2624 = vpop.f32.mrb[0].mxu0
      %2625 = vmatprep.mubr.bf16.mxu0 0
      %2626 = vmatmul.mubr.bf16.gmra.mrb[0].mxu0 %v2485
      %v2627 = vpop.f32.mrb[0].mxu0
      %v2628 = vadd.f32 %v2519, %v2627
      %v2629 = vpop.f32.mrb[0].mxu0
      %v2630 = vpop.f32.mrb[0].mxu0
      %v2631 = vadd.f32 %v2519, %v2630
      %v2632 = vpop.f32.mrb[0].mxu0
      %2633 = vmatprep.mubr.bf16.mxu0 0
      %2634 = vmatmul.mubr.bf16.gmra.mrb[0].mxu0 %v2486
      %v2635 = vpop.f32.mrb[0].mxu0
      %v2636 = vadd.f32 %v2519, %v2635
      %v2637 = vpop.f32.mrb[0].mxu0
      %v2638 = vpop.f32.mrb[0].mxu0
      %v2639 = vadd.f32 %v2519, %v2638
      %v2640 = vpop.f32.mrb[0].mxu0
      %2641 = vmatprep.mubr.bf16.mxu0 0
      %2642 = vmatmul.mubr.bf16.gmra.mrb[0].mxu0 %v2487
      %v2643 = vpop.f32.mrb[0].mxu0
      %v2644 = vadd.f32 %v2519, %v2643
      %v2645 = vpop.f32.mrb[0].mxu0
      %v2646 = vpop.f32.mrb[0].mxu0
      %v2647 = vadd.f32 %v2519, %v2646
      %v2648 = vpop.f32.mrb[0].mxu0
      %2649 = vmatprep.mubr.bf16.mxu0 0
      %2650 = vmatmul.mubr.bf16.gmra.mrb[0].mxu0 %v2488
      %v2651 = vpop.f32.mrb[0].mxu0
      %v2652 = vadd.f32 %v2519, %v2651
      %v2653 = vpop.f32.mrb[0].mxu0
      %v2654 = vpop.f32.mrb[0].mxu0
      %v2655 = vadd.f32 %v2519, %v2654
      %v2656 = vpop.f32.mrb[0].mxu0
      %2657 = vmatprep.mubr.bf16.mxu0 0
      %2658 = vmatmul.mubr.bf16.gmra.mrb[0].mxu0 %v2489
      %v2659 = vpop.f32.mrb[0].mxu0
      %v2660 = vadd.f32 %v2519, %v2659
      %v2661 = vpop.f32.mrb[0].mxu0
      %v2662 = vpop.f32.mrb[0].mxu0
      %v2663 = vadd.f32 %v2519, %v2662
      %v2664 = vpop.f32.mrb[0].mxu0
      %2665 = vmatprep.mubr.bf16.mxu0 0
      %2666 = vmatmul.mubr.bf16.gmra.mrb[0].mxu0 %v2490
      %v2667 = vpop.f32.mrb[0].mxu0
      %v2668 = vadd.f32 %v2519, %v2667
      %v2669 = vpop.f32.mrb[0].mxu0
      %v2670 = vpop.f32.mrb[0].mxu0
      %v2671 = vadd.f32 %v2519, %v2670
      %v2672 = vpop.f32.mrb[0].mxu0
      %2673 = vmatprep.mubr.bf16.mxu0 0
      %2674 = vmatmul.mubr.bf16.gmra.mrb[0].mxu0 %v2491
      %v2675 = vpop.f32.mrb[0].mxu0
      %v2676 = vadd.f32 %v2519, %v2675
      %v2677 = vpop.f32.mrb[0].mxu0
      %v2678 = vpop.f32.mrb[0].mxu0
      %v2679 = vadd.f32 %v2519, %v2678
      %v2680 = vpop.f32.mrb[0].mxu0
      %2681 = vmatprep.mubr.bf16.mxu0 0
      %2682 = vmatmul.mubr.bf16.gmra.mrb[0].mxu0 %v2492
      %v2683 = vpop.f32.mrb[0].mxu0
      %v2684 = vadd.f32 %v2519, %v2683
      %v2685 = vpop.f32.mrb[0].mxu0
      %v2686 = vpop.f32.mrb[0].mxu0
      %v2687 = vadd.f32 %v2519, %v2686
      %v2688 = vpop.f32.mrb[0].mxu0
      %2689 = vmatprep.mubr.bf16.mxu0 0
      %2690 = vmatmul.mubr.bf16.gmra.mrb[0].mxu0 %v2493
      %v2691 = vpop.f32.mrb[0].mxu0
      %v2692 = vadd.f32 %v2519, %v2691
      %v2693 = vpop.f32.mrb[0].mxu0
      %v2694 = vpop.f32.mrb[0].mxu0
      %v2695 = vadd.f32 %v2519, %v2694
      %v2696 = vpop.f32.mrb[0].mxu0
      %2697 = vmatprep.mubr.bf16.mxu0 0
      %2698 = vmatmul.mubr.bf16.gmra.mrb[0].mxu0 %v2494
      %v2699 = vpop.f32.mrb[0].mxu0
      %v2700 = vadd.f32 %v2519, %v2699
      %v2701 = vpop.f32.mrb[0].mxu0
      %v2702 = vpop.f32.mrb[0].mxu0
      %v2703 = vadd.f32 %v2519, %v2702
      %v2704 = vpop.f32.mrb[0].mxu0
      %2705 = vmatprep.mubr.bf16.mxu0 0
      %2706 = vmatmul.mubr.bf16.gmra.mrb[0].mxu0 %v2495
      %v2707 = vpop.f32.mrb[0].mxu0
      %v2708 = vadd.f32 %v2519, %v2707
      %v2709 = vpop.f32.mrb[0].mxu0
      %v2710 = vpop.f32.mrb[0].mxu0
      %v2711 = vadd.f32 %v2519, %v2710
      %v2712 = vpop.f32.mrb[0].mxu0
      %2713 = vmatprep.mubr.bf16.mxu0 0
      %2714 = vmatmul.mubr.bf16.gmra.mrb[0].mxu0 %v2496
      %v2715 = vpop.f32.mrb[0].mxu0
      %v2716 = vadd.f32 %v2519, %v2715
      %v2717 = vpop.f32.mrb[0].mxu0
      %v2718 = vpop.f32.mrb[0].mxu0
      %v2719 = vadd.f32 %v2519, %v2718
      %v2720 = vpop.f32.mrb[0].mxu0
      %2721 = vmatprep.mubr.bf16.mxu0 0
      %2722 = vmatmul.mubr.bf16.gmra.mrb[0].mxu0 %v2497
      %v2723 = vpop.f32.mrb[0].mxu0
      %v2724 = vadd.f32 %v2519, %v2723
      %v2725 = vpop.f32.mrb[0].mxu0
      %v2726 = vpop.f32.mrb[0].mxu0
      %v2727 = vadd.f32 %v2519, %v2726
      %v2728 = vpop.f32.mrb[0].mxu0
      %2729 = vdwg.mxu0
      %vm2730 = vcmp.gt.f32.partialorder %v2604, 0.0
      %vm2731 = vcmp.gt.f32.partialorder %v2607, 0.0
      %vm2732 = vcmp.gt.f32.partialorder %v2612, 0.0
      %vm2733 = vcmp.gt.f32.partialorder %v2615, 0.0
      %vm2734 = vcmp.gt.f32.partialorder %v2620, 0.0
      %vm2735 = vcmp.gt.f32.partialorder %v2623, 0.0
      %vm2736 = vcmp.gt.f32.partialorder %v2628, 0.0
      %vm2737 = vcmp.gt.f32.partialorder %v2631, 0.0
      %vm2738 = vcmp.gt.f32.partialorder %v2636, 0.0
      %vm2739 = vcmp.gt.f32.partialorder %v2639, 0.0
      %vm2740 = vcmp.gt.f32.partialorder %v2644, 0.0
      %vm2741 = vcmp.gt.f32.partialorder %v2647, 0.0
      %vm2742 = vcmp.gt.f32.partialorder %v2652, 0.0
      %vm2743 = vcmp.gt.f32.partialorder %v2655, 0.0
      %vm2744 = vcmp.gt.f32.partialorder %v2660, 0.0
      %vm2745 = vcmp.gt.f32.partialorder %v2663, 0.0
      %vm2746 = vcmp.gt.f32.partialorder %v2668, 0.0
      %vm2747 = vcmp.gt.f32.partialorder %v2671, 0.0
      %vm2748 = vcmp.gt.f32.partialorder %v2676, 0.0
      %vm2749 = vcmp.gt.f32.partialorder %v2679, 0.0
      %vm2750 = vcmp.gt.f32.partialorder %v2684, 0.0
      %vm2751 = vcmp.gt.f32.partialorder %v2687, 0.0
      %vm2752 = vcmp.gt.f32.partialorder %v2692, 0.0
      %vm2753 = vcmp.gt.f32.partialorder %v2695, 0.0
      %vm2754 = vcmp.gt.f32.partialorder %v2700, 0.0
      %vm2755 = vcmp.gt.f32.partialorder %v2703, 0.0
      %vm2756 = vcmp.gt.f32.partialorder %v2708, 0.0
      %vm2757 = vcmp.gt.f32.partialorder %v2711, 0.0
      %vm2758 = vcmp.gt.f32.partialorder %v2716, 0.0
      %vm2759 = vcmp.gt.f32.partialorder %v2719, 0.0
      %vm2760 = vcmp.gt.f32.partialorder %v2724, 0.0
      %vm2761 = vcmp.gt.f32.partialorder %v2727, 0.0
      %v2762 = vmul.f32 %v2604, 0.2
      %v2763 = vmul.f32 %v2607, 0.2
      %v2764 = vmul.f32 %v2612, 0.2
      %v2765 = vmul.f32 %v2615, 0.2
      %v2766 = vmul.f32 %v2620, 0.2
      %v2767 = vmul.f32 %v2623, 0.2
      %v2768 = vmul.f32 %v2628, 0.2
      %v2769 = vmul.f32 %v2631, 0.2
      %v2770 = vmul.f32 %v2636, 0.2
      %v2771 = vmul.f32 %v2639, 0.2
      %v2772 = vmul.f32 %v2644, 0.2
      %v2773 = vmul.f32 %v2647, 0.2
      %v2774 = vmul.f32 %v2652, 0.2
      %v2775 = vmul.f32 %v2655, 0.2
      %v2776 = vmul.f32 %v2660, 0.2
      %v2777 = vmul.f32 %v2663, 0.2
      %v2778 = vmul.f32 %v2668, 0.2
      %v2779 = vmul.f32 %v2671, 0.2
      %v2780 = vmul.f32 %v2676, 0.2
      %v2781 = vmul.f32 %v2679, 0.2
      %v2782 = vmul.f32 %v2684, 0.2
      %v2783 = vmul.f32 %v2687, 0.2
      %v2784 = vmul.f32 %v2692, 0.2
      %v2785 = vmul.f32 %v2695, 0.2
      %v2786 = vmul.f32 %v2700, 0.2
      %v2787 = vmul.f32 %v2703, 0.2
      %v2788 = vmul.f32 %v2708, 0.2
      %v2789 = vmul.f32 %v2711, 0.2
      %v2790 = vmul.f32 %v2716, 0.2
      %v2791 = vmul.f32 %v2719, 0.2
      %v2792 = vmul.f32 %v2724, 0.2
      %v2793 = vmul.f32 %v2727, 0.2
      %v2794 = vsel %vm2730, %v2604, %v2762
      %v2795 = vsel %vm2731, %v2607, %v2763
      %v2796 = vsel %vm2732, %v2612, %v2764
      %v2797 = vsel %vm2733, %v2615, %v2765
      %v2798 = vsel %vm2734, %v2620, %v2766
      %v2799 = vsel %vm2735, %v2623, %v2767
      %v2800 = vsel %vm2736, %v2628, %v2768
      %v2801 = vsel %vm2737, %v2631, %v2769
      %v2802 = vsel %vm2738, %v2636, %v2770
      %v2803 = vsel %vm2739, %v2639, %v2771
      %v2804 = vsel %vm2740, %v2644, %v2772
      %v2805 = vsel %vm2741, %v2647, %v2773
      %v2806 = vsel %vm2742, %v2652, %v2774
      %v2807 = vsel %vm2743, %v2655, %v2775
      %v2808 = vsel %vm2744, %v2660, %v2776
      %v2809 = vsel %vm2745, %v2663, %v2777
      %v2810 = vsel %vm2746, %v2668, %v2778
      %v2811 = vsel %vm2747, %v2671, %v2779
      %v2812 = vsel %vm2748, %v2676, %v2780
      %v2813 = vsel %vm2749, %v2679, %v2781
      %v2814 = vsel %vm2750, %v2684, %v2782
      %v2815 = vsel %vm2751, %v2687, %v2783
      %v2816 = vsel %vm2752, %v2692, %v2784
      %v2817 = vsel %vm2753, %v2695, %v2785
      %v2818 = vsel %vm2754, %v2700, %v2786
      %v2819 = vsel %vm2755, %v2703, %v2787
      %v2820 = vsel %vm2756, %v2708, %v2788
      %v2821 = vsel %vm2757, %v2711, %v2789
      %v2822 = vsel %vm2758, %v2716, %v2790
      %v2823 = vsel %vm2759, %v2719, %v2791
      %v2824 = vsel %vm2760, %v2724, %v2792
      %v2825 = vsel %vm2761, %v2727, %v2793
      %v2826 = vpack.c.bf16 %v2795, %v2794
      %v2827 = vpack.c.bf16 %v2797, %v2796
      %v2828 = vpack.c.bf16 %v2799, %v2798
      %v2829 = vpack.c.bf16 %v2801, %v2800
      %v2830 = vpack.c.bf16 %v2803, %v2802
      %v2831 = vpack.c.bf16 %v2805, %v2804
      %v2832 = vpack.c.bf16 %v2807, %v2806
      %v2833 = vpack.c.bf16 %v2809, %v2808
      %v2834 = vpack.c.bf16 %v2811, %v2810
      %v2835 = vpack.c.bf16 %v2813, %v2812
      %v2836 = vpack.c.bf16 %v2815, %v2814
      %v2837 = vpack.c.bf16 %v2817, %v2816
      %v2838 = vpack.c.bf16 %v2819, %v2818
      %v2839 = vpack.c.bf16 %v2821, %v2820
      %v2840 = vpack.c.bf16 %v2823, %v2822
      %v2841 = vpack.c.bf16 %v2825, %v2824
      %v2858 = vunpack.c.l.b16 %v2826
      %v2859 = vunpack.c.h.b16 %v2826
      %v2860 = vunpack.c.l.b16 %v2827
      %v2861 = vunpack.c.h.b16 %v2827
      %v2862 = vunpack.c.l.b16 %v2828
      %v2863 = vunpack.c.h.b16 %v2828
      %v2864 = vunpack.c.l.b16 %v2829
      %v2865 = vunpack.c.h.b16 %v2829
      %v2866 = vunpack.c.l.b16 %v2830
      %v2867 = vunpack.c.h.b16 %v2830
      %v2868 = vunpack.c.l.b16 %v2831
      %v2869 = vunpack.c.h.b16 %v2831
      %v2870 = vunpack.c.l.b16 %v2832
      %v2871 = vunpack.c.h.b16 %v2832
      %v2872 = vunpack.c.l.b16 %v2833
      %v2873 = vunpack.c.h.b16 %v2833
      %v2874 = vunpack.c.l.b16 %v2834
      %v2875 = vunpack.c.h.b16 %v2834
      %v2876 = vunpack.c.l.b16 %v2835
      %v2877 = vunpack.c.h.b16 %v2835
      %v2878 = vunpack.c.l.b16 %v2836
      %v2879 = vunpack.c.h.b16 %v2836
      %v2880 = vunpack.c.l.b16 %v2837
      %v2881 = vunpack.c.h.b16 %v2837
      %v2882 = vunpack.c.l.b16 %v2838
      %v2883 = vunpack.c.h.b16 %v2838
      %v2884 = vunpack.c.l.b16 %v2839
      %v2885 = vunpack.c.h.b16 %v2839
      %v2886 = vunpack.c.l.b16 %v2840
      %v2887 = vunpack.c.h.b16 %v2840
      %v2888 = vunpack.c.l.b16 %v2841
      %v2889 = vunpack.c.h.b16 %v2841
      %v2890 = vpack.c.b16 %v2858, %v2858
      %v2891 = vpack.c.b16 %v2859, %v2859
      %v2892 = vpack.c.b16 %v2860, %v2860
      %v2893 = vpack.c.b16 %v2861, %v2861
      %v2894 = vpack.c.b16 %v2862, %v2862
      %v2895 = vpack.c.b16 %v2863, %v2863
      %v2896 = vpack.c.b16 %v2864, %v2864
      %v2897 = vpack.c.b16 %v2865, %v2865
      %v2898 = vpack.c.b16 %v2866, %v2866
      %v2899 = vpack.c.b16 %v2867, %v2867
      %v2900 = vpack.c.b16 %v2868, %v2868
      %v2901 = vpack.c.b16 %v2869, %v2869
      %v2902 = vpack.c.b16 %v2870, %v2870
      %v2903 = vpack.c.b16 %v2871, %v2871
      %v2904 = vpack.c.b16 %v2872, %v2872
      %v2905 = vpack.c.b16 %v2873, %v2873
      %v2906 = vpack.c.b16 %v2874, %v2874
      %v2907 = vpack.c.b16 %v2875, %v2875
      %v2908 = vpack.c.b16 %v2876, %v2876
      %v2909 = vpack.c.b16 %v2877, %v2877
      %v2910 = vpack.c.b16 %v2878, %v2878
      %v2911 = vpack.c.b16 %v2879, %v2879
      %v2912 = vpack.c.b16 %v2880, %v2880
      %v2913 = vpack.c.b16 %v2881, %v2881
      %v2914 = vpack.c.b16 %v2882, %v2882
      %v2915 = vpack.c.b16 %v2883, %v2883
      %v2916 = vpack.c.b16 %v2884, %v2884
      %v2917 = vpack.c.b16 %v2885, %v2885
      %v2918 = vpack.c.b16 %v2886, %v2886
      %v2919 = vpack.c.b16 %v2887, %v2887
      %v2920 = vpack.c.b16 %v2888, %v2888
      %v2921 = vpack.c.b16 %v2889, %v2889
      %v2923 = vshrl.u32 %v2890, 16
      %v2925 = vrot.slane %v2923, 7
      %v2926 = vshll.u32 %v2890, 16
      %v2928 = vor.u32 %v2925, %v2926
      %v2929 = vrot.slane %v2925, 4
      %v2931 = vshrl.u32 %v2891, 16
      %v2933 = vrot.slane %v2931, 7
      %v2934 = vshll.u32 %v2891, 16
      %v2936 = vor.u32 %v2933, %v2934
      %v2937 = vsel %vm530, %v2929, %v2936
      %v2938 = vrot.slane %v2933, 4
      %v2940 = vshrl.u32 %v2892, 16
      %v2942 = vrot.slane %v2940, 7
      %v2943 = vshll.u32 %v2892, 16
      %v2945 = vor.u32 %v2942, %v2943
      %v2946 = vrot.slane %v2942, 4
      %v2948 = vshrl.u32 %v2893, 16
      %v2950 = vrot.slane %v2948, 7
      %v2951 = vshll.u32 %v2893, 16
      %v2953 = vor.u32 %v2950, %v2951
      %v2954 = vsel %vm530, %v2946, %v2953
      %v2955 = vrot.slane %v2950, 4
      %v2957 = vshrl.u32 %v2894, 16
      %v2959 = vrot.slane %v2957, 7
      %v2960 = vshll.u32 %v2894, 16
      %v2962 = vor.u32 %v2959, %v2960
      %v2963 = vrot.slane %v2959, 4
      %v2965 = vshrl.u32 %v2895, 16
      %v2967 = vrot.slane %v2965, 7
      %v2968 = vshll.u32 %v2895, 16
      %v2970 = vor.u32 %v2967, %v2968
      %v2971 = vsel %vm530, %v2963, %v2970
      %v2972 = vrot.slane %v2967, 4
      %v2974 = vshrl.u32 %v2896, 16
      %v2976 = vrot.slane %v2974, 7
      %v2977 = vshll.u32 %v2896, 16
      %v2979 = vor.u32 %v2976, %v2977
      %v2980 = vrot.slane %v2976, 4
      %v2982 = vshrl.u32 %v2897, 16
      %v2984 = vrot.slane %v2982, 7
      %v2985 = vshll.u32 %v2897, 16
      %v2987 = vor.u32 %v2984, %v2985
      %v2988 = vsel %vm530, %v2980, %v2987
      %v2989 = vrot.slane %v2984, 4
      %v2991 = vshrl.u32 %v2898, 16
      %v2993 = vrot.slane %v2991, 7
      %v2994 = vshll.u32 %v2898, 16
      %v2996 = vor.u32 %v2993, %v2994
      %v2997 = vrot.slane %v2993, 4
      %v2999 = vshrl.u32 %v2899, 16
      %v3001 = vrot.slane %v2999, 7
      %v3002 = vshll.u32 %v2899, 16
      %v3004 = vor.u32 %v3001, %v3002
      %v3005 = vsel %vm530, %v2997, %v3004
      %v3006 = vrot.slane %v3001, 4
      %v3008 = vshrl.u32 %v2900, 16
      %v3010 = vrot.slane %v3008, 7
      %v3011 = vshll.u32 %v2900, 16
      %v3013 = vor.u32 %v3010, %v3011
      %v3014 = vrot.slane %v3010, 4
      %v3016 = vshrl.u32 %v2901, 16
      %v3018 = vrot.slane %v3016, 7
      %v3019 = vshll.u32 %v2901, 16
      %v3021 = vor.u32 %v3018, %v3019
      %v3022 = vsel %vm530, %v3014, %v3021
      %v3023 = vrot.slane %v3018, 4
      %v3025 = vshrl.u32 %v2902, 16
      %v3027 = vrot.slane %v3025, 7
      %v3028 = vshll.u32 %v2902, 16
      %v3030 = vor.u32 %v3027, %v3028
      %v3031 = vrot.slane %v3027, 4
      %v3033 = vshrl.u32 %v2903, 16
      %v3035 = vrot.slane %v3033, 7
      %v3036 = vshll.u32 %v2903, 16
      %v3038 = vor.u32 %v3035, %v3036
      %v3039 = vsel %vm530, %v3031, %v3038
      %v3040 = vrot.slane %v3035, 4
      %v3042 = vshrl.u32 %v2904, 16
      %v3044 = vrot.slane %v3042, 7
      %v3045 = vshll.u32 %v2904, 16
      %v3047 = vor.u32 %v3044, %v3045
      %v3048 = vrot.slane %v3044, 4
      %v3050 = vshrl.u32 %v2905, 16
      %v3052 = vrot.slane %v3050, 7
      %v3053 = vshll.u32 %v2905, 16
      %v3055 = vor.u32 %v3052, %v3053
      %v3056 = vsel %vm530, %v3048, %v3055
      %v3057 = vrot.slane %v3052, 4
      %v3059 = vshrl.u32 %v2906, 16
      %v3061 = vrot.slane %v3059, 7
      %v3062 = vshll.u32 %v2906, 16
      %v3064 = vor.u32 %v3061, %v3062
      %v3065 = vrot.slane %v3061, 4
      %v3067 = vshrl.u32 %v2907, 16
      %v3069 = vrot.slane %v3067, 7
      %v3070 = vshll.u32 %v2907, 16
      %v3072 = vor.u32 %v3069, %v3070
      %v3073 = vsel %vm530, %v3065, %v3072
      %v3074 = vrot.slane %v3069, 4
      %v3076 = vshrl.u32 %v2908, 16
      %v3078 = vrot.slane %v3076, 7
      %v3079 = vshll.u32 %v2908, 16
      %v3081 = vor.u32 %v3078, %v3079
      %v3082 = vrot.slane %v3078, 4
      %v3084 = vshrl.u32 %v2909, 16
      %v3086 = vrot.slane %v3084, 7
      %v3087 = vshll.u32 %v2909, 16
      %v3089 = vor.u32 %v3086, %v3087
      %v3090 = vsel %vm530, %v3082, %v3089
      %v3091 = vrot.slane %v3086, 4
      %v3093 = vshrl.u32 %v2910, 16
      %v3095 = vrot.slane %v3093, 7
      %v3096 = vshll.u32 %v2910, 16
      %v3098 = vor.u32 %v3095, %v3096
      %v3099 = vrot.slane %v3095, 4
      %v3101 = vshrl.u32 %v2911, 16
      %v3103 = vrot.slane %v3101, 7
      %v3104 = vshll.u32 %v2911, 16
      %v3106 = vor.u32 %v3103, %v3104
      %v3107 = vsel %vm530, %v3099, %v3106
      %v3108 = vrot.slane %v3103, 4
      %v3110 = vshrl.u32 %v2912, 16
      %v3112 = vrot.slane %v3110, 7
      %v3113 = vshll.u32 %v2912, 16
      %v3115 = vor.u32 %v3112, %v3113
      %v3116 = vrot.slane %v3112, 4
      %v3118 = vshrl.u32 %v2913, 16
      %v3120 = vrot.slane %v3118, 7
      %v3121 = vshll.u32 %v2913, 16
      %v3123 = vor.u32 %v3120, %v3121
      %v3124 = vsel %vm530, %v3116, %v3123
      %v3125 = vrot.slane %v3120, 4
      %v3127 = vshrl.u32 %v2914, 16
      %v3129 = vrot.slane %v3127, 7
      %v3130 = vshll.u32 %v2914, 16
      %v3132 = vor.u32 %v3129, %v3130
      %v3133 = vrot.slane %v3129, 4
      %v3135 = vshrl.u32 %v2915, 16
      %v3137 = vrot.slane %v3135, 7
      %v3138 = vshll.u32 %v2915, 16
      %v3140 = vor.u32 %v3137, %v3138
      %v3141 = vsel %vm530, %v3133, %v3140
      %v3142 = vrot.slane %v3137, 4
      %v3144 = vshrl.u32 %v2916, 16
      %v3146 = vrot.slane %v3144, 7
      %v3147 = vshll.u32 %v2916, 16
      %v3149 = vor.u32 %v3146, %v3147
      %v3150 = vrot.slane %v3146, 4
      %v3152 = vshrl.u32 %v2917, 16
      %v3154 = vrot.slane %v3152, 7
      %v3155 = vshll.u32 %v2917, 16
      %v3157 = vor.u32 %v3154, %v3155
      %v3158 = vsel %vm530, %v3150, %v3157
      %v3159 = vrot.slane %v3154, 4
      %v3161 = vshrl.u32 %v2918, 16
      %v3163 = vrot.slane %v3161, 7
      %v3164 = vshll.u32 %v2918, 16
      %v3166 = vor.u32 %v3163, %v3164
      %v3167 = vrot.slane %v3163, 4
      %v3169 = vshrl.u32 %v2919, 16
      %v3171 = vrot.slane %v3169, 7
      %v3172 = vshll.u32 %v2919, 16
      %v3174 = vor.u32 %v3171, %v3172
      %v3175 = vsel %vm530, %v3167, %v3174
      %v3176 = vrot.slane %v3171, 4
      %v3178 = vshrl.u32 %v2920, 16
      %v3180 = vrot.slane %v3178, 7
      %v3181 = vshll.u32 %v2920, 16
      %v3183 = vor.u32 %v3180, %v3181
      %v3184 = vrot.slane %v3180, 4
      %v3186 = vshrl.u32 %v2921, 16
      %v3188 = vrot.slane %v3186, 7
      %v3189 = vshll.u32 %v2921, 16
      %v3191 = vor.u32 %v3188, %v3189
      %v3192 = vsel %vm530, %v3184, %v3191
      %v3193 = vrot.slane %v3188, 4
      %s3242 = scalar_lea.vmem [#allocation3], 12
      %v3243 = vld [vmem:[%s3242] sm:$0xf]
      %v3244 = vsel %vm854, %v2928, %v3243
      %3245 = vst [vmem:[%s3242] sm:$0xf] %v3244
      %3246 = vst.msk [vmem:[%s3242 + $0x4] sm:$0xf] %vm273, %v2937
      %v3247 = vld [vmem:[%s3242 + $0x8] sm:$0x1]
      %v3248 = vsel %vm860, %v2938, %v3247
      %3249 = vst [vmem:[%s3242 + $0x8] sm:$0x1] %v3248
      %v3250 = vld [vmem:[%s3242 + $0xc] sm:$0xf]
      %v3251 = vsel %vm854, %v2945, %v3250
      %3252 = vst [vmem:[%s3242 + $0xc] sm:$0xf] %v3251
      %3253 = vst.msk [vmem:[%s3242 + $0x10] sm:$0xf] %vm273, %v2954
      %v3254 = vld [vmem:[%s3242 + $0x14] sm:$0x1]
      %v3255 = vsel %vm860, %v2955, %v3254
      %3256 = vst [vmem:[%s3242 + $0x14] sm:$0x1] %v3255
      %v3257 = vld [vmem:[%s3242 + $0x18] sm:$0xf]
      %v3258 = vsel %vm854, %v2962, %v3257
      %3259 = vst [vmem:[%s3242 + $0x18] sm:$0xf] %v3258
      %3260 = vst.msk [vmem:[%s3242 + $0x1c] sm:$0xf] %vm273, %v2971
      %v3261 = vld [vmem:[%s3242 + $0x20] sm:$0x1]
      %v3262 = vsel %vm860, %v2972, %v3261
      %3263 = vst [vmem:[%s3242 + $0x20] sm:$0x1] %v3262
      %v3264 = vld [vmem:[%s3242 + $0x24] sm:$0xf]
      %v3265 = vsel %vm854, %v2979, %v3264
      %3266 = vst [vmem:[%s3242 + $0x24] sm:$0xf] %v3265
      %3267 = vst.msk [vmem:[%s3242 + $0x28] sm:$0xf] %vm273, %v2988
      %v3268 = vld [vmem:[%s3242 + $0x2c] sm:$0x1]
      %v3269 = vsel %vm860, %v2989, %v3268
      %3270 = vst [vmem:[%s3242 + $0x2c] sm:$0x1] %v3269
      %v3271 = vld [vmem:[%s3242 + $0x30] sm:$0xf]
      %v3272 = vsel %vm854, %v2996, %v3271
      %3273 = vst [vmem:[%s3242 + $0x30] sm:$0xf] %v3272
      %3274 = vst.msk [vmem:[%s3242 + $0x34] sm:$0xf] %vm273, %v3005
      %v3275 = vld [vmem:[%s3242 + $0x38] sm:$0x1]
      %v3276 = vsel %vm860, %v3006, %v3275
      %3277 = vst [vmem:[%s3242 + $0x38] sm:$0x1] %v3276
      %v3278 = vld [vmem:[%s3242 + $0x3c] sm:$0xf]
      %v3279 = vsel %vm854, %v3013, %v3278
      %3280 = vst [vmem:[%s3242 + $0x3c] sm:$0xf] %v3279
      %3281 = vst.msk [vmem:[%s3242 + $0x40] sm:$0xf] %vm273, %v3022
      %v3282 = vld [vmem:[%s3242 + $0x44] sm:$0x1]
      %v3283 = vsel %vm860, %v3023, %v3282
      %3284 = vst [vmem:[%s3242 + $0x44] sm:$0x1] %v3283
      %v3285 = vld [vmem:[%s3242 + $0x48] sm:$0xf]
      %v3286 = vsel %vm854, %v3030, %v3285
      %3287 = vst [vmem:[%s3242 + $0x48] sm:$0xf] %v3286
      %3288 = vst.msk [vmem:[%s3242 + $0x4c] sm:$0xf] %vm273, %v3039
      %v3289 = vld [vmem:[%s3242 + $0x50] sm:$0x1]
      %v3290 = vsel %vm860, %v3040, %v3289
      %3291 = vst [vmem:[%s3242 + $0x50] sm:$0x1] %v3290
      %v3292 = vld [vmem:[%s3242 + $0x54] sm:$0xf]
      %v3293 = vsel %vm854, %v3047, %v3292
      %3294 = vst [vmem:[%s3242 + $0x54] sm:$0xf] %v3293
      %3295 = vst.msk [vmem:[%s3242 + $0x58] sm:$0xf] %vm273, %v3056
      %v3296 = vld [vmem:[%s3242 + $0x5c] sm:$0x1]
      %v3297 = vsel %vm860, %v3057, %v3296
      %3298 = vst [vmem:[%s3242 + $0x5c] sm:$0x1] %v3297
      %v3299 = vld [vmem:[%s3242 + $0x60] sm:$0xf]
      %v3300 = vsel %vm854, %v3064, %v3299
      %3301 = vst [vmem:[%s3242 + $0x60] sm:$0xf] %v3300
      %3302 = vst.msk [vmem:[%s3242 + $0x64] sm:$0xf] %vm273, %v3073
      %v3303 = vld [vmem:[%s3242 + $0x68] sm:$0x1]
      %v3304 = vsel %vm860, %v3074, %v3303
      %3305 = vst [vmem:[%s3242 + $0x68] sm:$0x1] %v3304
      %v3306 = vld [vmem:[%s3242 + $0x6c] sm:$0xf]
      %v3307 = vsel %vm854, %v3081, %v3306
      %3308 = vst [vmem:[%s3242 + $0x6c] sm:$0xf] %v3307
      %3309 = vst.msk [vmem:[%s3242 + $0x70] sm:$0xf] %vm273, %v3090
      %v3310 = vld [vmem:[%s3242 + $0x74] sm:$0x1]
      %v3311 = vsel %vm860, %v3091, %v3310
      %3312 = vst [vmem:[%s3242 + $0x74] sm:$0x1] %v3311
      %v3313 = vld [vmem:[%s3242 + $0x78] sm:$0xf]
      %v3314 = vsel %vm854, %v3098, %v3313
      %3315 = vst [vmem:[%s3242 + $0x78] sm:$0xf] %v3314
      %3316 = vst.msk [vmem:[%s3242 + $0x7c] sm:$0xf] %vm273, %v3107
      %v3317 = vld [vmem:[%s3242 + $0x80] sm:$0x1]
      %v3318 = vsel %vm860, %v3108, %v3317
      %3319 = vst [vmem:[%s3242 + $0x80] sm:$0x1] %v3318
      %v3320 = vld [vmem:[%s3242 + $0x84] sm:$0xf]
      %v3321 = vsel %vm854, %v3115, %v3320
      %3322 = vst [vmem:[%s3242 + $0x84] sm:$0xf] %v3321
      %3323 = vst.msk [vmem:[%s3242 + $0x88] sm:$0xf] %vm273, %v3124
      %v3324 = vld [vmem:[%s3242 + $0x8c] sm:$0x1]
      %v3325 = vsel %vm860, %v3125, %v3324
      %3326 = vst [vmem:[%s3242 + $0x8c] sm:$0x1] %v3325
      %v3327 = vld [vmem:[%s3242 + $0x90] sm:$0xf]
      %v3328 = vsel %vm854, %v3132, %v3327
      %3329 = vst [vmem:[%s3242 + $0x90] sm:$0xf] %v3328
      %3330 = vst.msk [vmem:[%s3242 + $0x94] sm:$0xf] %vm273, %v3141
      %v3331 = vld [vmem:[%s3242 + $0x98] sm:$0x1]
      %v3332 = vsel %vm860, %v3142, %v3331
      %3333 = vst [vmem:[%s3242 + $0x98] sm:$0x1] %v3332
      %v3334 = vld [vmem:[%s3242 + $0x9c] sm:$0xf]
      %v3335 = vsel %vm854, %v3149, %v3334
      %3336 = vst [vmem:[%s3242 + $0x9c] sm:$0xf] %v3335
      %3337 = vst.msk [vmem:[%s3242 + $0xa0] sm:$0xf] %vm273, %v3158
      %v3338 = vld [vmem:[%s3242 + $0xa4] sm:$0x1]
      %v3339 = vsel %vm860, %v3159, %v3338
      %3340 = vst [vmem:[%s3242 + $0xa4] sm:$0x1] %v3339
      %v3341 = vld [vmem:[%s3242 + $0xa8] sm:$0xf]
      %v3342 = vsel %vm854, %v3166, %v3341
      %3343 = vst [vmem:[%s3242 + $0xa8] sm:$0xf] %v3342
      %3344 = vst.msk [vmem:[%s3242 + $0xac] sm:$0xf] %vm273, %v3175
      %v3345 = vld [vmem:[%s3242 + $0xb0] sm:$0x1]
      %v3346 = vsel %vm860, %v3176, %v3345
      %3347 = vst [vmem:[%s3242 + $0xb0] sm:$0x1] %v3346
      %v3348 = vld [vmem:[%s3242 + $0xb4] sm:$0xf]
      %v3349 = vsel %vm854, %v3183, %v3348
      %3350 = vst [vmem:[%s3242 + $0xb4] sm:$0xf] %v3349
      %3351 = vst.msk [vmem:[%s3242 + $0xb8] sm:$0xf] %vm273, %v3192
      %v3352 = vld [vmem:[%s3242 + $0xbc] sm:$0x1]
      %v3353 = vsel %vm860, %v3193, %v3352
      %3354 = vst [vmem:[%s3242 + $0xbc] sm:$0x1] %v3353
      %v3355 = vld [vmem:[#allocation3] sm:$0xf]
      %v3356 = vld [vmem:[#allocation3 + $0x4] sm:$0xf]
      %v3357 = vld [vmem:[#allocation3 + $0xc] sm:$0xf]
      %v3358 = vld [vmem:[#allocation3 + $0x10] sm:$0xf]
      %v3359 = vld [vmem:[#allocation3 + $0x18] sm:$0xf]
      %v3360 = vld [vmem:[#allocation3 + $0x1c] sm:$0xf]
      %v3361 = vld [vmem:[#allocation3 + $0x24] sm:$0xf]
      %v3362 = vld [vmem:[#allocation3 + $0x28] sm:$0xf]
      %v3363 = vld [vmem:[#allocation3 + $0x30] sm:$0xf]
      %v3364 = vld [vmem:[#allocation3 + $0x34] sm:$0xf]
      %v3365 = vld [vmem:[#allocation3 + $0x3c] sm:$0xf]
      %v3366 = vld [vmem:[#allocation3 + $0x40] sm:$0xf]
      %v3367 = vld [vmem:[#allocation3 + $0x48] sm:$0xf]
      %v3368 = vld [vmem:[#allocation3 + $0x4c] sm:$0xf]
      %v3369 = vld [vmem:[#allocation3 + $0x54] sm:$0xf]
      %v3370 = vld [vmem:[#allocation3 + $0x58] sm:$0xf]
      %v3371 = vld [vmem:[#allocation3 + $0x60] sm:$0xf]
      %v3372 = vld [vmem:[#allocation3 + $0x64] sm:$0xf]
      %v3373 = vld [vmem:[#allocation3 + $0x6c] sm:$0xf]
      %v3374 = vld [vmem:[#allocation3 + $0x70] sm:$0xf]
      %v3375 = vld [vmem:[#allocation3 + $0x78] sm:$0xf]
      %v3376 = vld [vmem:[#allocation3 + $0x7c] sm:$0xf]
      %v3377 = vld [vmem:[#allocation3 + $0x84] sm:$0xf]
      %v3378 = vld [vmem:[#allocation3 + $0x88] sm:$0xf]
      %v3379 = vld [vmem:[#allocation3 + $0x90] sm:$0xf]
      %v3380 = vld [vmem:[#allocation3 + $0x94] sm:$0xf]
      %v3381 = vld [vmem:[#allocation3 + $0x9c] sm:$0xf]
      %v3382 = vld [vmem:[#allocation3 + $0xa0] sm:$0xf]
      %v3383 = vld [vmem:[#allocation3 + $0xa8] sm:$0xf]
      %v3384 = vld [vmem:[#allocation3 + $0xac] sm:$0xf]
      %v3385 = vld [vmem:[#allocation3 + $0xb4] sm:$0xf]
      %v3386 = vld [vmem:[#allocation3 + $0xb8] sm:$0xf]
      %v3387 = vld [vmem:[#allocation3 + $0xc0] sm:$0xf]
      %v3388 = vld [vmem:[#allocation3 + $0xc4] sm:$0xf]
      %v3389 = vld [vmem:[#allocation3 + $0xcc] sm:$0xf]
      %v3390 = vld [vmem:[#allocation3 + $0xd0] sm:$0xf]
      %v3423 = vunpack.c.l.b16 %v3355
      %v3424 = vunpack.c.l.b16 %v3356
      %v3425 = vunpack.c.l.b16 %v3357
      %v3426 = vunpack.c.l.b16 %v3358
      %v3427 = vunpack.c.l.b16 %v3359
      %v3428 = vunpack.c.l.b16 %v3360
      %v3429 = vunpack.c.l.b16 %v3361
      %v3430 = vunpack.c.l.b16 %v3362
      %v3431 = vunpack.c.l.b16 %v3363
      %v3432 = vunpack.c.l.b16 %v3364
      %v3433 = vunpack.c.l.b16 %v3365
      %v3434 = vunpack.c.l.b16 %v3366
      %v3435 = vunpack.c.l.b16 %v3367
      %v3436 = vunpack.c.l.b16 %v3368
      %v3437 = vunpack.c.l.b16 %v3369
      %v3438 = vunpack.c.l.b16 %v3370
      %v3439 = vunpack.c.l.b16 %v3371
      %v3440 = vunpack.c.l.b16 %v3372
      %v3441 = vunpack.c.l.b16 %v3373
      %v3442 = vunpack.c.l.b16 %v3374
      %v3443 = vunpack.c.l.b16 %v3375
      %v3444 = vunpack.c.l.b16 %v3376
      %v3445 = vunpack.c.l.b16 %v3377
      %v3446 = vunpack.c.l.b16 %v3378
      %v3447 = vunpack.c.l.b16 %v3379
      %v3448 = vunpack.c.l.b16 %v3380
      %v3449 = vunpack.c.l.b16 %v3381
      %v3450 = vunpack.c.l.b16 %v3382
      %v3451 = vunpack.c.l.b16 %v3383
      %v3452 = vunpack.c.l.b16 %v3384
      %v3453 = vunpack.c.l.b16 %v3385
      %v3454 = vunpack.c.l.b16 %v3386
      %v3455 = vpack.c.b16 %v3424, %v3423
      %v3456 = vpack.c.b16 %v3426, %v3425
      %v3457 = vpack.c.b16 %v3428, %v3427
      %v3458 = vpack.c.b16 %v3430, %v3429
      %v3459 = vpack.c.b16 %v3432, %v3431
      %v3460 = vpack.c.b16 %v3434, %v3433
      %v3461 = vpack.c.b16 %v3436, %v3435
      %v3462 = vpack.c.b16 %v3438, %v3437
      %v3463 = vpack.c.b16 %v3440, %v3439
      %v3464 = vpack.c.b16 %v3442, %v3441
      %v3465 = vpack.c.b16 %v3444, %v3443
      %v3466 = vpack.c.b16 %v3446, %v3445
      %v3467 = vpack.c.b16 %v3448, %v3447
      %v3468 = vpack.c.b16 %v3450, %v3449
      %v3469 = vpack.c.b16 %v3452, %v3451
      %v3470 = vpack.c.b16 %v3454, %v3453
      %3487 = vst.msk [vmem:[#allocation4] sm:$0xff] %vm1101, %v3455
      %3488 = vst.msk [vmem:[#allocation4 + $0x8] sm:$0xff] %vm1101, %v3456
      %3489 = vst.msk [vmem:[#allocation4 + $0x10] sm:$0xff] %vm1101, %v3457
      %3490 = vst.msk [vmem:[#allocation4 + $0x18] sm:$0xff] %vm1101, %v3458
      %3491 = vst.msk [vmem:[#allocation4 + $0x20] sm:$0xff] %vm1101, %v3459
      %3492 = vst.msk [vmem:[#allocation4 + $0x28] sm:$0xff] %vm1101, %v3460
      %3493 = vst.msk [vmem:[#allocation4 + $0x30] sm:$0xff] %vm1101, %v3461
      %3494 = vst.msk [vmem:[#allocation4 + $0x38] sm:$0xff] %vm1101, %v3462
      %3495 = vst.msk [vmem:[#allocation4 + $0x40] sm:$0xff] %vm1101, %v3463
      %3496 = vst.msk [vmem:[#allocation4 + $0x48] sm:$0xff] %vm1101, %v3464
      %3497 = vst.msk [vmem:[#allocation4 + $0x50] sm:$0xff] %vm1101, %v3465
      %3498 = vst.msk [vmem:[#allocation4 + $0x58] sm:$0xff] %vm1101, %v3466
      %3499 = vst.msk [vmem:[#allocation4 + $0x60] sm:$0xff] %vm1101, %v3467
      %3500 = vst.msk [vmem:[#allocation4 + $0x68] sm:$0xff] %vm1101, %v3468
      %3501 = vst.msk [vmem:[#allocation4 + $0x70] sm:$0xff] %vm1101, %v3469
      %3502 = vst.msk [vmem:[#allocation4 + $0x78] sm:$0xff] %vm1101, %v3470
      %v3505 = vunpack.c.l.b16 %v3387
      %v3506 = vunpack.c.l.b16 %v3388
      %v3507 = vpack.c.b16 %v3506, %v3505
      %3508 = vrot.lane.b32.xlu0 %v3456, 12
      %v3509 = vpop.permute.xlu0 %3508
      %3510 = vrot.lane.b32.xlu0 %v3457, 12
      %v3511 = vpop.permute.xlu0 %3510
      %3512 = vrot.lane.b32.xlu0 %v3458, 12
      %v3513 = vpop.permute.xlu0 %3512
      %3514 = vrot.lane.b32.xlu0 %v3459, 12
      %v3515 = vpop.permute.xlu0 %3514
      %3516 = vrot.lane.b32.xlu0 %v3460, 12
      %v3517 = vpop.permute.xlu0 %3516
      %3518 = vrot.lane.b32.xlu0 %v3461, 12
      %v3519 = vpop.permute.xlu0 %3518
      %3520 = vrot.lane.b32.xlu0 %v3462, 12
      %v3521 = vpop.permute.xlu0 %3520
      %3522 = vrot.lane.b32.xlu0 %v3463, 12
      %v3523 = vpop.permute.xlu0 %3522
      %3524 = vrot.lane.b32.xlu0 %v3464, 12
      %v3525 = vpop.permute.xlu0 %3524
      %3526 = vrot.lane.b32.xlu0 %v3465, 12
      %v3527 = vpop.permute.xlu0 %3526
      %3528 = vrot.lane.b32.xlu0 %v3466, 12
      %v3529 = vpop.permute.xlu0 %3528
      %3530 = vrot.lane.b32.xlu0 %v3467, 12
      %v3531 = vpop.permute.xlu0 %3530
      %3532 = vrot.lane.b32.xlu0 %v3468, 12
      %v3533 = vpop.permute.xlu0 %3532
      %3534 = vrot.lane.b32.xlu0 %v3469, 12
      %v3535 = vpop.permute.xlu0 %3534
      %3536 = vrot.lane.b32.xlu0 %v3470, 12
      %v3537 = vpop.permute.xlu0 %3536
      %3538 = vrot.lane.b32.xlu0 %v3507, 12
      %v3539 = vpop.permute.xlu0 %3538
      %3556 = vst.msk [vmem:[#allocation4] sm:$0xff] %vm1171, %v3509
      %3557 = vst.msk [vmem:[#allocation4 + $0x8] sm:$0xff] %vm1171, %v3511
      %3558 = vst.msk [vmem:[#allocation4 + $0x10] sm:$0xff] %vm1171, %v3513
      %3559 = vst.msk [vmem:[#allocation4 + $0x18] sm:$0xff] %vm1171, %v3515
      %3560 = vst.msk [vmem:[#allocation4 + $0x20] sm:$0xff] %vm1171, %v3517
      %3561 = vst.msk [vmem:[#allocation4 + $0x28] sm:$0xff] %vm1171, %v3519
      %3562 = vst.msk [vmem:[#allocation4 + $0x30] sm:$0xff] %vm1171, %v3521
      %3563 = vst.msk [vmem:[#allocation4 + $0x38] sm:$0xff] %vm1171, %v3523
      %3564 = vst.msk [vmem:[#allocation4 + $0x40] sm:$0xff] %vm1171, %v3525
      %3565 = vst.msk [vmem:[#allocation4 + $0x48] sm:$0xff] %vm1171, %v3527
      %3566 = vst.msk [vmem:[#allocation4 + $0x50] sm:$0xff] %vm1171, %v3529
      %3567 = vst.msk [vmem:[#allocation4 + $0x58] sm:$0xff] %vm1171, %v3531
      %3568 = vst.msk [vmem:[#allocation4 + $0x60] sm:$0xff] %vm1171, %v3533
      %3569 = vst.msk [vmem:[#allocation4 + $0x68] sm:$0xff] %vm1171, %v3535
      %3570 = vst.msk [vmem:[#allocation4 + $0x70] sm:$0xff] %vm1171, %v3537
      %3571 = vst.msk [vmem:[#allocation4 + $0x78] sm:$0xff] %vm1171, %v3539
      %v3574 = vunpack.c.l.b16 %v3389
      %v3575 = vunpack.c.l.b16 %v3390
      %v3576 = vpack.c.b16 %v3575, %v3574
      %3577 = vrot.lane.b32.xlu0 %v3457, 24
      %v3578 = vpop.permute.xlu0 %3577
      %3579 = vrot.lane.b32.xlu0 %v3458, 24
      %v3580 = vpop.permute.xlu0 %3579
      %3581 = vrot.lane.b32.xlu0 %v3459, 24
      %v3582 = vpop.permute.xlu0 %3581
      %3583 = vrot.lane.b32.xlu0 %v3460, 24
      %v3584 = vpop.permute.xlu0 %3583
      %3585 = vrot.lane.b32.xlu0 %v3461, 24
      %v3586 = vpop.permute.xlu0 %3585
      %3587 = vrot.lane.b32.xlu0 %v3462, 24
      %v3588 = vpop.permute.xlu0 %3587
      %3589 = vrot.lane.b32.xlu0 %v3463, 24
      %v3590 = vpop.permute.xlu0 %3589
      %3591 = vrot.lane.b32.xlu0 %v3464, 24
      %v3592 = vpop.permute.xlu0 %3591
      %3593 = vrot.lane.b32.xlu0 %v3465, 24
      %v3594 = vpop.permute.xlu0 %3593
      %3595 = vrot.lane.b32.xlu0 %v3466, 24
      %v3596 = vpop.permute.xlu0 %3595
      %3597 = vrot.lane.b32.xlu0 %v3467, 24
      %v3598 = vpop.permute.xlu0 %3597
      %3599 = vrot.lane.b32.xlu0 %v3468, 24
      %v3600 = vpop.permute.xlu0 %3599
      %3601 = vrot.lane.b32.xlu0 %v3469, 24
      %v3602 = vpop.permute.xlu0 %3601
      %3603 = vrot.lane.b32.xlu0 %v3470, 24
      %v3604 = vpop.permute.xlu0 %3603
      %3605 = vrot.lane.b32.xlu0 %v3507, 24
      %v3606 = vpop.permute.xlu0 %3605
      %3607 = vrot.lane.b32.xlu0 %v3576, 24
      %v3608 = vpop.permute.xlu0 %3607
      %3625 = vst.msk [vmem:[#allocation4] sm:$0xff] %vm1241, %v3578
      %3626 = vst.msk [vmem:[#allocation4 + $0x8] sm:$0xff] %vm1241, %v3580
      %3627 = vst.msk [vmem:[#allocation4 + $0x10] sm:$0xff] %vm1241, %v3582
      %3628 = vst.msk [vmem:[#allocation4 + $0x18] sm:$0xff] %vm1241, %v3584
      %3629 = vst.msk [vmem:[#allocation4 + $0x20] sm:$0xff] %vm1241, %v3586
      %3630 = vst.msk [vmem:[#allocation4 + $0x28] sm:$0xff] %vm1241, %v3588
      %3631 = vst.msk [vmem:[#allocation4 + $0x30] sm:$0xff] %vm1241, %v3590
      %3632 = vst.msk [vmem:[#allocation4 + $0x38] sm:$0xff] %vm1241, %v3592
      %3633 = vst.msk [vmem:[#allocation4 + $0x40] sm:$0xff] %vm1241, %v3594
      %3634 = vst.msk [vmem:[#allocation4 + $0x48] sm:$0xff] %vm1241, %v3596
      %3635 = vst.msk [vmem:[#allocation4 + $0x50] sm:$0xff] %vm1241, %v3598
      %3636 = vst.msk [vmem:[#allocation4 + $0x58] sm:$0xff] %vm1241, %v3600
      %3637 = vst.msk [vmem:[#allocation4 + $0x60] sm:$0xff] %vm1241, %v3602
      %3638 = vst.msk [vmem:[#allocation4 + $0x68] sm:$0xff] %vm1241, %v3604
      %3639 = vst.msk [vmem:[#allocation4 + $0x70] sm:$0xff] %vm1241, %v3606
      %3640 = vst.msk [vmem:[#allocation4 + $0x78] sm:$0xff] %vm1241, %v3608
      %v3641 = vld [vmem:[#allocation3] sm:$0xf]
      %v3642 = vld [vmem:[#allocation3 + $0x4] sm:$0xf]
      %v3643 = vld [vmem:[#allocation3 + $0x8] sm:$0x1]
      %v3644 = vld [vmem:[#allocation3 + $0xc] sm:$0xf]
      %v3645 = vld [vmem:[#allocation3 + $0x10] sm:$0xf]
      %v3646 = vld [vmem:[#allocation3 + $0x14] sm:$0x1]
      %v3647 = vld [vmem:[#allocation3 + $0x18] sm:$0xf]
      %v3648 = vld [vmem:[#allocation3 + $0x1c] sm:$0xf]
      %v3649 = vld [vmem:[#allocation3 + $0x20] sm:$0x1]
      %v3650 = vld [vmem:[#allocation3 + $0x24] sm:$0xf]
      %v3651 = vld [vmem:[#allocation3 + $0x28] sm:$0xf]
      %v3652 = vld [vmem:[#allocation3 + $0x2c] sm:$0x1]
      %v3653 = vld [vmem:[#allocation3 + $0x30] sm:$0xf]
      %v3654 = vld [vmem:[#allocation3 + $0x34] sm:$0xf]
      %v3655 = vld [vmem:[#allocation3 + $0x38] sm:$0x1]
      %v3656 = vld [vmem:[#allocation3 + $0x3c] sm:$0xf]
      %v3657 = vld [vmem:[#allocation3 + $0x40] sm:$0xf]
      %v3658 = vld [vmem:[#allocation3 + $0x44] sm:$0x1]
      %v3659 = vld [vmem:[#allocation3 + $0x48] sm:$0xf]
      %v3660 = vld [vmem:[#allocation3 + $0x4c] sm:$0xf]
      %v3661 = vld [vmem:[#allocation3 + $0x50] sm:$0x1]
      %v3662 = vld [vmem:[#allocation3 + $0x54] sm:$0xf]
      %v3663 = vld [vmem:[#allocation3 + $0x58] sm:$0xf]
      %v3664 = vld [vmem:[#allocation3 + $0x5c] sm:$0x1]
      %v3665 = vld [vmem:[#allocation3 + $0x60] sm:$0xf]
      %v3666 = vld [vmem:[#allocation3 + $0x64] sm:$0xf]
      %v3667 = vld [vmem:[#allocation3 + $0x68] sm:$0x1]
      %v3668 = vld [vmem:[#allocation3 + $0x6c] sm:$0xf]
      %v3669 = vld [vmem:[#allocation3 + $0x70] sm:$0xf]
      %v3670 = vld [vmem:[#allocation3 + $0x74] sm:$0x1]
      %v3671 = vld [vmem:[#allocation3 + $0x78] sm:$0xf]
      %v3672 = vld [vmem:[#allocation3 + $0x7c] sm:$0xf]
      %v3673 = vld [vmem:[#allocation3 + $0x80] sm:$0x1]
      %v3674 = vld [vmem:[#allocation3 + $0x84] sm:$0xf]
      %v3675 = vld [vmem:[#allocation3 + $0x88] sm:$0xf]
      %v3676 = vld [vmem:[#allocation3 + $0x8c] sm:$0x1]
      %v3677 = vld [vmem:[#allocation3 + $0x90] sm:$0xf]
      %v3678 = vld [vmem:[#allocation3 + $0x94] sm:$0xf]
      %v3679 = vld [vmem:[#allocation3 + $0x98] sm:$0x1]
      %v3680 = vld [vmem:[#allocation3 + $0x9c] sm:$0xf]
      %v3681 = vld [vmem:[#allocation3 + $0xa0] sm:$0xf]
      %v3682 = vld [vmem:[#allocation3 + $0xa4] sm:$0x1]
      %v3683 = vld [vmem:[#allocation3 + $0xa8] sm:$0xf]
      %v3684 = vld [vmem:[#allocation3 + $0xac] sm:$0xf]
      %v3685 = vld [vmem:[#allocation3 + $0xb0] sm:$0x1]
      %v3686 = vld [vmem:[#allocation3 + $0xb4] sm:$0xf]
      %v3687 = vld [vmem:[#allocation3 + $0xb8] sm:$0xf]
      %v3688 = vld [vmem:[#allocation3 + $0xbc] sm:$0x1]
      %v3689 = vld [vmem:[#allocation3 + $0xc0] sm:$0xf]
      %v3690 = vld [vmem:[#allocation3 + $0xc4] sm:$0xf]
      %v3691 = vld [vmem:[#allocation3 + $0xc8] sm:$0x1]
      %v3692 = vld [vmem:[#allocation3 + $0xcc] sm:$0xf]
      %v3693 = vld [vmem:[#allocation3 + $0xd0] sm:$0xf]
      %v3694 = vld [vmem:[#allocation3 + $0xd4] sm:$0x1]
      %v3696 = vshrl.u32 %v3641, 16
      %v3698 = vrot.slane %v3696, 4
      %v3699 = vshll.u32 %v3641, 16
      %v3701 = vrot.slane %v3699, 5
      %v3702 = vor.u32 %v3698, %v3701
      %v3703 = vrot.slane %v3702, 4
      %v3705 = vshll.u32 %v3642, 16
      %v3707 = vrot.slane %v3705, 5
      %v3708 = vsel %vm1314, %v3703, %v3707
      %v3709 = vshrl.u32 %v3642, 16
      %v3711 = vrot.slane %v3709, 4
      %v3712 = vor.u32 %v3711, %v3707
      %v3713 = vrot.slane %v3712, 4
      %v3715 = vshll.u32 %v3643, 16
      %v3717 = vrot.slane %v3715, 5
      %v3718 = vsel %vm1314, %v3713, %v3717
      %v3720 = vshrl.u32 %v3644, 16
      %v3722 = vrot.slane %v3720, 4
      %v3723 = vshll.u32 %v3644, 16
      %v3725 = vrot.slane %v3723, 5
      %v3726 = vor.u32 %v3722, %v3725
      %v3727 = vrot.slane %v3726, 4
      %v3729 = vshll.u32 %v3645, 16
      %v3731 = vrot.slane %v3729, 5
      %v3732 = vsel %vm1314, %v3727, %v3731
      %v3733 = vshrl.u32 %v3645, 16
      %v3735 = vrot.slane %v3733, 4
      %v3736 = vor.u32 %v3735, %v3731
      %v3737 = vrot.slane %v3736, 4
      %v3739 = vshll.u32 %v3646, 16
      %v3741 = vrot.slane %v3739, 5
      %v3742 = vsel %vm1314, %v3737, %v3741
      %v3744 = vshrl.u32 %v3647, 16
      %v3746 = vrot.slane %v3744, 4
      %v3747 = vshll.u32 %v3647, 16
      %v3749 = vrot.slane %v3747, 5
      %v3750 = vor.u32 %v3746, %v3749
      %v3751 = vrot.slane %v3750, 4
      %v3753 = vshll.u32 %v3648, 16
      %v3755 = vrot.slane %v3753, 5
      %v3756 = vsel %vm1314, %v3751, %v3755
      %v3757 = vshrl.u32 %v3648, 16
      %v3759 = vrot.slane %v3757, 4
      %v3760 = vor.u32 %v3759, %v3755
      %v3761 = vrot.slane %v3760, 4
      %v3763 = vshll.u32 %v3649, 16
      %v3765 = vrot.slane %v3763, 5
      %v3766 = vsel %vm1314, %v3761, %v3765
      %v3768 = vshrl.u32 %v3650, 16
      %v3770 = vrot.slane %v3768, 4
      %v3771 = vshll.u32 %v3650, 16
      %v3773 = vrot.slane %v3771, 5
      %v3774 = vor.u32 %v3770, %v3773
      %v3775 = vrot.slane %v3774, 4
      %v3777 = vshll.u32 %v3651, 16
      %v3779 = vrot.slane %v3777, 5
      %v3780 = vsel %vm1314, %v3775, %v3779
      %v3781 = vshrl.u32 %v3651, 16
      %v3783 = vrot.slane %v3781, 4
      %v3784 = vor.u32 %v3783, %v3779
      %v3785 = vrot.slane %v3784, 4
      %v3787 = vshll.u32 %v3652, 16
      %v3789 = vrot.slane %v3787, 5
      %v3790 = vsel %vm1314, %v3785, %v3789
      %v3792 = vshrl.u32 %v3653, 16
      %v3794 = vrot.slane %v3792, 4
      %v3795 = vshll.u32 %v3653, 16
      %v3797 = vrot.slane %v3795, 5
      %v3798 = vor.u32 %v3794, %v3797
      %v3799 = vrot.slane %v3798, 4
      %v3801 = vshll.u32 %v3654, 16
      %v3803 = vrot.slane %v3801, 5
      %v3804 = vsel %vm1314, %v3799, %v3803
      %v3805 = vshrl.u32 %v3654, 16
      %v3807 = vrot.slane %v3805, 4
      %v3808 = vor.u32 %v3807, %v3803
      %v3809 = vrot.slane %v3808, 4
      %v3811 = vshll.u32 %v3655, 16
      %v3813 = vrot.slane %v3811, 5
      %v3814 = vsel %vm1314, %v3809, %v3813
      %v3816 = vshrl.u32 %v3656, 16
      %v3818 = vrot.slane %v3816, 4
      %v3819 = vshll.u32 %v3656, 16
      %v3821 = vrot.slane %v3819, 5
      %v3822 = vor.u32 %v3818, %v3821
      %v3823 = vrot.slane %v3822, 4
      %v3825 = vshll.u32 %v3657, 16
      %v3827 = vrot.slane %v3825, 5
      %v3828 = vsel %vm1314, %v3823, %v3827
      %v3829 = vshrl.u32 %v3657, 16
      %v3831 = vrot.slane %v3829, 4
      %v3832 = vor.u32 %v3831, %v3827
      %v3833 = vrot.slane %v3832, 4
      %v3835 = vshll.u32 %v3658, 16
      %v3837 = vrot.slane %v3835, 5
      %v3838 = vsel %vm1314, %v3833, %v3837
      %v3840 = vshrl.u32 %v3659, 16
      %v3842 = vrot.slane %v3840, 4
      %v3843 = vshll.u32 %v3659, 16
      %v3845 = vrot.slane %v3843, 5
      %v3846 = vor.u32 %v3842, %v3845
      %v3847 = vrot.slane %v3846, 4
      %v3849 = vshll.u32 %v3660, 16
      %v3851 = vrot.slane %v3849, 5
      %v3852 = vsel %vm1314, %v3847, %v3851
      %v3853 = vshrl.u32 %v3660, 16
      %v3855 = vrot.slane %v3853, 4
      %v3856 = vor.u32 %v3855, %v3851
      %v3857 = vrot.slane %v3856, 4
      %v3859 = vshll.u32 %v3661, 16
      %v3861 = vrot.slane %v3859, 5
      %v3862 = vsel %vm1314, %v3857, %v3861
      %v3864 = vshrl.u32 %v3662, 16
      %v3866 = vrot.slane %v3864, 4
      %v3867 = vshll.u32 %v3662, 16
      %v3869 = vrot.slane %v3867, 5
      %v3870 = vor.u32 %v3866, %v3869
      %v3871 = vrot.slane %v3870, 4
      %v3873 = vshll.u32 %v3663, 16
      %v3875 = vrot.slane %v3873, 5
      %v3876 = vsel %vm1314, %v3871, %v3875
      %v3877 = vshrl.u32 %v3663, 16
      %v3879 = vrot.slane %v3877, 4
      %v3880 = vor.u32 %v3879, %v3875
      %v3881 = vrot.slane %v3880, 4
      %v3883 = vshll.u32 %v3664, 16
      %v3885 = vrot.slane %v3883, 5
      %v3886 = vsel %vm1314, %v3881, %v3885
      %v3888 = vshrl.u32 %v3665, 16
      %v3890 = vrot.slane %v3888, 4
      %v3891 = vshll.u32 %v3665, 16
      %v3893 = vrot.slane %v3891, 5
      %v3894 = vor.u32 %v3890, %v3893
      %v3895 = vrot.slane %v3894, 4
      %v3897 = vshll.u32 %v3666, 16
      %v3899 = vrot.slane %v3897, 5
      %v3900 = vsel %vm1314, %v3895, %v3899
      %v3901 = vshrl.u32 %v3666, 16
      %v3903 = vrot.slane %v3901, 4
      %v3904 = vor.u32 %v3903, %v3899
      %v3905 = vrot.slane %v3904, 4
      %v3907 = vshll.u32 %v3667, 16
      %v3909 = vrot.slane %v3907, 5
      %v3910 = vsel %vm1314, %v3905, %v3909
      %v3912 = vshrl.u32 %v3668, 16
      %v3914 = vrot.slane %v3912, 4
      %v3915 = vshll.u32 %v3668, 16
      %v3917 = vrot.slane %v3915, 5
      %v3918 = vor.u32 %v3914, %v3917
      %v3919 = vrot.slane %v3918, 4
      %v3921 = vshll.u32 %v3669, 16
      %v3923 = vrot.slane %v3921, 5
      %v3924 = vsel %vm1314, %v3919, %v3923
      %v3925 = vshrl.u32 %v3669, 16
      %v3927 = vrot.slane %v3925, 4
      %v3928 = vor.u32 %v3927, %v3923
      %v3929 = vrot.slane %v3928, 4
      %v3931 = vshll.u32 %v3670, 16
      %v3933 = vrot.slane %v3931, 5
      %v3934 = vsel %vm1314, %v3929, %v3933
      %v3936 = vshrl.u32 %v3671, 16
      %v3938 = vrot.slane %v3936, 4
      %v3939 = vshll.u32 %v3671, 16
      %v3941 = vrot.slane %v3939, 5
      %v3942 = vor.u32 %v3938, %v3941
      %v3943 = vrot.slane %v3942, 4
      %v3945 = vshll.u32 %v3672, 16
      %v3947 = vrot.slane %v3945, 5
      %v3948 = vsel %vm1314, %v3943, %v3947
      %v3949 = vshrl.u32 %v3672, 16
      %v3951 = vrot.slane %v3949, 4
      %v3952 = vor.u32 %v3951, %v3947
      %v3953 = vrot.slane %v3952, 4
      %v3955 = vshll.u32 %v3673, 16
      %v3957 = vrot.slane %v3955, 5
      %v3958 = vsel %vm1314, %v3953, %v3957
      %v3960 = vshrl.u32 %v3674, 16
      %v3962 = vrot.slane %v3960, 4
      %v3963 = vshll.u32 %v3674, 16
      %v3965 = vrot.slane %v3963, 5
      %v3966 = vor.u32 %v3962, %v3965
      %v3967 = vrot.slane %v3966, 4
      %v3969 = vshll.u32 %v3675, 16
      %v3971 = vrot.slane %v3969, 5
      %v3972 = vsel %vm1314, %v3967, %v3971
      %v3973 = vshrl.u32 %v3675, 16
      %v3975 = vrot.slane %v3973, 4
      %v3976 = vor.u32 %v3975, %v3971
      %v3977 = vrot.slane %v3976, 4
      %v3979 = vshll.u32 %v3676, 16
      %v3981 = vrot.slane %v3979, 5
      %v3982 = vsel %vm1314, %v3977, %v3981
      %v3984 = vshrl.u32 %v3677, 16
      %v3986 = vrot.slane %v3984, 4
      %v3987 = vshll.u32 %v3677, 16
      %v3989 = vrot.slane %v3987, 5
      %v3990 = vor.u32 %v3986, %v3989
      %v3991 = vrot.slane %v3990, 4
      %v3993 = vshll.u32 %v3678, 16
      %v3995 = vrot.slane %v3993, 5
      %v3996 = vsel %vm1314, %v3991, %v3995
      %v3997 = vshrl.u32 %v3678, 16
      %v3999 = vrot.slane %v3997, 4
      %v4000 = vor.u32 %v3999, %v3995
      %v4001 = vrot.slane %v4000, 4
      %v4003 = vshll.u32 %v3679, 16
      %v4005 = vrot.slane %v4003, 5
      %v4006 = vsel %vm1314, %v4001, %v4005
      %v4008 = vshrl.u32 %v3680, 16
      %v4010 = vrot.slane %v4008, 4
      %v4011 = vshll.u32 %v3680, 16
      %v4013 = vrot.slane %v4011, 5
      %v4014 = vor.u32 %v4010, %v4013
      %v4015 = vrot.slane %v4014, 4
      %v4017 = vshll.u32 %v3681, 16
      %v4019 = vrot.slane %v4017, 5
      %v4020 = vsel %vm1314, %v4015, %v4019
      %v4021 = vshrl.u32 %v3681, 16
      %v4023 = vrot.slane %v4021, 4
      %v4024 = vor.u32 %v4023, %v4019
      %v4025 = vrot.slane %v4024, 4
      %v4027 = vshll.u32 %v3682, 16
      %v4029 = vrot.slane %v4027, 5
      %v4030 = vsel %vm1314, %v4025, %v4029
      %v4032 = vshrl.u32 %v3683, 16
      %v4034 = vrot.slane %v4032, 4
      %v4035 = vshll.u32 %v3683, 16
      %v4037 = vrot.slane %v4035, 5
      %v4038 = vor.u32 %v4034, %v4037
      %v4039 = vrot.slane %v4038, 4
      %v4041 = vshll.u32 %v3684, 16
      %v4043 = vrot.slane %v4041, 5
      %v4044 = vsel %vm1314, %v4039, %v4043
      %v4045 = vshrl.u32 %v3684, 16
      %v4047 = vrot.slane %v4045, 4
      %v4048 = vor.u32 %v4047, %v4043
      %v4049 = vrot.slane %v4048, 4
      %v4051 = vshll.u32 %v3685, 16
      %v4053 = vrot.slane %v4051, 5
      %v4054 = vsel %vm1314, %v4049, %v4053
      %v4056 = vshrl.u32 %v3686, 16
      %v4058 = vrot.slane %v4056, 4
      %v4059 = vshll.u32 %v3686, 16
      %v4061 = vrot.slane %v4059, 5
      %v4062 = vor.u32 %v4058, %v4061
      %v4063 = vrot.slane %v4062, 4
      %v4065 = vshll.u32 %v3687, 16
      %v4067 = vrot.slane %v4065, 5
      %v4068 = vsel %vm1314, %v4063, %v4067
      %v4069 = vshrl.u32 %v3687, 16
      %v4071 = vrot.slane %v4069, 4
      %v4072 = vor.u32 %v4071, %v4067
      %v4073 = vrot.slane %v4072, 4
      %v4075 = vshll.u32 %v3688, 16
      %v4077 = vrot.slane %v4075, 5
      %v4078 = vsel %vm1314, %v4073, %v4077
      %v4080 = vshrl.u32 %v3689, 16
      %v4082 = vrot.slane %v4080, 4
      %v4083 = vshll.u32 %v3689, 16
      %v4085 = vrot.slane %v4083, 5
      %v4086 = vor.u32 %v4082, %v4085
      %v4087 = vrot.slane %v4086, 4
      %v4089 = vshll.u32 %v3690, 16
      %v4091 = vrot.slane %v4089, 5
      %v4092 = vsel %vm1314, %v4087, %v4091
      %v4093 = vshrl.u32 %v3690, 16
      %v4095 = vrot.slane %v4093, 4
      %v4096 = vor.u32 %v4095, %v4091
      %v4097 = vrot.slane %v4096, 4
      %v4099 = vshll.u32 %v3691, 16
      %v4101 = vrot.slane %v4099, 5
      %v4102 = vsel %vm1314, %v4097, %v4101
      %v4104 = vshrl.u32 %v3692, 16
      %v4106 = vrot.slane %v4104, 4
      %v4107 = vshll.u32 %v3692, 16
      %v4109 = vrot.slane %v4107, 5
      %v4110 = vor.u32 %v4106, %v4109
      %v4111 = vrot.slane %v4110, 4
      %v4113 = vshll.u32 %v3693, 16
      %v4115 = vrot.slane %v4113, 5
      %v4116 = vsel %vm1314, %v4111, %v4115
      %v4117 = vshrl.u32 %v3693, 16
      %v4119 = vrot.slane %v4117, 4
      %v4120 = vor.u32 %v4119, %v4115
      %v4121 = vrot.slane %v4120, 4
      %v4123 = vshll.u32 %v3694, 16
      %v4125 = vrot.slane %v4123, 5
      %v4126 = vsel %vm1314, %v4121, %v4125
      %v4127 = vunpack.c.l.b16 %v3708
      %v4128 = vunpack.c.l.b16 %v3718
      %v4129 = vunpack.c.l.b16 %v3732
      %v4130 = vunpack.c.l.b16 %v3742
      %v4131 = vunpack.c.l.b16 %v3756
      %v4132 = vunpack.c.l.b16 %v3766
      %v4133 = vunpack.c.l.b16 %v3780
      %v4134 = vunpack.c.l.b16 %v3790
      %v4135 = vunpack.c.l.b16 %v3804
      %v4136 = vunpack.c.l.b16 %v3814
      %v4137 = vunpack.c.l.b16 %v3828
      %v4138 = vunpack.c.l.b16 %v3838
      %v4139 = vunpack.c.l.b16 %v3852
      %v4140 = vunpack.c.l.b16 %v3862
      %v4141 = vunpack.c.l.b16 %v3876
      %v4142 = vunpack.c.l.b16 %v3886
      %v4143 = vunpack.c.l.b16 %v3900
      %v4144 = vunpack.c.l.b16 %v3910
      %v4145 = vunpack.c.l.b16 %v3924
      %v4146 = vunpack.c.l.b16 %v3934
      %v4147 = vunpack.c.l.b16 %v3948
      %v4148 = vunpack.c.l.b16 %v3958
      %v4149 = vunpack.c.l.b16 %v3972
      %v4150 = vunpack.c.l.b16 %v3982
      %v4151 = vunpack.c.l.b16 %v3996
      %v4152 = vunpack.c.l.b16 %v4006
      %v4153 = vunpack.c.l.b16 %v4020
      %v4154 = vunpack.c.l.b16 %v4030
      %v4155 = vunpack.c.l.b16 %v4044
      %v4156 = vunpack.c.l.b16 %v4054
      %v4157 = vunpack.c.l.b16 %v4068
      %v4158 = vunpack.c.l.b16 %v4078
      %v4159 = vpack.c.b16 %v4128, %v4127
      %v4160 = vpack.c.b16 %v4130, %v4129
      %v4161 = vpack.c.b16 %v4132, %v4131
      %v4162 = vpack.c.b16 %v4134, %v4133
      %v4163 = vpack.c.b16 %v4136, %v4135
      %v4164 = vpack.c.b16 %v4138, %v4137
      %v4165 = vpack.c.b16 %v4140, %v4139
      %v4166 = vpack.c.b16 %v4142, %v4141
      %v4167 = vpack.c.b16 %v4144, %v4143
      %v4168 = vpack.c.b16 %v4146, %v4145
      %v4169 = vpack.c.b16 %v4148, %v4147
      %v4170 = vpack.c.b16 %v4150, %v4149
      %v4171 = vpack.c.b16 %v4152, %v4151
      %v4172 = vpack.c.b16 %v4154, %v4153
      %v4173 = vpack.c.b16 %v4156, %v4155
      %v4174 = vpack.c.b16 %v4158, %v4157
      %4175 = vrot.lane.b32.xlu0 %v4159, 4
      %v4176 = vpop.permute.xlu0 %4175
      %4177 = vrot.lane.b32.xlu0 %v4160, 4
      %v4178 = vpop.permute.xlu0 %4177
      %4179 = vrot.lane.b32.xlu0 %v4161, 4
      %v4180 = vpop.permute.xlu0 %4179
      %4181 = vrot.lane.b32.xlu0 %v4162, 4
      %v4182 = vpop.permute.xlu0 %4181
      %4183 = vrot.lane.b32.xlu0 %v4163, 4
      %v4184 = vpop.permute.xlu0 %4183
      %4185 = vrot.lane.b32.xlu0 %v4164, 4
      %v4186 = vpop.permute.xlu0 %4185
      %4187 = vrot.lane.b32.xlu0 %v4165, 4
      %v4188 = vpop.permute.xlu0 %4187
      %4189 = vrot.lane.b32.xlu0 %v4166, 4
      %v4190 = vpop.permute.xlu0 %4189
      %4191 = vrot.lane.b32.xlu0 %v4167, 4
      %v4192 = vpop.permute.xlu0 %4191
      %4193 = vrot.lane.b32.xlu0 %v4168, 4
      %v4194 = vpop.permute.xlu0 %4193
      %4195 = vrot.lane.b32.xlu0 %v4169, 4
      %v4196 = vpop.permute.xlu0 %4195
      %4197 = vrot.lane.b32.xlu0 %v4170, 4
      %v4198 = vpop.permute.xlu0 %4197
      %4199 = vrot.lane.b32.xlu0 %v4171, 4
      %v4200 = vpop.permute.xlu0 %4199
      %4201 = vrot.lane.b32.xlu0 %v4172, 4
      %v4202 = vpop.permute.xlu0 %4201
      %4203 = vrot.lane.b32.xlu0 %v4173, 4
      %v4204 = vpop.permute.xlu0 %4203
      %4205 = vrot.lane.b32.xlu0 %v4174, 4
      %v4206 = vpop.permute.xlu0 %4205
      %4223 = vst.msk [vmem:[#allocation4] sm:$0xff] %vm1843, %v4176
      %4224 = vst.msk [vmem:[#allocation4 + $0x8] sm:$0xff] %vm1843, %v4178
      %4225 = vst.msk [vmem:[#allocation4 + $0x10] sm:$0xff] %vm1843, %v4180
      %4226 = vst.msk [vmem:[#allocation4 + $0x18] sm:$0xff] %vm1843, %v4182
      %4227 = vst.msk [vmem:[#allocation4 + $0x20] sm:$0xff] %vm1843, %v4184
      %4228 = vst.msk [vmem:[#allocation4 + $0x28] sm:$0xff] %vm1843, %v4186
      %4229 = vst.msk [vmem:[#allocation4 + $0x30] sm:$0xff] %vm1843, %v4188
      %4230 = vst.msk [vmem:[#allocation4 + $0x38] sm:$0xff] %vm1843, %v4190
      %4231 = vst.msk [vmem:[#allocation4 + $0x40] sm:$0xff] %vm1843, %v4192
      %4232 = vst.msk [vmem:[#allocation4 + $0x48] sm:$0xff] %vm1843, %v4194
      %4233 = vst.msk [vmem:[#allocation4 + $0x50] sm:$0xff] %vm1843, %v4196
      %4234 = vst.msk [vmem:[#allocation4 + $0x58] sm:$0xff] %vm1843, %v4198
      %4235 = vst.msk [vmem:[#allocation4 + $0x60] sm:$0xff] %vm1843, %v4200
      %4236 = vst.msk [vmem:[#allocation4 + $0x68] sm:$0xff] %vm1843, %v4202
      %4237 = vst.msk [vmem:[#allocation4 + $0x70] sm:$0xff] %vm1843, %v4204
      %4238 = vst.msk [vmem:[#allocation4 + $0x78] sm:$0xff] %vm1843, %v4206
      %v4239 = vunpack.c.l.b16 %v4092
      %v4240 = vunpack.c.l.b16 %v4102
      %v4241 = vpack.c.b16 %v4240, %v4239
      %4242 = vrot.lane.b32.xlu0 %v4160, 16
      %v4243 = vpop.permute.xlu0 %4242
      %4244 = vrot.lane.b32.xlu0 %v4161, 16
      %v4245 = vpop.permute.xlu0 %4244
      %4246 = vrot.lane.b32.xlu0 %v4162, 16
      %v4247 = vpop.permute.xlu0 %4246
      %4248 = vrot.lane.b32.xlu0 %v4163, 16
      %v4249 = vpop.permute.xlu0 %4248
      %4250 = vrot.lane.b32.xlu0 %v4164, 16
      %v4251 = vpop.permute.xlu0 %4250
      %4252 = vrot.lane.b32.xlu0 %v4165, 16
      %v4253 = vpop.permute.xlu0 %4252
      %4254 = vrot.lane.b32.xlu0 %v4166, 16
      %v4255 = vpop.permute.xlu0 %4254
      %4256 = vrot.lane.b32.xlu0 %v4167, 16
      %v4257 = vpop.permute.xlu0 %4256
      %4258 = vrot.lane.b32.xlu0 %v4168, 16
      %v4259 = vpop.permute.xlu0 %4258
      %4260 = vrot.lane.b32.xlu0 %v4169, 16
      %v4261 = vpop.permute.xlu0 %4260
      %4262 = vrot.lane.b32.xlu0 %v4170, 16
      %v4263 = vpop.permute.xlu0 %4262
      %4264 = vrot.lane.b32.xlu0 %v4171, 16
      %v4265 = vpop.permute.xlu0 %4264
      %4266 = vrot.lane.b32.xlu0 %v4172, 16
      %v4267 = vpop.permute.xlu0 %4266
      %4268 = vrot.lane.b32.xlu0 %v4173, 16
      %v4269 = vpop.permute.xlu0 %4268
      %4270 = vrot.lane.b32.xlu0 %v4174, 16
      %v4271 = vpop.permute.xlu0 %4270
      %4272 = vrot.lane.b32.xlu0 %v4241, 16
      %v4273 = vpop.permute.xlu0 %4272
      %4290 = vst.msk [vmem:[#allocation4] sm:$0xff] %vm1911, %v4243
      %4291 = vst.msk [vmem:[#allocation4 + $0x8] sm:$0xff] %vm1911, %v4245
      %4292 = vst.msk [vmem:[#allocation4 + $0x10] sm:$0xff] %vm1911, %v4247
      %4293 = vst.msk [vmem:[#allocation4 + $0x18] sm:$0xff] %vm1911, %v4249
      %4294 = vst.msk [vmem:[#allocation4 + $0x20] sm:$0xff] %vm1911, %v4251
      %4295 = vst.msk [vmem:[#allocation4 + $0x28] sm:$0xff] %vm1911, %v4253
      %4296 = vst.msk [vmem:[#allocation4 + $0x30] sm:$0xff] %vm1911, %v4255
      %4297 = vst.msk [vmem:[#allocation4 + $0x38] sm:$0xff] %vm1911, %v4257
      %4298 = vst.msk [vmem:[#allocation4 + $0x40] sm:$0xff] %vm1911, %v4259
      %4299 = vst.msk [vmem:[#allocation4 + $0x48] sm:$0xff] %vm1911, %v4261
      %4300 = vst.msk [vmem:[#allocation4 + $0x50] sm:$0xff] %vm1911, %v4263
      %4301 = vst.msk [vmem:[#allocation4 + $0x58] sm:$0xff] %vm1911, %v4265
      %4302 = vst.msk [vmem:[#allocation4 + $0x60] sm:$0xff] %vm1911, %v4267
      %4303 = vst.msk [vmem:[#allocation4 + $0x68] sm:$0xff] %vm1911, %v4269
      %4304 = vst.msk [vmem:[#allocation4 + $0x70] sm:$0xff] %vm1911, %v4271
      %4305 = vst.msk [vmem:[#allocation4 + $0x78] sm:$0xff] %vm1911, %v4273
      %v4306 = vunpack.c.l.b16 %v4116
      %v4307 = vunpack.c.l.b16 %v4126
      %v4308 = vpack.c.b16 %v4307, %v4306
      %4309 = vrot.lane.b32.xlu0 %v4161, 28
      %v4310 = vpop.permute.xlu0 %4309
      %4311 = vrot.lane.b32.xlu0 %v4162, 28
      %v4312 = vpop.permute.xlu0 %4311
      %4313 = vrot.lane.b32.xlu0 %v4163, 28
      %v4314 = vpop.permute.xlu0 %4313
      %4315 = vrot.lane.b32.xlu0 %v4164, 28
      %v4316 = vpop.permute.xlu0 %4315
      %4317 = vrot.lane.b32.xlu0 %v4165, 28
      %v4318 = vpop.permute.xlu0 %4317
      %4319 = vrot.lane.b32.xlu0 %v4166, 28
      %v4320 = vpop.permute.xlu0 %4319
      %4321 = vrot.lane.b32.xlu0 %v4167, 28
      %v4322 = vpop.permute.xlu0 %4321
      %4323 = vrot.lane.b32.xlu0 %v4168, 28
      %v4324 = vpop.permute.xlu0 %4323
      %4325 = vrot.lane.b32.xlu0 %v4169, 28
      %v4326 = vpop.permute.xlu0 %4325
      %4327 = vrot.lane.b32.xlu0 %v4170, 28
      %v4328 = vpop.permute.xlu0 %4327
      %4329 = vrot.lane.b32.xlu0 %v4171, 28
      %v4330 = vpop.permute.xlu0 %4329
      %4331 = vrot.lane.b32.xlu0 %v4172, 28
      %v4332 = vpop.permute.xlu0 %4331
      %4333 = vrot.lane.b32.xlu0 %v4173, 28
      %v4334 = vpop.permute.xlu0 %4333
      %4335 = vrot.lane.b32.xlu0 %v4174, 28
      %v4336 = vpop.permute.xlu0 %4335
      %4337 = vrot.lane.b32.xlu0 %v4241, 28
      %v4338 = vpop.permute.xlu0 %4337
      %4339 = vrot.lane.b32.xlu0 %v4308, 28
      %v4340 = vpop.permute.xlu0 %4339
      %4357 = vst.msk [vmem:[#allocation4] sm:$0xff] %vm1979, %v4310
      %4358 = vst.msk [vmem:[#allocation4 + $0x8] sm:$0xff] %vm1979, %v4312
      %4359 = vst.msk [vmem:[#allocation4 + $0x10] sm:$0xff] %vm1979, %v4314
      %4360 = vst.msk [vmem:[#allocation4 + $0x18] sm:$0xff] %vm1979, %v4316
      %4361 = vst.msk [vmem:[#allocation4 + $0x20] sm:$0xff] %vm1979, %v4318
      %4362 = vst.msk [vmem:[#allocation4 + $0x28] sm:$0xff] %vm1979, %v4320
      %4363 = vst.msk [vmem:[#allocation4 + $0x30] sm:$0xff] %vm1979, %v4322
      %4364 = vst.msk [vmem:[#allocation4 + $0x38] sm:$0xff] %vm1979, %v4324
      %4365 = vst.msk [vmem:[#allocation4 + $0x40] sm:$0xff] %vm1979, %v4326
      %4366 = vst.msk [vmem:[#allocation4 + $0x48] sm:$0xff] %vm1979, %v4328
      %4367 = vst.msk [vmem:[#allocation4 + $0x50] sm:$0xff] %vm1979, %v4330
      %4368 = vst.msk [vmem:[#allocation4 + $0x58] sm:$0xff] %vm1979, %v4332
      %4369 = vst.msk [vmem:[#allocation4 + $0x60] sm:$0xff] %vm1979, %v4334
      %4370 = vst.msk [vmem:[#allocation4 + $0x68] sm:$0xff] %vm1979, %v4336
      %4371 = vst.msk [vmem:[#allocation4 + $0x70] sm:$0xff] %vm1979, %v4338
      %4372 = vst.msk [vmem:[#allocation4 + $0x78] sm:$0xff] %vm1979, %v4340
      %v4373 = vld [vmem:[#allocation3] sm:$0xe]
      %v4374 = vld [vmem:[#allocation3 + $0x4] sm:$0xf]
      %v4375 = vld [vmem:[#allocation3 + $0x8] sm:$0x1]
      %v4376 = vld [vmem:[#allocation3 + $0xc] sm:$0xe]
      %v4377 = vld [vmem:[#allocation3 + $0x10] sm:$0xf]
      %v4378 = vld [vmem:[#allocation3 + $0x14] sm:$0x1]
      %v4379 = vld [vmem:[#allocation3 + $0x18] sm:$0xe]
      %v4380 = vld [vmem:[#allocation3 + $0x1c] sm:$0xf]
      %v4381 = vld [vmem:[#allocation3 + $0x20] sm:$0x1]
      %v4382 = vld [vmem:[#allocation3 + $0x24] sm:$0xe]
      %v4383 = vld [vmem:[#allocation3 + $0x28] sm:$0xf]
      %v4384 = vld [vmem:[#allocation3 + $0x2c] sm:$0x1]
      %v4385 = vld [vmem:[#allocation3 + $0x30] sm:$0xe]
      %v4386 = vld [vmem:[#allocation3 + $0x34] sm:$0xf]
      %v4387 = vld [vmem:[#allocation3 + $0x38] sm:$0x1]
      %v4388 = vld [vmem:[#allocation3 + $0x3c] sm:$0xe]
      %v4389 = vld [vmem:[#allocation3 + $0x40] sm:$0xf]
      %v4390 = vld [vmem:[#allocation3 + $0x44] sm:$0x1]
      %v4391 = vld [vmem:[#allocation3 + $0x48] sm:$0xe]
      %v4392 = vld [vmem:[#allocation3 + $0x4c] sm:$0xf]
      %v4393 = vld [vmem:[#allocation3 + $0x50] sm:$0x1]
      %v4394 = vld [vmem:[#allocation3 + $0x54] sm:$0xe]
      %v4395 = vld [vmem:[#allocation3 + $0x58] sm:$0xf]
      %v4396 = vld [vmem:[#allocation3 + $0x5c] sm:$0x1]
      %v4397 = vld [vmem:[#allocation3 + $0x60] sm:$0xe]
      %v4398 = vld [vmem:[#allocation3 + $0x64] sm:$0xf]
      %v4399 = vld [vmem:[#allocation3 + $0x68] sm:$0x1]
      %v4400 = vld [vmem:[#allocation3 + $0x6c] sm:$0xe]
      %v4401 = vld [vmem:[#allocation3 + $0x70] sm:$0xf]
      %v4402 = vld [vmem:[#allocation3 + $0x74] sm:$0x1]
      %v4403 = vld [vmem:[#allocation3 + $0x78] sm:$0xe]
      %v4404 = vld [vmem:[#allocation3 + $0x7c] sm:$0xf]
      %v4405 = vld [vmem:[#allocation3 + $0x80] sm:$0x1]
      %v4406 = vld [vmem:[#allocation3 + $0x84] sm:$0xe]
      %v4407 = vld [vmem:[#allocation3 + $0x88] sm:$0xf]
      %v4408 = vld [vmem:[#allocation3 + $0x8c] sm:$0x1]
      %v4409 = vld [vmem:[#allocation3 + $0x90] sm:$0xe]
      %v4410 = vld [vmem:[#allocation3 + $0x94] sm:$0xf]
      %v4411 = vld [vmem:[#allocation3 + $0x98] sm:$0x1]
      %v4412 = vld [vmem:[#allocation3 + $0x9c] sm:$0xe]
      %v4413 = vld [vmem:[#allocation3 + $0xa0] sm:$0xf]
      %v4414 = vld [vmem:[#allocation3 + $0xa4] sm:$0x1]
      %v4415 = vld [vmem:[#allocation3 + $0xa8] sm:$0xe]
      %v4416 = vld [vmem:[#allocation3 + $0xac] sm:$0xf]
      %v4417 = vld [vmem:[#allocation3 + $0xb0] sm:$0x1]
      %v4418 = vld [vmem:[#allocation3 + $0xb4] sm:$0xe]
      %v4419 = vld [vmem:[#allocation3 + $0xb8] sm:$0xf]
      %v4420 = vld [vmem:[#allocation3 + $0xbc] sm:$0x1]
      %v4421 = vld [vmem:[#allocation3 + $0xc0] sm:$0xe]
      %v4422 = vld [vmem:[#allocation3 + $0xc4] sm:$0xf]
      %v4423 = vld [vmem:[#allocation3 + $0xc8] sm:$0x1]
      %v4424 = vld [vmem:[#allocation3 + $0xcc] sm:$0xe]
      %v4425 = vld [vmem:[#allocation3 + $0xd0] sm:$0xf]
      %v4426 = vld [vmem:[#allocation3 + $0xd4] sm:$0x1]
      %v4481 = vrot.slane %v4373, 5
      %v4482 = vrot.slane %v4481, 4
      %v4483 = vrot.slane %v4374, 5
      %v4484 = vsel %vm2106, %v4482, %v4483
      %v4485 = vrot.slane %v4483, 4
      %v4486 = vrot.slane %v4375, 5
      %v4487 = vsel %vm2106, %v4485, %v4486
      %v4488 = vrot.slane %v4376, 5
      %v4489 = vrot.slane %v4488, 4
      %v4490 = vrot.slane %v4377, 5
      %v4491 = vsel %vm2106, %v4489, %v4490
      %v4492 = vrot.slane %v4490, 4
      %v4493 = vrot.slane %v4378, 5
      %v4494 = vsel %vm2106, %v4492, %v4493
      %v4495 = vrot.slane %v4379, 5
      %v4496 = vrot.slane %v4495, 4
      %v4497 = vrot.slane %v4380, 5
      %v4498 = vsel %vm2106, %v4496, %v4497
      %v4499 = vrot.slane %v4497, 4
      %v4500 = vrot.slane %v4381, 5
      %v4501 = vsel %vm2106, %v4499, %v4500
      %v4502 = vrot.slane %v4382, 5
      %v4503 = vrot.slane %v4502, 4
      %v4504 = vrot.slane %v4383, 5
      %v4505 = vsel %vm2106, %v4503, %v4504
      %v4506 = vrot.slane %v4504, 4
      %v4507 = vrot.slane %v4384, 5
      %v4508 = vsel %vm2106, %v4506, %v4507
      %v4509 = vrot.slane %v4385, 5
      %v4510 = vrot.slane %v4509, 4
      %v4511 = vrot.slane %v4386, 5
      %v4512 = vsel %vm2106, %v4510, %v4511
      %v4513 = vrot.slane %v4511, 4
      %v4514 = vrot.slane %v4387, 5
      %v4515 = vsel %vm2106, %v4513, %v4514
      %v4516 = vrot.slane %v4388, 5
      %v4517 = vrot.slane %v4516, 4
      %v4518 = vrot.slane %v4389, 5
      %v4519 = vsel %vm2106, %v4517, %v4518
      %v4520 = vrot.slane %v4518, 4
      %v4521 = vrot.slane %v4390, 5
      %v4522 = vsel %vm2106, %v4520, %v4521
      %v4523 = vrot.slane %v4391, 5
      %v4524 = vrot.slane %v4523, 4
      %v4525 = vrot.slane %v4392, 5
      %v4526 = vsel %vm2106, %v4524, %v4525
      %v4527 = vrot.slane %v4525, 4
      %v4528 = vrot.slane %v4393, 5
      %v4529 = vsel %vm2106, %v4527, %v4528
      %v4530 = vrot.slane %v4394, 5
      %v4531 = vrot.slane %v4530, 4
      %v4532 = vrot.slane %v4395, 5
      %v4533 = vsel %vm2106, %v4531, %v4532
      %v4534 = vrot.slane %v4532, 4
      %v4535 = vrot.slane %v4396, 5
      %v4536 = vsel %vm2106, %v4534, %v4535
      %v4537 = vrot.slane %v4397, 5
      %v4538 = vrot.slane %v4537, 4
      %v4539 = vrot.slane %v4398, 5
      %v4540 = vsel %vm2106, %v4538, %v4539
      %v4541 = vrot.slane %v4539, 4
      %v4542 = vrot.slane %v4399, 5
      %v4543 = vsel %vm2106, %v4541, %v4542
      %v4544 = vrot.slane %v4400, 5
      %v4545 = vrot.slane %v4544, 4
      %v4546 = vrot.slane %v4401, 5
      %v4547 = vsel %vm2106, %v4545, %v4546
      %v4548 = vrot.slane %v4546, 4
      %v4549 = vrot.slane %v4402, 5
      %v4550 = vsel %vm2106, %v4548, %v4549
      %v4551 = vrot.slane %v4403, 5
      %v4552 = vrot.slane %v4551, 4
      %v4553 = vrot.slane %v4404, 5
      %v4554 = vsel %vm2106, %v4552, %v4553
      %v4555 = vrot.slane %v4553, 4
      %v4556 = vrot.slane %v4405, 5
      %v4557 = vsel %vm2106, %v4555, %v4556
      %v4558 = vrot.slane %v4406, 5
      %v4559 = vrot.slane %v4558, 4
      %v4560 = vrot.slane %v4407, 5
      %v4561 = vsel %vm2106, %v4559, %v4560
      %v4562 = vrot.slane %v4560, 4
      %v4563 = vrot.slane %v4408, 5
      %v4564 = vsel %vm2106, %v4562, %v4563
      %v4565 = vrot.slane %v4409, 5
      %v4566 = vrot.slane %v4565, 4
      %v4567 = vrot.slane %v4410, 5
      %v4568 = vsel %vm2106, %v4566, %v4567
      %v4569 = vrot.slane %v4567, 4
      %v4570 = vrot.slane %v4411, 5
      %v4571 = vsel %vm2106, %v4569, %v4570
      %v4572 = vrot.slane %v4412, 5
      %v4573 = vrot.slane %v4572, 4
      %v4574 = vrot.slane %v4413, 5
      %v4575 = vsel %vm2106, %v4573, %v4574
      %v4576 = vrot.slane %v4574, 4
      %v4577 = vrot.slane %v4414, 5
      %v4578 = vsel %vm2106, %v4576, %v4577
      %v4579 = vrot.slane %v4415, 5
      %v4580 = vrot.slane %v4579, 4
      %v4581 = vrot.slane %v4416, 5
      %v4582 = vsel %vm2106, %v4580, %v4581
      %v4583 = vrot.slane %v4581, 4
      %v4584 = vrot.slane %v4417, 5
      %v4585 = vsel %vm2106, %v4583, %v4584
      %v4586 = vrot.slane %v4418, 5
      %v4587 = vrot.slane %v4586, 4
      %v4588 = vrot.slane %v4419, 5
      %v4589 = vsel %vm2106, %v4587, %v4588
      %v4590 = vrot.slane %v4588, 4
      %v4591 = vrot.slane %v4420, 5
      %v4592 = vsel %vm2106, %v4590, %v4591
      %v4593 = vrot.slane %v4421, 5
      %v4594 = vrot.slane %v4593, 4
      %v4595 = vrot.slane %v4422, 5
      %v4596 = vsel %vm2106, %v4594, %v4595
      %v4597 = vrot.slane %v4595, 4
      %v4598 = vrot.slane %v4423, 5
      %v4599 = vsel %vm2106, %v4597, %v4598
      %v4600 = vrot.slane %v4424, 5
      %v4601 = vrot.slane %v4600, 4
      %v4602 = vrot.slane %v4425, 5
      %v4603 = vsel %vm2106, %v4601, %v4602
      %v4604 = vrot.slane %v4602, 4
      %v4605 = vrot.slane %v4426, 5
      %v4606 = vsel %vm2106, %v4604, %v4605
      %v4607 = vunpack.c.l.b16 %v4484
      %v4608 = vunpack.c.l.b16 %v4487
      %v4609 = vunpack.c.l.b16 %v4491
      %v4610 = vunpack.c.l.b16 %v4494
      %v4611 = vunpack.c.l.b16 %v4498
      %v4612 = vunpack.c.l.b16 %v4501
      %v4613 = vunpack.c.l.b16 %v4505
      %v4614 = vunpack.c.l.b16 %v4508
      %v4615 = vunpack.c.l.b16 %v4512
      %v4616 = vunpack.c.l.b16 %v4515
      %v4617 = vunpack.c.l.b16 %v4519
      %v4618 = vunpack.c.l.b16 %v4522
      %v4619 = vunpack.c.l.b16 %v4526
      %v4620 = vunpack.c.l.b16 %v4529
      %v4621 = vunpack.c.l.b16 %v4533
      %v4622 = vunpack.c.l.b16 %v4536
      %v4623 = vunpack.c.l.b16 %v4540
      %v4624 = vunpack.c.l.b16 %v4543
      %v4625 = vunpack.c.l.b16 %v4547
      %v4626 = vunpack.c.l.b16 %v4550
      %v4627 = vunpack.c.l.b16 %v4554
      %v4628 = vunpack.c.l.b16 %v4557
      %v4629 = vunpack.c.l.b16 %v4561
      %v4630 = vunpack.c.l.b16 %v4564
      %v4631 = vunpack.c.l.b16 %v4568
      %v4632 = vunpack.c.l.b16 %v4571
      %v4633 = vunpack.c.l.b16 %v4575
      %v4634 = vunpack.c.l.b16 %v4578
      %v4635 = vunpack.c.l.b16 %v4582
      %v4636 = vunpack.c.l.b16 %v4585
      %v4637 = vunpack.c.l.b16 %v4589
      %v4638 = vunpack.c.l.b16 %v4592
      %v4639 = vpack.c.b16 %v4608, %v4607
      %v4640 = vpack.c.b16 %v4610, %v4609
      %v4641 = vpack.c.b16 %v4612, %v4611
      %v4642 = vpack.c.b16 %v4614, %v4613
      %v4643 = vpack.c.b16 %v4616, %v4615
      %v4644 = vpack.c.b16 %v4618, %v4617
      %v4645 = vpack.c.b16 %v4620, %v4619
      %v4646 = vpack.c.b16 %v4622, %v4621
      %v4647 = vpack.c.b16 %v4624, %v4623
      %v4648 = vpack.c.b16 %v4626, %v4625
      %v4649 = vpack.c.b16 %v4628, %v4627
      %v4650 = vpack.c.b16 %v4630, %v4629
      %v4651 = vpack.c.b16 %v4632, %v4631
      %v4652 = vpack.c.b16 %v4634, %v4633
      %v4653 = vpack.c.b16 %v4636, %v4635
      %v4654 = vpack.c.b16 %v4638, %v4637
      %4655 = vrot.lane.b32.xlu0 %v4639, 8
      %v4656 = vpop.permute.xlu0 %4655
      %4657 = vrot.lane.b32.xlu0 %v4640, 8
      %v4658 = vpop.permute.xlu0 %4657
      %4659 = vrot.lane.b32.xlu0 %v4641, 8
      %v4660 = vpop.permute.xlu0 %4659
      %4661 = vrot.lane.b32.xlu0 %v4642, 8
      %v4662 = vpop.permute.xlu0 %4661
      %4663 = vrot.lane.b32.xlu0 %v4643, 8
      %v4664 = vpop.permute.xlu0 %4663
      %4665 = vrot.lane.b32.xlu0 %v4644, 8
      %v4666 = vpop.permute.xlu0 %4665
      %4667 = vrot.lane.b32.xlu0 %v4645, 8
      %v4668 = vpop.permute.xlu0 %4667
      %4669 = vrot.lane.b32.xlu0 %v4646, 8
      %v4670 = vpop.permute.xlu0 %4669
      %4671 = vrot.lane.b32.xlu0 %v4647, 8
      %v4672 = vpop.permute.xlu0 %4671
      %4673 = vrot.lane.b32.xlu0 %v4648, 8
      %v4674 = vpop.permute.xlu0 %4673
      %4675 = vrot.lane.b32.xlu0 %v4649, 8
      %v4676 = vpop.permute.xlu0 %4675
      %4677 = vrot.lane.b32.xlu0 %v4650, 8
      %v4678 = vpop.permute.xlu0 %4677
      %4679 = vrot.lane.b32.xlu0 %v4651, 8
      %v4680 = vpop.permute.xlu0 %4679
      %4681 = vrot.lane.b32.xlu0 %v4652, 8
      %v4682 = vpop.permute.xlu0 %4681
      %4683 = vrot.lane.b32.xlu0 %v4653, 8
      %v4684 = vpop.permute.xlu0 %4683
      %4685 = vrot.lane.b32.xlu0 %v4654, 8
      %v4686 = vpop.permute.xlu0 %4685
      %4703 = vst.msk [vmem:[#allocation4] sm:$0xff] %vm2329, %v4656
      %4704 = vst.msk [vmem:[#allocation4 + $0x8] sm:$0xff] %vm2329, %v4658
      %4705 = vst.msk [vmem:[#allocation4 + $0x10] sm:$0xff] %vm2329, %v4660
      %4706 = vst.msk [vmem:[#allocation4 + $0x18] sm:$0xff] %vm2329, %v4662
      %4707 = vst.msk [vmem:[#allocation4 + $0x20] sm:$0xff] %vm2329, %v4664
      %4708 = vst.msk [vmem:[#allocation4 + $0x28] sm:$0xff] %vm2329, %v4666
      %4709 = vst.msk [vmem:[#allocation4 + $0x30] sm:$0xff] %vm2329, %v4668
      %4710 = vst.msk [vmem:[#allocation4 + $0x38] sm:$0xff] %vm2329, %v4670
      %4711 = vst.msk [vmem:[#allocation4 + $0x40] sm:$0xff] %vm2329, %v4672
      %4712 = vst.msk [vmem:[#allocation4 + $0x48] sm:$0xff] %vm2329, %v4674
      %4713 = vst.msk [vmem:[#allocation4 + $0x50] sm:$0xff] %vm2329, %v4676
      %4714 = vst.msk [vmem:[#allocation4 + $0x58] sm:$0xff] %vm2329, %v4678
      %4715 = vst.msk [vmem:[#allocation4 + $0x60] sm:$0xff] %vm2329, %v4680
      %4716 = vst.msk [vmem:[#allocation4 + $0x68] sm:$0xff] %vm2329, %v4682
      %4717 = vst.msk [vmem:[#allocation4 + $0x70] sm:$0xff] %vm2329, %v4684
      %4718 = vst.msk [vmem:[#allocation4 + $0x78] sm:$0xff] %vm2329, %v4686
      %v4719 = vunpack.c.l.b16 %v4596
      %v4720 = vunpack.c.l.b16 %v4599
      %v4721 = vpack.c.b16 %v4720, %v4719
      %4722 = vrot.lane.b32.xlu0 %v4640, 20
      %v4723 = vpop.permute.xlu0 %4722
      %4724 = vrot.lane.b32.xlu0 %v4641, 20
      %v4725 = vpop.permute.xlu0 %4724
      %4726 = vrot.lane.b32.xlu0 %v4642, 20
      %v4727 = vpop.permute.xlu0 %4726
      %4728 = vrot.lane.b32.xlu0 %v4643, 20
      %v4729 = vpop.permute.xlu0 %4728
      %4730 = vrot.lane.b32.xlu0 %v4644, 20
      %v4731 = vpop.permute.xlu0 %4730
      %4732 = vrot.lane.b32.xlu0 %v4645, 20
      %v4733 = vpop.permute.xlu0 %4732
      %4734 = vrot.lane.b32.xlu0 %v4646, 20
      %v4735 = vpop.permute.xlu0 %4734
      %4736 = vrot.lane.b32.xlu0 %v4647, 20
      %v4737 = vpop.permute.xlu0 %4736
      %4738 = vrot.lane.b32.xlu0 %v4648, 20
      %v4739 = vpop.permute.xlu0 %4738
      %4740 = vrot.lane.b32.xlu0 %v4649, 20
      %v4741 = vpop.permute.xlu0 %4740
      %4742 = vrot.lane.b32.xlu0 %v4650, 20
      %v4743 = vpop.permute.xlu0 %4742
      %4744 = vrot.lane.b32.xlu0 %v4651, 20
      %v4745 = vpop.permute.xlu0 %4744
      %4746 = vrot.lane.b32.xlu0 %v4652, 20
      %v4747 = vpop.permute.xlu0 %4746
      %4748 = vrot.lane.b32.xlu0 %v4653, 20
      %v4749 = vpop.permute.xlu0 %4748
      %4750 = vrot.lane.b32.xlu0 %v4654, 20
      %v4751 = vpop.permute.xlu0 %4750
      %4752 = vrot.lane.b32.xlu0 %v4721, 20
      %v4753 = vpop.permute.xlu0 %4752
      %4770 = vst.msk [vmem:[#allocation4] sm:$0xff] %vm2397, %v4723
      %4771 = vst.msk [vmem:[#allocation4 + $0x8] sm:$0xff] %vm2397, %v4725
      %4772 = vst.msk [vmem:[#allocation4 + $0x10] sm:$0xff] %vm2397, %v4727
      %4773 = vst.msk [vmem:[#allocation4 + $0x18] sm:$0xff] %vm2397, %v4729
      %4774 = vst.msk [vmem:[#allocation4 + $0x20] sm:$0xff] %vm2397, %v4731
      %4775 = vst.msk [vmem:[#allocation4 + $0x28] sm:$0xff] %vm2397, %v4733
      %4776 = vst.msk [vmem:[#allocation4 + $0x30] sm:$0xff] %vm2397, %v4735
      %4777 = vst.msk [vmem:[#allocation4 + $0x38] sm:$0xff] %vm2397, %v4737
      %4778 = vst.msk [vmem:[#allocation4 + $0x40] sm:$0xff] %vm2397, %v4739
      %4779 = vst.msk [vmem:[#allocation4 + $0x48] sm:$0xff] %vm2397, %v4741
      %4780 = vst.msk [vmem:[#allocation4 + $0x50] sm:$0xff] %vm2397, %v4743
      %4781 = vst.msk [vmem:[#allocation4 + $0x58] sm:$0xff] %vm2397, %v4745
      %4782 = vst.msk [vmem:[#allocation4 + $0x60] sm:$0xff] %vm2397, %v4747
      %4783 = vst.msk [vmem:[#allocation4 + $0x68] sm:$0xff] %vm2397, %v4749
      %4784 = vst.msk [vmem:[#allocation4 + $0x70] sm:$0xff] %vm2397, %v4751
      %4785 = vst.msk [vmem:[#allocation4 + $0x78] sm:$0xff] %vm2397, %v4753
      %v4786 = vunpack.c.l.b16 %v4603
      %v4787 = vunpack.c.l.b16 %v4606
      %v4788 = vpack.c.b16 %v4787, %v4786
      %4789 = vrot.lane.b32.xlu0 %v4641, 32
      %v4790 = vpop.permute.xlu0 %4789
      %4791 = vrot.lane.b32.xlu0 %v4642, 32
      %v4792 = vpop.permute.xlu0 %4791
      %4793 = vrot.lane.b32.xlu0 %v4643, 32
      %v4794 = vpop.permute.xlu0 %4793
      %4795 = vrot.lane.b32.xlu0 %v4644, 32
      %v4796 = vpop.permute.xlu0 %4795
      %4797 = vrot.lane.b32.xlu0 %v4645, 32
      %v4798 = vpop.permute.xlu0 %4797
      %4799 = vrot.lane.b32.xlu0 %v4646, 32
      %v4800 = vpop.permute.xlu0 %4799
      %4801 = vrot.lane.b32.xlu0 %v4647, 32
      %v4802 = vpop.permute.xlu0 %4801
      %4803 = vrot.lane.b32.xlu0 %v4648, 32
      %v4804 = vpop.permute.xlu0 %4803
      %4805 = vrot.lane.b32.xlu0 %v4649, 32
      %v4806 = vpop.permute.xlu0 %4805
      %4807 = vrot.lane.b32.xlu0 %v4650, 32
      %v4808 = vpop.permute.xlu0 %4807
      %4809 = vrot.lane.b32.xlu0 %v4651, 32
      %v4810 = vpop.permute.xlu0 %4809
      %4811 = vrot.lane.b32.xlu0 %v4652, 32
      %v4812 = vpop.permute.xlu0 %4811
      %4813 = vrot.lane.b32.xlu0 %v4653, 32
      %v4814 = vpop.permute.xlu0 %4813
      %4815 = vrot.lane.b32.xlu0 %v4654, 32
      %v4816 = vpop.permute.xlu0 %4815
      %4817 = vrot.lane.b32.xlu0 %v4721, 32
      %v4818 = vpop.permute.xlu0 %4817
      %4819 = vrot.lane.b32.xlu0 %v4788, 32
      %v4820 = vpop.permute.xlu0 %4819
      %4837 = vst.msk [vmem:[#allocation4] sm:$0xff] %vm2465, %v4790
      %4838 = vst.msk [vmem:[#allocation4 + $0x8] sm:$0xff] %vm2465, %v4792
      %4839 = vst.msk [vmem:[#allocation4 + $0x10] sm:$0xff] %vm2465, %v4794
      %4840 = vst.msk [vmem:[#allocation4 + $0x18] sm:$0xff] %vm2465, %v4796
      %4841 = vst.msk [vmem:[#allocation4 + $0x20] sm:$0xff] %vm2465, %v4798
      %4842 = vst.msk [vmem:[#allocation4 + $0x28] sm:$0xff] %vm2465, %v4800
      %4843 = vst.msk [vmem:[#allocation4 + $0x30] sm:$0xff] %vm2465, %v4802
      %4844 = vst.msk [vmem:[#allocation4 + $0x38] sm:$0xff] %vm2465, %v4804
      %4845 = vst.msk [vmem:[#allocation4 + $0x40] sm:$0xff] %vm2465, %v4806
      %4846 = vst.msk [vmem:[#allocation4 + $0x48] sm:$0xff] %vm2465, %v4808
      %4847 = vst.msk [vmem:[#allocation4 + $0x50] sm:$0xff] %vm2465, %v4810
      %4848 = vst.msk [vmem:[#allocation4 + $0x58] sm:$0xff] %vm2465, %v4812
      %4849 = vst.msk [vmem:[#allocation4 + $0x60] sm:$0xff] %vm2465, %v4814
      %4850 = vst.msk [vmem:[#allocation4 + $0x68] sm:$0xff] %vm2465, %v4816
      %4851 = vst.msk [vmem:[#allocation4 + $0x70] sm:$0xff] %vm2465, %v4818
      %4852 = vst.msk [vmem:[#allocation4 + $0x78] sm:$0xff] %vm2465, %v4820
      %v4853 = vld [vmem:[#allocation4] sm:$0xff]
      %v4854 = vld [vmem:[#allocation4 + $0x8] sm:$0xff]
      %v4855 = vld [vmem:[#allocation4 + $0x10] sm:$0xff]
      %v4856 = vld [vmem:[#allocation4 + $0x18] sm:$0xff]
      %v4857 = vld [vmem:[#allocation4 + $0x20] sm:$0xff]
      %v4858 = vld [vmem:[#allocation4 + $0x28] sm:$0xff]
      %v4859 = vld [vmem:[#allocation4 + $0x30] sm:$0xff]
      %v4860 = vld [vmem:[#allocation4 + $0x38] sm:$0xff]
      %v4861 = vld [vmem:[#allocation4 + $0x40] sm:$0xff]
      %v4862 = vld [vmem:[#allocation4 + $0x48] sm:$0xff]
      %v4863 = vld [vmem:[#allocation4 + $0x50] sm:$0xff]
      %v4864 = vld [vmem:[#allocation4 + $0x58] sm:$0xff]
      %v4865 = vld [vmem:[#allocation4 + $0x60] sm:$0xff]
      %v4866 = vld [vmem:[#allocation4 + $0x68] sm:$0xff]
      %v4867 = vld [vmem:[#allocation4 + $0x70] sm:$0xff]
      %v4868 = vld [vmem:[#allocation4 + $0x78] sm:$0xff]
      %v4869 = vld [vmem:[%s4] sm:$0xf]
      %v4870 = vld [vmem:[%s4 + $0x4] sm:$0xf]
      %v4871 = vld [vmem:[%s4 + $0x8] sm:$0xf]
      %v4872 = vld [vmem:[%s4 + $0xc] sm:$0xf]
      %v4873 = vld [vmem:[%s4 + $0x10] sm:$0xf]
      %v4874 = vld [vmem:[%s4 + $0x14] sm:$0xf]
      %v4875 = vld [vmem:[%s4 + $0x18] sm:$0xf]
      %v4876 = vld [vmem:[%s4 + $0x1c] sm:$0xf]
      %v4877 = vld [vmem:[%s4 + $0x20] sm:$0xf]
      %v4878 = vld [vmem:[%s4 + $0x24] sm:$0xf]
      %v4879 = vld [vmem:[%s4 + $0x28] sm:$0xf]
      %v4880 = vld [vmem:[%s4 + $0x2c] sm:$0xf]
      %v4881 = vld [vmem:[%s4 + $0x30] sm:$0xf]
      %v4882 = vld [vmem:[%s4 + $0x34] sm:$0xf]
      %v4883 = vld [vmem:[%s4 + $0x38] sm:$0xf]
      %v4884 = vld [vmem:[%s4 + $0x3c] sm:$0xf]
      %v4885 = vld [vmem:[%s5] sm:$0x1]
      %v4887 = vlaneseq
      %v4888 = vshrl.u32 %v4887, 7
      %v4889 = vsub.s32 0, %v4888
      %v4890 = vrot.slane %v4885, %v4889
      %v4908 = vunpack.c.l.b16 %v4869
      %v4909 = vunpack.c.l.b16 %v4870
      %v4910 = vunpack.c.l.b16 %v4871
      %v4911 = vunpack.c.l.b16 %v4872
      %v4912 = vunpack.c.l.b16 %v4873
      %v4913 = vunpack.c.l.b16 %v4874
      %v4914 = vunpack.c.l.b16 %v4875
      %v4915 = vunpack.c.l.b16 %v4876
      %v4916 = vunpack.c.l.b16 %v4877
      %v4917 = vunpack.c.l.b16 %v4878
      %v4918 = vunpack.c.l.b16 %v4879
      %v4919 = vunpack.c.l.b16 %v4880
      %v4920 = vunpack.c.l.b16 %v4881
      %v4921 = vunpack.c.l.b16 %v4882
      %v4922 = vunpack.c.l.b16 %v4883
      %v4923 = vunpack.c.l.b16 %v4884
      %v4924 = vpack.c.b16 %v4909, %v4908
      %v4925 = vpack.c.b16 %v4911, %v4910
      %v4926 = vpack.c.b16 %v4913, %v4912
      %v4927 = vpack.c.b16 %v4915, %v4914
      %v4928 = vpack.c.b16 %v4917, %v4916
      %v4929 = vpack.c.b16 %v4919, %v4918
      %v4930 = vpack.c.b16 %v4921, %v4920
      %v4931 = vpack.c.b16 %v4923, %v4922
      %4940 = vmatprep.subr.bf16.mxu0 0
      %4941 = vmatpush1.bf16.msra.mxu0 %v4924
      %4942 = vmatprep.subr.bf16.mxu0 0
      %4943 = vmatpush1.bf16.msra.mxu0 %v4925
      %4944 = vmatprep.subr.bf16.mxu0 0
      %4945 = vmatpush1.bf16.msra.mxu0 %v4926
      %4946 = vmatprep.subr.bf16.mxu0 0
      %4947 = vmatpush1.bf16.msra.mxu0 %v4927
      %4948 = vmatprep.subr.bf16.mxu0 0
      %4949 = vmatpush1.bf16.msra.mxu0 %v4928
      %4950 = vmatprep.subr.bf16.mxu0 0
      %4951 = vmatpush1.bf16.msra.mxu0 %v4929
      %4952 = vmatprep.subr.bf16.mxu0 0
      %4953 = vmatpush1.bf16.msra.mxu0 %v4930
      %4954 = vmatprep.subr.bf16.mxu0 0
      %4955 = vmatpush1.bf16.msra.mxu0 %v4931
      %4956 = vmatprep.subr.bf16.mxu0 0
      %4957 = vmatpush1.bf16.msra.mxu0 0
      %4958 = vmatprep.subr.bf16.mxu0 0
      %4959 = vmatpush1.bf16.msra.mxu0 0
      %4960 = vmatprep.subr.bf16.mxu0 0
      %4961 = vmatpush1.bf16.msra.mxu0 0
      %4962 = vmatprep.subr.bf16.mxu0 0
      %4963 = vmatpush1.bf16.msra.mxu0 0
      %4964 = vmatprep.subr.bf16.mxu0 0
      %4965 = vmatpush1.bf16.msra.mxu0 0
      %4966 = vmatprep.subr.bf16.mxu0 0
      %4967 = vmatpush1.bf16.msra.mxu0 0
      %4968 = vmatprep.subr.bf16.mxu0 0
      %4969 = vmatpush1.bf16.msra.mxu0 0
      %4970 = vmatprep.subr.bf16.mxu0 0
      %4971 = vmatpush1.bf16.msra.mxu0 0
      %4972 = vmatprep.mubr.bf16.mxu0 0
      %4973 = vmatmul.mubr.bf16.gmra.mrb[0].mxu0 %v4853
      %v4974 = vpop.f32.mrb[0].mxu0
      %v4975 = vadd.f32 %v4890, %v4974
      %v4976 = vpop.f32.mrb[0].mxu0
      %v4977 = vpop.f32.mrb[0].mxu0
      %v4978 = vadd.f32 %v4890, %v4977
      %v4979 = vpop.f32.mrb[0].mxu0
      %4980 = vmatprep.mubr.bf16.mxu0 0
      %4981 = vmatmul.mubr.bf16.gmra.mrb[0].mxu0 %v4854
      %v4982 = vpop.f32.mrb[0].mxu0
      %v4983 = vadd.f32 %v4890, %v4982
      %v4984 = vpop.f32.mrb[0].mxu0
      %v4985 = vpop.f32.mrb[0].mxu0
      %v4986 = vadd.f32 %v4890, %v4985
      %v4987 = vpop.f32.mrb[0].mxu0
      %4988 = vmatprep.mubr.bf16.mxu0 0
      %4989 = vmatmul.mubr.bf16.gmra.mrb[0].mxu0 %v4855
      %v4990 = vpop.f32.mrb[0].mxu0
      %v4991 = vadd.f32 %v4890, %v4990
      %v4992 = vpop.f32.mrb[0].mxu0
      %v4993 = vpop.f32.mrb[0].mxu0
      %v4994 = vadd.f32 %v4890, %v4993
      %v4995 = vpop.f32.mrb[0].mxu0
      %4996 = vmatprep.mubr.bf16.mxu0 0
      %4997 = vmatmul.mubr.bf16.gmra.mrb[0].mxu0 %v4856
      %v4998 = vpop.f32.mrb[0].mxu0
      %v4999 = vadd.f32 %v4890, %v4998
      %v5000 = vpop.f32.mrb[0].mxu0
      %v5001 = vpop.f32.mrb[0].mxu0
      %v5002 = vadd.f32 %v4890, %v5001
      %v5003 = vpop.f32.mrb[0].mxu0
      %5004 = vmatprep.mubr.bf16.mxu0 0
      %5005 = vmatmul.mubr.bf16.gmra.mrb[0].mxu0 %v4857
      %v5006 = vpop.f32.mrb[0].mxu0
      %v5007 = vadd.f32 %v4890, %v5006
      %v5008 = vpop.f32.mrb[0].mxu0
      %v5009 = vpop.f32.mrb[0].mxu0
      %v5010 = vadd.f32 %v4890, %v5009
      %v5011 = vpop.f32.mrb[0].mxu0
      %5012 = vmatprep.mubr.bf16.mxu0 0
      %5013 = vmatmul.mubr.bf16.gmra.mrb[0].mxu0 %v4858
      %v5014 = vpop.f32.mrb[0].mxu0
      %v5015 = vadd.f32 %v4890, %v5014
      %v5016 = vpop.f32.mrb[0].mxu0
      %v5017 = vpop.f32.mrb[0].mxu0
      %v5018 = vadd.f32 %v4890, %v5017
      %v5019 = vpop.f32.mrb[0].mxu0
      %5020 = vmatprep.mubr.bf16.mxu0 0
      %5021 = vmatmul.mubr.bf16.gmra.mrb[0].mxu0 %v4859
      %v5022 = vpop.f32.mrb[0].mxu0
      %v5023 = vadd.f32 %v4890, %v5022
      %v5024 = vpop.f32.mrb[0].mxu0
      %v5025 = vpop.f32.mrb[0].mxu0
      %v5026 = vadd.f32 %v4890, %v5025
      %v5027 = vpop.f32.mrb[0].mxu0
      %5028 = vmatprep.mubr.bf16.mxu0 0
      %5029 = vmatmul.mubr.bf16.gmra.mrb[0].mxu0 %v4860
      %v5030 = vpop.f32.mrb[0].mxu0
      %v5031 = vadd.f32 %v4890, %v5030
      %v5032 = vpop.f32.mrb[0].mxu0
      %v5033 = vpop.f32.mrb[0].mxu0
      %v5034 = vadd.f32 %v4890, %v5033
      %v5035 = vpop.f32.mrb[0].mxu0
      %5036 = vmatprep.mubr.bf16.mxu0 0
      %5037 = vmatmul.mubr.bf16.gmra.mrb[0].mxu0 %v4861
      %v5038 = vpop.f32.mrb[0].mxu0
      %v5039 = vadd.f32 %v4890, %v5038
      %v5040 = vpop.f32.mrb[0].mxu0
      %v5041 = vpop.f32.mrb[0].mxu0
      %v5042 = vadd.f32 %v4890, %v5041
      %v5043 = vpop.f32.mrb[0].mxu0
      %5044 = vmatprep.mubr.bf16.mxu0 0
      %5045 = vmatmul.mubr.bf16.gmra.mrb[0].mxu0 %v4862
      %v5046 = vpop.f32.mrb[0].mxu0
      %v5047 = vadd.f32 %v4890, %v5046
      %v5048 = vpop.f32.mrb[0].mxu0
      %v5049 = vpop.f32.mrb[0].mxu0
      %v5050 = vadd.f32 %v4890, %v5049
      %v5051 = vpop.f32.mrb[0].mxu0
      %5052 = vmatprep.mubr.bf16.mxu0 0
      %5053 = vmatmul.mubr.bf16.gmra.mrb[0].mxu0 %v4863
      %v5054 = vpop.f32.mrb[0].mxu0
      %v5055 = vadd.f32 %v4890, %v5054
      %v5056 = vpop.f32.mrb[0].mxu0
      %v5057 = vpop.f32.mrb[0].mxu0
      %v5058 = vadd.f32 %v4890, %v5057
      %v5059 = vpop.f32.mrb[0].mxu0
      %5060 = vmatprep.mubr.bf16.mxu0 0
      %5061 = vmatmul.mubr.bf16.gmra.mrb[0].mxu0 %v4864
      %v5062 = vpop.f32.mrb[0].mxu0
      %v5063 = vadd.f32 %v4890, %v5062
      %v5064 = vpop.f32.mrb[0].mxu0
      %v5065 = vpop.f32.mrb[0].mxu0
      %v5066 = vadd.f32 %v4890, %v5065
      %v5067 = vpop.f32.mrb[0].mxu0
      %5068 = vmatprep.mubr.bf16.mxu0 0
      %5069 = vmatmul.mubr.bf16.gmra.mrb[0].mxu0 %v4865
      %v5070 = vpop.f32.mrb[0].mxu0
      %v5071 = vadd.f32 %v4890, %v5070
      %v5072 = vpop.f32.mrb[0].mxu0
      %v5073 = vpop.f32.mrb[0].mxu0
      %v5074 = vadd.f32 %v4890, %v5073
      %v5075 = vpop.f32.mrb[0].mxu0
      %5076 = vmatprep.mubr.bf16.mxu0 0
      %5077 = vmatmul.mubr.bf16.gmra.mrb[0].mxu0 %v4866
      %v5078 = vpop.f32.mrb[0].mxu0
      %v5079 = vadd.f32 %v4890, %v5078
      %v5080 = vpop.f32.mrb[0].mxu0
      %v5081 = vpop.f32.mrb[0].mxu0
      %v5082 = vadd.f32 %v4890, %v5081
      %v5083 = vpop.f32.mrb[0].mxu0
      %5084 = vmatprep.mubr.bf16.mxu0 0
      %5085 = vmatmul.mubr.bf16.gmra.mrb[0].mxu0 %v4867
      %v5086 = vpop.f32.mrb[0].mxu0
      %v5087 = vadd.f32 %v4890, %v5086
      %v5088 = vpop.f32.mrb[0].mxu0
      %v5089 = vpop.f32.mrb[0].mxu0
      %v5090 = vadd.f32 %v4890, %v5089
      %v5091 = vpop.f32.mrb[0].mxu0
      %5092 = vmatprep.mubr.bf16.mxu0 0
      %5093 = vmatmul.mubr.bf16.gmra.mrb[0].mxu0 %v4868
      %v5094 = vpop.f32.mrb[0].mxu0
      %v5095 = vadd.f32 %v4890, %v5094
      %v5096 = vpop.f32.mrb[0].mxu0
      %v5097 = vpop.f32.mrb[0].mxu0
      %v5098 = vadd.f32 %v4890, %v5097
      %v5099 = vpop.f32.mrb[0].mxu0
      %5100 = vdwg.mxu0
      %5101 = vxpose.xlu0.b32.start [1/16] %v4975, 128
      %5102 = vxpose.xlu0.b32.cont [2/16] %v4978, 128
      %5103 = vxpose.xlu0.b32.cont [3/16] %v4983, 128
      %5104 = vxpose.xlu0.b32.cont [4/16] %v4986, 128
      %5105 = vxpose.xlu0.b32.cont [5/16] %v4991, 128
      %5106 = vxpose.xlu0.b32.cont [6/16] %v4994, 128
      %5107 = vxpose.xlu0.b32.cont [7/16] %v4999, 128
      %5108 = vxpose.xlu0.b32.cont [8/16] %v5002, 128
      %5109 = vxpose.xlu0.b32.cont [9/16] %v5007, 128
      %5110 = vxpose.xlu0.b32.cont [10/16] %v5010, 128
      %5111 = vxpose.xlu0.b32.cont [11/16] %v5015, 128
      %5112 = vxpose.xlu0.b32.cont [12/16] %v5018, 128
      %5113 = vxpose.xlu0.b32.cont [13/16] %v5023, 128
      %5114 = vxpose.xlu0.b32.cont [14/16] %v5026, 128
      %5115 = vxpose.xlu0.b32.cont [15/16] %v5031, 128
      %5116 = vxpose.xlu0.b32.end [16/16] %v5034, 128
      %v5117 = vpop.trf.xlu0
      %v5118 = vpop.trf.xlu0
      %v5119 = vpop.trf.xlu0
      %v5120 = vpop.trf.xlu0
      %v5121 = vpop.trf.xlu0
      %v5122 = vpop.trf.xlu0
      %v5123 = vpop.trf.xlu0
      %v5124 = vpop.trf.xlu0
      %v5125 = vpop.trf.xlu0
      %v5126 = vpop.trf.xlu0
      %v5127 = vpop.trf.xlu0
      %v5128 = vpop.trf.xlu0
      %v5129 = vpop.trf.xlu0
      %v5130 = vpop.trf.xlu0
      %v5131 = vpop.trf.xlu0
      %v5132 = vpop.trf.xlu0
      %5133 = vxpose.xlu0.b32.start [1/16] %v5039, 128
      %5134 = vxpose.xlu0.b32.cont [2/16] %v5042, 128
      %5135 = vxpose.xlu0.b32.cont [3/16] %v5047, 128
      %5136 = vxpose.xlu0.b32.cont [4/16] %v5050, 128
      %5137 = vxpose.xlu0.b32.cont [5/16] %v5055, 128
      %5138 = vxpose.xlu0.b32.cont [6/16] %v5058, 128
      %5139 = vxpose.xlu0.b32.cont [7/16] %v5063, 128
      %5140 = vxpose.xlu0.b32.cont [8/16] %v5066, 128
      %5141 = vxpose.xlu0.b32.cont [9/16] %v5071, 128
      %5142 = vxpose.xlu0.b32.cont [10/16] %v5074, 128
      %5143 = vxpose.xlu0.b32.cont [11/16] %v5079, 128
      %5144 = vxpose.xlu0.b32.cont [12/16] %v5082, 128
      %5145 = vxpose.xlu0.b32.cont [13/16] %v5087, 128
      %5146 = vxpose.xlu0.b32.cont [14/16] %v5090, 128
      %5147 = vxpose.xlu0.b32.cont [15/16] %v5095, 128
      %5148 = vxpose.xlu0.b32.end [16/16] %v5098, 128
      %v5149 = vpop.trf.xlu0
      %v5150 = vpop.trf.xlu0
      %v5151 = vpop.trf.xlu0
      %v5152 = vpop.trf.xlu0
      %v5153 = vpop.trf.xlu0
      %v5154 = vpop.trf.xlu0
      %v5155 = vpop.trf.xlu0
      %v5156 = vpop.trf.xlu0
      %v5157 = vpop.trf.xlu0
      %v5158 = vpop.trf.xlu0
      %v5159 = vpop.trf.xlu0
      %v5160 = vpop.trf.xlu0
      %v5161 = vpop.trf.xlu0
      %v5162 = vpop.trf.xlu0
      %v5163 = vpop.trf.xlu0
      %v5164 = vpop.trf.xlu0
      %v5165 = vld [vmem:[%s266] sm:$0xff]
      %v5167 = vcombine.high %v5165, %v5165
      %v5169 = vadd.f32 %v5117, %v5165
      %v5170 = vadd.f32 %v5149, %v5167
      %v5173 = vcombine.low %v5169, %v5170
      %5175 = vst [vmem:[%s271] sm:$0xff] %v5173
      %p5176 = scmp.lt.s32.totalorder %s17, 1
      %s5177 = scalar_select %p5176, %s17, 1
      %s5178 = smul.addr %s5177, 2
      %s5179 = smul.addr %s5178, 4
      %s5180 = scalar_lea.vmem %s6, %s5179
      // Predicated region
      $region45: #{resnet_block_forward.1} parent=43 // pred_check
        %p5181 = pneg %p171
      $region46: #{resnet_block_forward.1} parent=43 // pred_check_branch
        %5183 = sbr.rel (%p5181) target = $region48
      $region47: #{resnet_block_forward.1} parent=43 // pred_region
        _
      $region48: #{resnet_block_forward.1} parent=43 // pred_fallthru
        _
    $region44: #{resnet_block_forward.1} parent=5 // pred_fallthru
      _
    %p5184 = scmp.le.s32.totalorder 2, %s12
    // Predicated region
    $region49: #{resnet_block_forward.1} parent=5 // pred_check
      %p5185 = pneg %p5184
    $region50: #{resnet_block_forward.1} parent=5 // pred_check_branch
      %5187 = sbr.rel (%p5185) target = $region52
    $region51: #{resnet_block_forward.1} parent=5 // pred_region
      %s5188 = ssub.s32 %s12, 2
      // Predicated region
      $region53: #{resnet_block_forward.1} parent=51 // pred_check
        %p5189 = pneg %p177
      $region54: #{resnet_block_forward.1} parent=51 // pred_check_branch
        %5191 = sbr.rel (%p5189) target = $region56
      $region55: #{resnet_block_forward.1} parent=51 // pred_region
        %p5192 = scmp.lt.s32.totalorder %s18, 1
        %s5193 = scalar_select %p5192, %s18, 1
        %s5194 = smul.addr %s5193, 2
        %s5195 = smul.addr %s5194, 4
        %s5196 = scalar_lea.vmem %s6, %s5195
      $region56: #{resnet_block_forward.1} parent=51 // pred_fallthru
        _
    $region52: #{resnet_block_forward.1} parent=5 // pred_fallthru
      _
  $region6: #{resnet_block_forward.1} parent=0 // loop_footer
    %s16 = sadd.s32 1, %s12
  $region7: #{resnet_block_forward.1} parent=0 // loop_footer_branch
    %11 = sbr.rel target = $region3
  $region8: #{resnet_block_forward.1} parent=0 // loop_exit
    _

</llo_original>
